<compile_context>
chip_gen: v5e
topology: v5e:2x2
jax: 0.10.0
libtpu: 0.0.40
codegen_flags: <defaults>
</compile_context>

<pallas_src>
import math
import jax
import jax.numpy as jnp
from jax import lax
from jax.experimental import pallas as pl
from jax.experimental.pallas import tpu as pltpu  # noqa: F401  (kept for TPU-specific tuning)

# ----------------- config (small, consistent with the module) -----------------
IMAGE_SIZE = 16
PATCH = 4
NUM_CHANNELS = 3
EMB = 32          # embedding_dim
HID = 32          # hidden_dim  (== EMB -> no "has_project" dense layer)
NUM_HEAD = 2
HEAD_DIM = 16     # num_head * head_dim == hidden_dim
FF = 64
NUM_LAYERS = 2
DROPOUT_P = 0.0   # dropout is identity at inference
LN_EPS = 1e-5     # PyTorch nn.LayerNorm default

NUM_PATCHES = (IMAGE_SIZE // PATCH) * (IMAGE_SIZE // PATCH)   # 16
SEQ = NUM_PATCHES + 1                                         # +1 cls token -> 17
CPP = NUM_CHANNELS * PATCH * PATCH                            # 48
SCALE = 1.0 / math.sqrt(HEAD_DIM)


# ----------------------------- in-kernel helpers ------------------------------
def _layernorm(x, g, b):
    mu = jnp.mean(x, axis=-1, keepdims=True)
    var = jnp.mean((x - mu) ** 2, axis=-1, keepdims=True)
    return (x - mu) * lax.rsqrt(var + LN_EPS) * g + b


def _gelu_exact(x):
    # PyTorch nn.GELU() default: exact erf form (review: do not switch to approx).
    return 0.5 * x * (1.0 + lax.erf(x * (1.0 / math.sqrt(2.0))))


# ------------------------------ fused Pallas kernel ---------------------------
def make_vit_kernel(nb):
    """nb = number of batches folded into this single kernel invocation."""

    def kernel(pat_ref, pw_ref, add_ref,
               ln1g_ref, ln1b_ref,
               wqkv_ref, bqkv_ref, wo_ref, bo_ref,
               ln2g_ref, ln2b_ref,
               w1_ref, b1_ref, w2_ref, b2_ref,
               fng_ref, fnb_ref,
               o_ref):
        # pat_ref : (nb*NUM_PATCHES, CPP)   raw patch rows, batch-flattened
        # pw_ref  : (CPP, EMB)
        # add_ref : (SEQ, EMB)              row 0: cls_token+pos0, rows 1..: patch_b+pos
        # wqkv    : (L, HID, 3*NH*HD)       columns [Q(h0,h1) | K(h0,h1) | V(h0,h1)]
        # bqkv    : (L, 1, 3*NH*HD)
        # wo      : (L, NH*HD, HID)         bo: (L, 1, HID)
        # o_ref   : (nb*SEQ, HID)
        add = add_ref[...]
        add_cls = add[0:1, :]          # (1, EMB)          cls_token + pos[0]
        add_pat = add[1:, :]           # (NUM_PATCHES, EMB) patch_bias + pos[1:]

        # Patch embedding for ALL batches in one matmul: (nb*16, 48) @ (48, 32).
        emb = jnp.dot(pat_ref[...], pw_ref[...],
                      preferred_element_type=jnp.float32)

        # Build the flattened (nb*SEQ, EMB) token matrix: per batch, the cls row
        # followed by its 16 patch rows (one cheap sublane concat, no HBM pass).
        rows = []
        for b in range(nb):
            rows.append(add_cls)
            rows.append(emb[b * NUM_PATCHES:(b + 1) * NUM_PATCHES, :] + add_pat)
        x = jnp.concatenate(rows, axis=0)                       # (nb*SEQ, EMB)

        for l in range(NUM_LAYERS):
            # ---- pre-norm multi-head self attention (the `Attention` module) ----
            h1 = _layernorm(x, ln1g_ref[l], ln1b_ref[l])        # (R, HID)
            # Fused QKV: one (R, 32) @ (32, 96) matmul for all heads.
            qkv = jnp.dot(h1, wqkv_ref[l],
                          preferred_element_type=jnp.float32) + bqkv_ref[l]

            ctx_rows = []
            for b in range(nb):                 # per-(batch, head) S x S matmuls only
                r0 = b * SEQ
                heads = []
                for hh in range(NUM_HEAD):
                    qo = hh * HEAD_DIM
                    ko = NUM_HEAD * HEAD_DIM + hh * HEAD_DIM
                    vo = 2 * NUM_HEAD * HEAD_DIM + hh * HEAD_DIM
                    q = qkv[r0:r0 + SEQ, qo:qo + HEAD_DIM]      # (SEQ, HD)
                    k = qkv[r0:r0 + SEQ, ko:ko + HEAD_DIM]
                    v = qkv[r0:r0 + SEQ, vo:vo + HEAD_DIM]
                    # scores = q @ k^T / sqrt(head_dim)  (k-transpose via dot_general)
                    s = lax.dot_general(q, k, (((1,), (1,)), ((), ())),
                                        preferred_element_type=jnp.float32) * SCALE
                    m = jnp.max(s, axis=-1, keepdims=True)
                    e = jnp.exp(s - m)
                    # exact reciprocal: approx=True not validated inside 1e-4 tol
                    inv = pl.reciprocal(jnp.sum(e, axis=-1, keepdims=True))
                    p = e * inv                                 # softmax over keys
                    heads.append(jnp.dot(p, v,
                                         preferred_element_type=jnp.float32))
                # combine_heads: lane concat (rides the idle XLU slot)
                ctx_rows.append(jnp.concatenate(heads, axis=1))  # (SEQ, NH*HD)
            ctx = jnp.concatenate(ctx_rows, axis=0)              # (R, NH*HD)

            # Single output projection for all rows + residual (dropout == identity).
            x = x + jnp.dot(ctx, wo_ref[l],
                            preferred_element_type=jnp.float32) + bo_ref[l]

            # ---- pre-norm feed-forward ----
            h2 = _layernorm(x, ln2g_ref[l], ln2b_ref[l])
            u = _gelu_exact(jnp.dot(h2, w1_ref[l],
                                    preferred_element_type=jnp.float32) + b1_ref[l])
            x = x + jnp.dot(u, w2_ref[l],
                            preferred_element_type=jnp.float32) + b2_ref[l]

        # final LayerNorm of Model.forward; one flat (R, HID) store.
        o_ref[...] = _layernorm(x, fng_ref[...], fnb_ref[...])

    return kernel


# --------------------------------- wrapper ------------------------------------
def vit_forward(pixel_values, params):
    B, C, H, W = pixel_values.shape
    p = PATCH
    # Patchify (glue): NCHW -> (B*N, C*p*p), matching Conv2d(stride=patch) semantics.
    patches = pixel_values.reshape(B, C, H // p, p, W // p, p)
    patches = patches.transpose(0, 2, 4, 1, 3, 5).reshape(B * NUM_PATCHES, CPP)

    # Per-row additive term: pos_emb + [cls_token ; patch_bias repeated].
    addend = params['pos_emb'][0] + jnp.concatenate(
        [params['cls_token'].reshape(1, EMB),
         jnp.broadcast_to(params['patch_b'], (NUM_PATCHES, EMB))], axis=0)  # (SEQ, EMB)

    # Fused QKV weights/bias: one 96-wide projection per layer (done once on tiny
    # constants; in a real deployment this happens at parameter-load time).
    wqkv = jnp.concatenate([params['wq'], params['wk'], params['wv']], axis=2)  # (L,32,96)
    bqkv = jnp.concatenate([params['bq'], params['bk'], params['bv']], axis=2)  # (L,1,96)

    # Single invocation, no grid: whole (tiny) batch folded into the sublane axis.
    # For large B on v7x one would re-introduce a batch-block grid with
    # dimension_semantics=(pltpu.CORE_PARALLEL,) once per-core work amortizes the
    # per-step overhead; for B=2 a single call is strictly better (see review).
    out_flat = pl.pallas_call(
        make_vit_kernel(B),
        out_shape=jax.ShapeDtypeStruct((B * SEQ, HID), jnp.float32),
    )(patches, params['patch_w'], addend,
      params['ln1_g'], params['ln1_b'],
      wqkv, bqkv, params['wo'], params['bo'],
      params['ln2_g'], params['ln2_b'],
      params['w1'], params['b1'], params['w2'], params['b2'],
      params['final_g'], params['final_b'])

    return out_flat.reshape(B, SEQ, HID)   # contiguous reshape (view), lane-dense store kept flat


# ---------------------------- pure-JAX reference -------------------------------
def reference_forward(pixel_values, params):
    B, C, H, W = pixel_values.shape
    p = PATCH
    patches = pixel_values.reshape(B, C, H // p, p, W // p, p)
    patches = patches.transpose(0, 2, 4, 1, 3, 5).reshape(B, NUM_PATCHES, CPP)
    emb = patches @ params['patch_w'] + params['patch_b']
    cls = jnp.broadcast_to(params['cls_token'], (B, 1, EMB))
    x = jnp.concatenate([cls, emb], axis=1) + params['pos_emb']

    def ln(x, g, b):
        mu = jnp.mean(x, axis=-1, keepdims=True)
        var = jnp.mean((x - mu) ** 2, axis=-1, keepdims=True)
        return (x - mu) / jnp.sqrt(var + LN_EPS) * g + b

    for l in range(NUM_LAYERS):
        h = ln(x, params['ln1_g'][l], params['ln1_b'][l])
        q = h @ params['wq'][l] + params['bq'][l]
        k = h @ params['wk'][l] + params['bk'][l]
        v = h @ params['wv'][l] + params['bv'][l]
        qh = q.reshape(B, SEQ, NUM_HEAD, HEAD_DIM).transpose(0, 2, 1, 3)
        kh = k.reshape(B, SEQ, NUM_HEAD, HEAD_DIM).transpose(0, 2, 1, 3)
        vh = v.reshape(B, SEQ, NUM_HEAD, HEAD_DIM).transpose(0, 2, 1, 3)
        s = jnp.einsum('bhqd,bhkd->bhqk', qh, kh) / math.sqrt(HEAD_DIM)
        a = jax.nn.softmax(s, axis=-1)
        o = jnp.einsum('bhqk,bhkd->bhqd', a, vh)
        o = o.transpose(0, 2, 1, 3).reshape(B, SEQ, NUM_HEAD * HEAD_DIM)
        x = x + (o @ params['wo'][l] + params['bo'][l])
        h2 = ln(x, params['ln2_g'][l], params['ln2_b'][l])
        u = h2 @ params['w1'][l] + params['b1'][l]
        u = 0.5 * u * (1.0 + lax.erf(u / math.sqrt(2.0)))
        x = x + (u @ params['w2'][l] + params['b2'][l])
    return ln(x, params['final_g'], params['final_b'])


# ------------------------------- param init ------------------------------------
def init_params(key):
    ks = jax.random.split(key, 16)
    n = lambda k, shape, s=0.02: (s * jax.random.normal(k, shape)).astype(jnp.float32)
    L = NUM_LAYERS
    params = {
        'patch_w': n(ks[0], (CPP, EMB)),
        'patch_b': n(ks[1], (1, EMB)),
        'cls_token': n(ks[2], (1, 1, EMB)),
        'pos_emb': n(ks[3], (1, SEQ, EMB)),
        # LayerNorm params: PyTorch defaults (ones / zeros), stacked per layer.
        'ln1_g': jnp.ones((L, 1, HID), jnp.float32),
        'ln1_b': jnp.zeros((L, 1, HID), jnp.float32),
        'ln2_g': jnp.ones((L, 1, HID), jnp.float32),
        'ln2_b': jnp.zeros((L, 1, HID), jnp.float32),
        'final_g': jnp.ones((1, HID), jnp.float32),
        'final_b': jnp.zeros((1, HID), jnp.float32),
        # Attention / FF linear layers, stored as (in, out) so y = x @ W + b
        # (PyTorch nn.Linear weights would be transposed into this layout).
        'wq': n(ks[4], (L, HID, NUM_HEAD * HEAD_DIM)),
        'bq': n(ks[5], (L, 1, NUM_HEAD * HEAD_DIM)),
        'wk': n(ks[6], (L, HID, NUM_HEAD * HEAD_DIM)),
        'bk': n(ks[7], (L, 1, NUM_HEAD * HEAD_DIM)),
        'wv': n(ks[8], (L, HID, NUM_HEAD * HEAD_DIM)),
        'bv': n(ks[9], (L, 1, NUM_HEAD * HEAD_DIM)),
        'wo': n(ks[10], (L, NUM_HEAD * HEAD_DIM, HID)),
        'bo': n(ks[11], (L, 1, HID)),
        'w1': n(ks[12], (L, HID, FF)),
        'b1': n(ks[13], (L, 1, FF)),
        'w2': n(ks[14], (L, FF, HID)),
        'b2': n(ks[15], (L, 1, HID)),
    }
    return params


if __name__ == "__main__":
    key = jax.random.PRNGKey(0)
    kx, kp = jax.random.split(key)
    B = 2
    pixel_values = jax.random.normal(kx, (B, NUM_CHANNELS, IMAGE_SIZE, IMAGE_SIZE),
                                     dtype=jnp.float32)
    params = init_params(kp)

    out = jax.block_until_ready(vit_forward(pixel_values, params))
    ref = jax.block_until_ready(reference_forward(pixel_values, params))

    assert out.shape == (B, SEQ, HID), out.shape
    assert jnp.allclose(out, ref, rtol=1e-4, atol=1e-4), \
        f"max err {jnp.max(jnp.abs(out - ref))}"
    # TODO(synk): bool_masked_pos / mask_token path (use_mask_token) not exercised;
    # dropout / grad-checkpointing / autocast are identity at inference (p=0, fp32).
    print("KERNEL_OK")
</pallas_src>

<mosaic_0001>
module attributes {stable_mosaic.version = 11 : i64} {
  func.func @kernel(%arg0: memref<32x48xf32, #tpu.memory_space<vmem>>, %arg1: memref<48x32xf32, #tpu.memory_space<vmem>>, %arg2: memref<17x32xf32, #tpu.memory_space<vmem>>, %arg3: memref<2x1x32xf32, #tpu.memory_space<vmem>>, %arg4: memref<2x1x32xf32, #tpu.memory_space<vmem>>, %arg5: memref<2x32x96xf32, #tpu.memory_space<vmem>>, %arg6: memref<2x1x96xf32, #tpu.memory_space<vmem>>, %arg7: memref<2x32x32xf32, #tpu.memory_space<vmem>>, %arg8: memref<2x1x32xf32, #tpu.memory_space<vmem>>, %arg9: memref<2x1x32xf32, #tpu.memory_space<vmem>>, %arg10: memref<2x1x32xf32, #tpu.memory_space<vmem>>, %arg11: memref<2x32x64xf32, #tpu.memory_space<vmem>>, %arg12: memref<2x1x64xf32, #tpu.memory_space<vmem>>, %arg13: memref<2x64x32xf32, #tpu.memory_space<vmem>>, %arg14: memref<2x1x32xf32, #tpu.memory_space<vmem>>, %arg15: memref<1x32xf32, #tpu.memory_space<vmem>>, %arg16: memref<1x32xf32, #tpu.memory_space<vmem>>, %arg17: memref<34x32xf32, #tpu.memory_space<vmem>>) attributes {dimension_semantics = [], scalar_prefetch = 0 : i64, scratch_operands = 0 : i64, tpu.core_type = #tpu.core_type<tc>} {
    %c0 = arith.constant 0 : index
    %c0_0 = arith.constant 0 : index
    %0 = vector.load %arg2[%c0, %c0_0] : memref<17x32xf32, #tpu.memory_space<vmem>>, vector<17x32xf32>
    %1 = vector.extract_strided_slice %0 {offsets = [0, 0], sizes = [1, 32], strides = [1, 1]} : vector<17x32xf32> to vector<1x32xf32>
    %2 = vector.extract_strided_slice %0 {offsets = [1, 0], sizes = [16, 32], strides = [1, 1]} : vector<17x32xf32> to vector<16x32xf32>
    %c0_1 = arith.constant 0 : index
    %c0_2 = arith.constant 0 : index
    %3 = vector.load %arg0[%c0_1, %c0_2] : memref<32x48xf32, #tpu.memory_space<vmem>>, vector<32x48xf32>
    %c0_3 = arith.constant 0 : index
    %c0_4 = arith.constant 0 : index
    %4 = vector.load %arg1[%c0_3, %c0_4] : memref<48x32xf32, #tpu.memory_space<vmem>>, vector<48x32xf32>
    %cst = arith.constant dense<0.000000e+00> : vector<32x32xf32>
    %5 = tpu.matmul %3, %4, %cst {dimension_numbers = #tpu.dot_dimension_numbers<[1], [0], [0], [1], [0, 0, 1, 1], [], []>} : vector<32x48xf32>, vector<48x32xf32>, vector<32x32xf32> -> vector<32x32xf32>
    %6 = vector.extract_strided_slice %5 {offsets = [0, 0], sizes = [16, 32], strides = [1, 1]} : vector<32x32xf32> to vector<16x32xf32>
    %7 = arith.addf %6, %2 : vector<16x32xf32>
    %8 = vector.extract_strided_slice %5 {offsets = [16, 0], sizes = [16, 32], strides = [1, 1]} : vector<32x32xf32> to vector<16x32xf32>
    %9 = arith.addf %8, %2 : vector<16x32xf32>
    %10 = tpu.concatenate %1, %7, %1, %9 in 0 : vector<1x32xf32>, vector<16x32xf32>, vector<1x32xf32>, vector<16x32xf32> -> vector<34x32xf32>
    %c0_5 = arith.constant 0 : index
    %c0_6 = arith.constant 0 : index
    %c0_7 = arith.constant 0 : index
    %11 = vector.load %arg3[%c0_5, %c0_6, %c0_7] : memref<2x1x32xf32, #tpu.memory_space<vmem>>, vector<1x1x32xf32>
    %12 = vector.shape_cast %11 : vector<1x1x32xf32> to vector<1x32xf32>
    %c0_8 = arith.constant 0 : index
    %c0_9 = arith.constant 0 : index
    %c0_10 = arith.constant 0 : index
    %13 = vector.load %arg4[%c0_8, %c0_9, %c0_10] : memref<2x1x32xf32, #tpu.memory_space<vmem>>, vector<1x1x32xf32>
    %14 = vector.shape_cast %13 : vector<1x1x32xf32> to vector<1x32xf32>
    %cst_11 = arith.constant dense<0.000000e+00> : vector<34xf32>
    %15 = vector.multi_reduction <add>, %10, %cst_11 [1] : vector<34x32xf32> to vector<34xf32>
    %16 = vector.shape_cast %15 : vector<34xf32> to vector<34x1xf32>
    %cst_12 = arith.constant 3.200000e+01 : f32
    %17 = vector.broadcast %cst_12 : f32 to vector<34x1xf32>
    %18 = arith.divf %16, %17 : vector<34x1xf32>
    %19 = vector.broadcast %18 : vector<34x1xf32> to vector<34x32xf32>
    %20 = arith.subf %10, %19 : vector<34x32xf32>
    %21 = arith.mulf %20, %20 : vector<34x32xf32>
    %cst_13 = arith.constant dense<0.000000e+00> : vector<34xf32>
    %22 = vector.multi_reduction <add>, %21, %cst_13 [1] : vector<34x32xf32> to vector<34xf32>
    %23 = vector.shape_cast %22 : vector<34xf32> to vector<34x1xf32>
    %cst_14 = arith.constant 3.200000e+01 : f32
    %24 = vector.broadcast %cst_14 : f32 to vector<34x1xf32>
    %25 = arith.divf %23, %24 : vector<34x1xf32>
    %26 = vector.broadcast %18 : vector<34x1xf32> to vector<34x32xf32>
    %27 = arith.subf %10, %26 : vector<34x32xf32>
    %cst_15 = arith.constant 9.99999974E-6 : f32
    %28 = vector.broadcast %cst_15 : f32 to vector<34x1xf32>
    %29 = arith.addf %25, %28 : vector<34x1xf32>
    %30 = math.rsqrt %29 : vector<34x1xf32>
    %31 = vector.broadcast %30 : vector<34x1xf32> to vector<34x32xf32>
    %32 = arith.mulf %27, %31 : vector<34x32xf32>
    %33 = vector.broadcast %12 : vector<1x32xf32> to vector<34x32xf32>
    %34 = arith.mulf %32, %33 : vector<34x32xf32>
    %35 = vector.broadcast %14 : vector<1x32xf32> to vector<34x32xf32>
    %36 = arith.addf %34, %35 : vector<34x32xf32>
    %c0_16 = arith.constant 0 : index
    %c0_17 = arith.constant 0 : index
    %c0_18 = arith.constant 0 : index
    %37 = vector.load %arg5[%c0_16, %c0_17, %c0_18] : memref<2x32x96xf32, #tpu.memory_space<vmem>>, vector<1x32x96xf32>
    %38 = vector.shape_cast %37 : vector<1x32x96xf32> to vector<32x96xf32>
    %cst_19 = arith.constant dense<0.000000e+00> : vector<34x96xf32>
    %39 = tpu.matmul %36, %38, %cst_19 {dimension_numbers = #tpu.dot_dimension_numbers<[1], [0], [0], [1], [0, 0, 1, 1], [], []>} : vector<34x32xf32>, vector<32x96xf32>, vector<34x96xf32> -> vector<34x96xf32>
    %c0_20 = arith.constant 0 : index
    %c0_21 = arith.constant 0 : index
    %c0_22 = arith.constant 0 : index
    %40 = vector.load %arg6[%c0_20, %c0_21, %c0_22] : memref<2x1x96xf32, #tpu.memory_space<vmem>>, vector<1x1x96xf32>
    %41 = vector.shape_cast %40 : vector<1x1x96xf32> to vector<1x96xf32>
    %42 = vector.broadcast %41 : vector<1x96xf32> to vector<34x96xf32>
    %43 = arith.addf %39, %42 : vector<34x96xf32>
    %44 = vector.extract_strided_slice %43 {offsets = [0, 0], sizes = [17, 16], strides = [1, 1]} : vector<34x96xf32> to vector<17x16xf32>
    %45 = vector.extract_strided_slice %43 {offsets = [0, 32], sizes = [17, 16], strides = [1, 1]} : vector<34x96xf32> to vector<17x16xf32>
    %46 = vector.extract_strided_slice %43 {offsets = [0, 64], sizes = [17, 16], strides = [1, 1]} : vector<34x96xf32> to vector<17x16xf32>
    %cst_23 = arith.constant dense<0.000000e+00> : vector<17x17xf32>
    %47 = tpu.matmul %44, %45, %cst_23 {dimension_numbers = #tpu.dot_dimension_numbers<[1], [1], [0], [0], [0, 0, 1, 0], [], []>} : vector<17x16xf32>, vector<17x16xf32>, vector<17x17xf32> -> vector<17x17xf32>
    %cst_24 = arith.constant 2.500000e-01 : f32
    %48 = vector.broadcast %cst_24 : f32 to vector<17x17xf32>
    %49 = arith.mulf %47, %48 : vector<17x17xf32>
    %cst_25 = arith.constant dense<0xFF800000> : vector<17xf32>
    %50 = vector.multi_reduction <maximumf>, %49, %cst_25 [1] : vector<17x17xf32> to vector<17xf32>
    %51 = vector.shape_cast %50 : vector<17xf32> to vector<17x1xf32>
    %52 = vector.broadcast %51 : vector<17x1xf32> to vector<17x17xf32>
    %53 = arith.subf %49, %52 : vector<17x17xf32>
    %54 = math.exp %53 : vector<17x17xf32>
    %cst_26 = arith.constant dense<0.000000e+00> : vector<17xf32>
    %55 = vector.multi_reduction <add>, %54, %cst_26 [1] : vector<17x17xf32> to vector<17xf32>
    %56 = vector.shape_cast %55 : vector<17xf32> to vector<17x1xf32>
    %57 = tpu.reciprocal %56 : vector<17x1xf32> -> vector<17x1xf32>
    %58 = vector.broadcast %57 : vector<17x1xf32> to vector<17x17xf32>
    %59 = arith.mulf %54, %58 : vector<17x17xf32>
    %cst_27 = arith.constant dense<0.000000e+00> : vector<17x16xf32>
    %60 = tpu.matmul %59, %46, %cst_27 {dimension_numbers = #tpu.dot_dimension_numbers<[1], [0], [0], [1], [0, 0, 1, 1], [], []>} : vector<17x17xf32>, vector<17x16xf32>, vector<17x16xf32> -> vector<17x16xf32>
    %61 = vector.extract_strided_slice %43 {offsets = [0, 16], sizes = [17, 16], strides = [1, 1]} : vector<34x96xf32> to vector<17x16xf32>
    %62 = vector.extract_strided_slice %43 {offsets = [0, 48], sizes = [17, 16], strides = [1, 1]} : vector<34x96xf32> to vector<17x16xf32>
    %63 = vector.extract_strided_slice %43 {offsets = [0, 80], sizes = [17, 16], strides = [1, 1]} : vector<34x96xf32> to vector<17x16xf32>
    %cst_28 = arith.constant dense<0.000000e+00> : vector<17x17xf32>
    %64 = tpu.matmul %61, %62, %cst_28 {dimension_numbers = #tpu.dot_dimension_numbers<[1], [1], [0], [0], [0, 0, 1, 0], [], []>} : vector<17x16xf32>, vector<17x16xf32>, vector<17x17xf32> -> vector<17x17xf32>
    %cst_29 = arith.constant 2.500000e-01 : f32
    %65 = vector.broadcast %cst_29 : f32 to vector<17x17xf32>
    %66 = arith.mulf %64, %65 : vector<17x17xf32>
    %cst_30 = arith.constant dense<0xFF800000> : vector<17xf32>
    %67 = vector.multi_reduction <maximumf>, %66, %cst_30 [1] : vector<17x17xf32> to vector<17xf32>
    %68 = vector.shape_cast %67 : vector<17xf32> to vector<17x1xf32>
    %69 = vector.broadcast %68 : vector<17x1xf32> to vector<17x17xf32>
    %70 = arith.subf %66, %69 : vector<17x17xf32>
    %71 = math.exp %70 : vector<17x17xf32>
    %cst_31 = arith.constant dense<0.000000e+00> : vector<17xf32>
    %72 = vector.multi_reduction <add>, %71, %cst_31 [1] : vector<17x17xf32> to vector<17xf32>
    %73 = vector.shape_cast %72 : vector<17xf32> to vector<17x1xf32>
    %74 = tpu.reciprocal %73 : vector<17x1xf32> -> vector<17x1xf32>
    %75 = vector.broadcast %74 : vector<17x1xf32> to vector<17x17xf32>
    %76 = arith.mulf %71, %75 : vector<17x17xf32>
    %cst_32 = arith.constant dense<0.000000e+00> : vector<17x16xf32>
    %77 = tpu.matmul %76, %63, %cst_32 {dimension_numbers = #tpu.dot_dimension_numbers<[1], [0], [0], [1], [0, 0, 1, 1], [], []>} : vector<17x17xf32>, vector<17x16xf32>, vector<17x16xf32> -> vector<17x16xf32>
    %78 = tpu.concatenate %60, %77 in 1 : vector<17x16xf32>, vector<17x16xf32> -> vector<17x32xf32>
    %79 = vector.extract_strided_slice %43 {offsets = [17, 0], sizes = [17, 16], strides = [1, 1]} : vector<34x96xf32> to vector<17x16xf32>
    %80 = vector.extract_strided_slice %43 {offsets = [17, 32], sizes = [17, 16], strides = [1, 1]} : vector<34x96xf32> to vector<17x16xf32>
    %81 = vector.extract_strided_slice %43 {offsets = [17, 64], sizes = [17, 16], strides = [1, 1]} : vector<34x96xf32> to vector<17x16xf32>
    %cst_33 = arith.constant dense<0.000000e+00> : vector<17x17xf32>
    %82 = tpu.matmul %79, %80, %cst_33 {dimension_numbers = #tpu.dot_dimension_numbers<[1], [1], [0], [0], [0, 0, 1, 0], [], []>} : vector<17x16xf32>, vector<17x16xf32>, vector<17x17xf32> -> vector<17x17xf32>
    %cst_34 = arith.constant 2.500000e-01 : f32
    %83 = vector.broadcast %cst_34 : f32 to vector<17x17xf32>
    %84 = arith.mulf %82, %83 : vector<17x17xf32>
    %cst_35 = arith.constant dense<0xFF800000> : vector<17xf32>
    %85 = vector.multi_reduction <maximumf>, %84, %cst_35 [1] : vector<17x17xf32> to vector<17xf32>
    %86 = vector.shape_cast %85 : vector<17xf32> to vector<17x1xf32>
    %87 = vector.broadcast %86 : vector<17x1xf32> to vector<17x17xf32>
    %88 = arith.subf %84, %87 : vector<17x17xf32>
    %89 = math.exp %88 : vector<17x17xf32>
    %cst_36 = arith.constant dense<0.000000e+00> : vector<17xf32>
    %90 = vector.multi_reduction <add>, %89, %cst_36 [1] : vector<17x17xf32> to vector<17xf32>
    %91 = vector.shape_cast %90 : vector<17xf32> to vector<17x1xf32>
    %92 = tpu.reciprocal %91 : vector<17x1xf32> -> vector<17x1xf32>
    %93 = vector.broadcast %92 : vector<17x1xf32> to vector<17x17xf32>
    %94 = arith.mulf %89, %93 : vector<17x17xf32>
    %cst_37 = arith.constant dense<0.000000e+00> : vector<17x16xf32>
    %95 = tpu.matmul %94, %81, %cst_37 {dimension_numbers = #tpu.dot_dimension_numbers<[1], [0], [0], [1], [0, 0, 1, 1], [], []>} : vector<17x17xf32>, vector<17x16xf32>, vector<17x16xf32> -> vector<17x16xf32>
    %96 = vector.extract_strided_slice %43 {offsets = [17, 16], sizes = [17, 16], strides = [1, 1]} : vector<34x96xf32> to vector<17x16xf32>
    %97 = vector.extract_strided_slice %43 {offsets = [17, 48], sizes = [17, 16], strides = [1, 1]} : vector<34x96xf32> to vector<17x16xf32>
    %98 = vector.extract_strided_slice %43 {offsets = [17, 80], sizes = [17, 16], strides = [1, 1]} : vector<34x96xf32> to vector<17x16xf32>
    %cst_38 = arith.constant dense<0.000000e+00> : vector<17x17xf32>
    %99 = tpu.matmul %96, %97, %cst_38 {dimension_numbers = #tpu.dot_dimension_numbers<[1], [1], [0], [0], [0, 0, 1, 0], [], []>} : vector<17x16xf32>, vector<17x16xf32>, vector<17x17xf32> -> vector<17x17xf32>
    %cst_39 = arith.constant 2.500000e-01 : f32
    %100 = vector.broadcast %cst_39 : f32 to vector<17x17xf32>
    %101 = arith.mulf %99, %100 : vector<17x17xf32>
    %cst_40 = arith.constant dense<0xFF800000> : vector<17xf32>
    %102 = vector.multi_reduction <maximumf>, %101, %cst_40 [1] : vector<17x17xf32> to vector<17xf32>
    %103 = vector.shape_cast %102 : vector<17xf32> to vector<17x1xf32>
    %104 = vector.broadcast %103 : vector<17x1xf32> to vector<17x17xf32>
    %105 = arith.subf %101, %104 : vector<17x17xf32>
    %106 = math.exp %105 : vector<17x17xf32>
    %cst_41 = arith.constant dense<0.000000e+00> : vector<17xf32>
    %107 = vector.multi_reduction <add>, %106, %cst_41 [1] : vector<17x17xf32> to vector<17xf32>
    %108 = vector.shape_cast %107 : vector<17xf32> to vector<17x1xf32>
    %109 = tpu.reciprocal %108 : vector<17x1xf32> -> vector<17x1xf32>
    %110 = vector.broadcast %109 : vector<17x1xf32> to vector<17x17xf32>
    %111 = arith.mulf %106, %110 : vector<17x17xf32>
    %cst_42 = arith.constant dense<0.000000e+00> : vector<17x16xf32>
    %112 = tpu.matmul %111, %98, %cst_42 {dimension_numbers = #tpu.dot_dimension_numbers<[1], [0], [0], [1], [0, 0, 1, 1], [], []>} : vector<17x17xf32>, vector<17x16xf32>, vector<17x16xf32> -> vector<17x16xf32>
    %113 = tpu.concatenate %95, %112 in 1 : vector<17x16xf32>, vector<17x16xf32> -> vector<17x32xf32>
    %114 = tpu.concatenate %78, %113 in 0 : vector<17x32xf32>, vector<17x32xf32> -> vector<34x32xf32>
    %c0_43 = arith.constant 0 : index
    %c0_44 = arith.constant 0 : index
    %c0_45 = arith.constant 0 : index
    %115 = vector.load %arg7[%c0_43, %c0_44, %c0_45] : memref<2x32x32xf32, #tpu.memory_space<vmem>>, vector<1x32x32xf32>
    %116 = vector.shape_cast %115 : vector<1x32x32xf32> to vector<32x32xf32>
    %cst_46 = arith.constant dense<0.000000e+00> : vector<34x32xf32>
    %117 = tpu.matmul %114, %116, %cst_46 {dimension_numbers = #tpu.dot_dimension_numbers<[1], [0], [0], [1], [0, 0, 1, 1], [], []>} : vector<34x32xf32>, vector<32x32xf32>, vector<34x32xf32> -> vector<34x32xf32>
    %118 = arith.addf %10, %117 : vector<34x32xf32>
    %c0_47 = arith.constant 0 : index
    %c0_48 = arith.constant 0 : index
    %c0_49 = arith.constant 0 : index
    %119 = vector.load %arg8[%c0_47, %c0_48, %c0_49] : memref<2x1x32xf32, #tpu.memory_space<vmem>>, vector<1x1x32xf32>
    %120 = vector.shape_cast %119 : vector<1x1x32xf32> to vector<1x32xf32>
    %121 = vector.broadcast %120 : vector<1x32xf32> to vector<34x32xf32>
    %122 = arith.addf %118, %121 : vector<34x32xf32>
    %c0_50 = arith.constant 0 : index
    %c0_51 = arith.constant 0 : index
    %c0_52 = arith.constant 0 : index
    %123 = vector.load %arg9[%c0_50, %c0_51, %c0_52] : memref<2x1x32xf32, #tpu.memory_space<vmem>>, vector<1x1x32xf32>
    %124 = vector.shape_cast %123 : vector<1x1x32xf32> to vector<1x32xf32>
    %c0_53 = arith.constant 0 : index
    %c0_54 = arith.constant 0 : index
    %c0_55 = arith.constant 0 : index
    %125 = vector.load %arg10[%c0_53, %c0_54, %c0_55] : memref<2x1x32xf32, #tpu.memory_space<vmem>>, vector<1x1x32xf32>
    %126 = vector.shape_cast %125 : vector<1x1x32xf32> to vector<1x32xf32>
    %cst_56 = arith.constant dense<0.000000e+00> : vector<34xf32>
    %127 = vector.multi_reduction <add>, %122, %cst_56 [1] : vector<34x32xf32> to vector<34xf32>
    %128 = vector.shape_cast %127 : vector<34xf32> to vector<34x1xf32>
    %cst_57 = arith.constant 3.200000e+01 : f32
    %129 = vector.broadcast %cst_57 : f32 to vector<34x1xf32>
    %130 = arith.divf %128, %129 : vector<34x1xf32>
    %131 = vector.broadcast %130 : vector<34x1xf32> to vector<34x32xf32>
    %132 = arith.subf %122, %131 : vector<34x32xf32>
    %133 = arith.mulf %132, %132 : vector<34x32xf32>
    %cst_58 = arith.constant dense<0.000000e+00> : vector<34xf32>
    %134 = vector.multi_reduction <add>, %133, %cst_58 [1] : vector<34x32xf32> to vector<34xf32>
    %135 = vector.shape_cast %134 : vector<34xf32> to vector<34x1xf32>
    %cst_59 = arith.constant 3.200000e+01 : f32
    %136 = vector.broadcast %cst_59 : f32 to vector<34x1xf32>
    %137 = arith.divf %135, %136 : vector<34x1xf32>
    %138 = vector.broadcast %130 : vector<34x1xf32> to vector<34x32xf32>
    %139 = arith.subf %122, %138 : vector<34x32xf32>
    %cst_60 = arith.constant 9.99999974E-6 : f32
    %140 = vector.broadcast %cst_60 : f32 to vector<34x1xf32>
    %141 = arith.addf %137, %140 : vector<34x1xf32>
    %142 = math.rsqrt %141 : vector<34x1xf32>
    %143 = vector.broadcast %142 : vector<34x1xf32> to vector<34x32xf32>
    %144 = arith.mulf %139, %143 : vector<34x32xf32>
    %145 = vector.broadcast %124 : vector<1x32xf32> to vector<34x32xf32>
    %146 = arith.mulf %144, %145 : vector<34x32xf32>
    %147 = vector.broadcast %126 : vector<1x32xf32> to vector<34x32xf32>
    %148 = arith.addf %146, %147 : vector<34x32xf32>
    %c0_61 = arith.constant 0 : index
    %c0_62 = arith.constant 0 : index
    %c0_63 = arith.constant 0 : index
    %149 = vector.load %arg11[%c0_61, %c0_62, %c0_63] : memref<2x32x64xf32, #tpu.memory_space<vmem>>, vector<1x32x64xf32>
    %150 = vector.shape_cast %149 : vector<1x32x64xf32> to vector<32x64xf32>
    %cst_64 = arith.constant dense<0.000000e+00> : vector<34x64xf32>
    %151 = tpu.matmul %148, %150, %cst_64 {dimension_numbers = #tpu.dot_dimension_numbers<[1], [0], [0], [1], [0, 0, 1, 1], [], []>} : vector<34x32xf32>, vector<32x64xf32>, vector<34x64xf32> -> vector<34x64xf32>
    %c0_65 = arith.constant 0 : index
    %c0_66 = arith.constant 0 : index
    %c0_67 = arith.constant 0 : index
    %152 = vector.load %arg12[%c0_65, %c0_66, %c0_67] : memref<2x1x64xf32, #tpu.memory_space<vmem>>, vector<1x1x64xf32>
    %153 = vector.shape_cast %152 : vector<1x1x64xf32> to vector<1x64xf32>
    %154 = vector.broadcast %153 : vector<1x64xf32> to vector<34x64xf32>
    %155 = arith.addf %151, %154 : vector<34x64xf32>
    %cst_68 = arith.constant 5.000000e-01 : f32
    %156 = vector.broadcast %cst_68 : f32 to vector<34x64xf32>
    %157 = arith.mulf %156, %155 : vector<34x64xf32>
    %cst_69 = arith.constant 0.707106769 : f32
    %158 = vector.broadcast %cst_69 : f32 to vector<34x64xf32>
    %159 = arith.mulf %155, %158 : vector<34x64xf32>
    %160 = math.erf %159 : vector<34x64xf32>
    %cst_70 = arith.constant 1.000000e+00 : f32
    %161 = vector.broadcast %cst_70 : f32 to vector<34x64xf32>
    %162 = arith.addf %161, %160 : vector<34x64xf32>
    %163 = arith.mulf %157, %162 : vector<34x64xf32>
    %c0_71 = arith.constant 0 : index
    %c0_72 = arith.constant 0 : index
    %c0_73 = arith.constant 0 : index
    %164 = vector.load %arg13[%c0_71, %c0_72, %c0_73] : memref<2x64x32xf32, #tpu.memory_space<vmem>>, vector<1x64x32xf32>
    %165 = vector.shape_cast %164 : vector<1x64x32xf32> to vector<64x32xf32>
    %cst_74 = arith.constant dense<0.000000e+00> : vector<34x32xf32>
    %166 = tpu.matmul %163, %165, %cst_74 {dimension_numbers = #tpu.dot_dimension_numbers<[1], [0], [0], [1], [0, 0, 1, 1], [], []>} : vector<34x64xf32>, vector<64x32xf32>, vector<34x32xf32> -> vector<34x32xf32>
    %167 = arith.addf %122, %166 : vector<34x32xf32>
    %c0_75 = arith.constant 0 : index
    %c0_76 = arith.constant 0 : index
    %c0_77 = arith.constant 0 : index
    %168 = vector.load %arg14[%c0_75, %c0_76, %c0_77] : memref<2x1x32xf32, #tpu.memory_space<vmem>>, vector<1x1x32xf32>
    %169 = vector.shape_cast %168 : vector<1x1x32xf32> to vector<1x32xf32>
    %170 = vector.broadcast %169 : vector<1x32xf32> to vector<34x32xf32>
    %171 = arith.addf %167, %170 : vector<34x32xf32>
    %c1 = arith.constant 1 : index
    %c0_78 = arith.constant 0 : index
    %c0_79 = arith.constant 0 : index
    %172 = vector.load %arg3[%c1, %c0_78, %c0_79] : memref<2x1x32xf32, #tpu.memory_space<vmem>>, vector<1x1x32xf32>
    %173 = vector.shape_cast %172 : vector<1x1x32xf32> to vector<1x32xf32>
    %c1_80 = arith.constant 1 : index
    %c0_81 = arith.constant 0 : index
    %c0_82 = arith.constant 0 : index
    %174 = vector.load %arg4[%c1_80, %c0_81, %c0_82] : memref<2x1x32xf32, #tpu.memory_space<vmem>>, vector<1x1x32xf32>
    %175 = vector.shape_cast %174 : vector<1x1x32xf32> to vector<1x32xf32>
    %cst_83 = arith.constant dense<0.000000e+00> : vector<34xf32>
    %176 = vector.multi_reduction <add>, %171, %cst_83 [1] : vector<34x32xf32> to vector<34xf32>
    %177 = vector.shape_cast %176 : vector<34xf32> to vector<34x1xf32>
    %cst_84 = arith.constant 3.200000e+01 : f32
    %178 = vector.broadcast %cst_84 : f32 to vector<34x1xf32>
    %179 = arith.divf %177, %178 : vector<34x1xf32>
    %180 = vector.broadcast %179 : vector<34x1xf32> to vector<34x32xf32>
    %181 = arith.subf %171, %180 : vector<34x32xf32>
    %182 = arith.mulf %181, %181 : vector<34x32xf32>
    %cst_85 = arith.constant dense<0.000000e+00> : vector<34xf32>
    %183 = vector.multi_reduction <add>, %182, %cst_85 [1] : vector<34x32xf32> to vector<34xf32>
    %184 = vector.shape_cast %183 : vector<34xf32> to vector<34x1xf32>
    %cst_86 = arith.constant 3.200000e+01 : f32
    %185 = vector.broadcast %cst_86 : f32 to vector<34x1xf32>
    %186 = arith.divf %184, %185 : vector<34x1xf32>
    %187 = vector.broadcast %179 : vector<34x1xf32> to vector<34x32xf32>
    %188 = arith.subf %171, %187 : vector<34x32xf32>
    %cst_87 = arith.constant 9.99999974E-6 : f32
    %189 = vector.broadcast %cst_87 : f32 to vector<34x1xf32>
    %190 = arith.addf %186, %189 : vector<34x1xf32>
    %191 = math.rsqrt %190 : vector<34x1xf32>
    %192 = vector.broadcast %191 : vector<34x1xf32> to vector<34x32xf32>
    %193 = arith.mulf %188, %192 : vector<34x32xf32>
    %194 = vector.broadcast %173 : vector<1x32xf32> to vector<34x32xf32>
    %195 = arith.mulf %193, %194 : vector<34x32xf32>
    %196 = vector.broadcast %175 : vector<1x32xf32> to vector<34x32xf32>
    %197 = arith.addf %195, %196 : vector<34x32xf32>
    %c1_88 = arith.constant 1 : index
    %c0_89 = arith.constant 0 : index
    %c0_90 = arith.constant 0 : index
    %198 = vector.load %arg5[%c1_88, %c0_89, %c0_90] : memref<2x32x96xf32, #tpu.memory_space<vmem>>, vector<1x32x96xf32>
    %199 = vector.shape_cast %198 : vector<1x32x96xf32> to vector<32x96xf32>
    %cst_91 = arith.constant dense<0.000000e+00> : vector<34x96xf32>
    %200 = tpu.matmul %197, %199, %cst_91 {dimension_numbers = #tpu.dot_dimension_numbers<[1], [0], [0], [1], [0, 0, 1, 1], [], []>} : vector<34x32xf32>, vector<32x96xf32>, vector<34x96xf32> -> vector<34x96xf32>
    %c1_92 = arith.constant 1 : index
    %c0_93 = arith.constant 0 : index
    %c0_94 = arith.constant 0 : index
    %201 = vector.load %arg6[%c1_92, %c0_93, %c0_94] : memref<2x1x96xf32, #tpu.memory_space<vmem>>, vector<1x1x96xf32>
    %202 = vector.shape_cast %201 : vector<1x1x96xf32> to vector<1x96xf32>
    %203 = vector.broadcast %202 : vector<1x96xf32> to vector<34x96xf32>
    %204 = arith.addf %200, %203 : vector<34x96xf32>
    %205 = vector.extract_strided_slice %204 {offsets = [0, 0], sizes = [17, 16], strides = [1, 1]} : vector<34x96xf32> to vector<17x16xf32>
    %206 = vector.extract_strided_slice %204 {offsets = [0, 32], sizes = [17, 16], strides = [1, 1]} : vector<34x96xf32> to vector<17x16xf32>
    %207 = vector.extract_strided_slice %204 {offsets = [0, 64], sizes = [17, 16], strides = [1, 1]} : vector<34x96xf32> to vector<17x16xf32>
    %cst_95 = arith.constant dense<0.000000e+00> : vector<17x17xf32>
    %208 = tpu.matmul %205, %206, %cst_95 {dimension_numbers = #tpu.dot_dimension_numbers<[1], [1], [0], [0], [0, 0, 1, 0], [], []>} : vector<17x16xf32>, vector<17x16xf32>, vector<17x17xf32> -> vector<17x17xf32>
    %cst_96 = arith.constant 2.500000e-01 : f32
    %209 = vector.broadcast %cst_96 : f32 to vector<17x17xf32>
    %210 = arith.mulf %208, %209 : vector<17x17xf32>
    %cst_97 = arith.constant dense<0xFF800000> : vector<17xf32>
    %211 = vector.multi_reduction <maximumf>, %210, %cst_97 [1] : vector<17x17xf32> to vector<17xf32>
    %212 = vector.shape_cast %211 : vector<17xf32> to vector<17x1xf32>
    %213 = vector.broadcast %212 : vector<17x1xf32> to vector<17x17xf32>
    %214 = arith.subf %210, %213 : vector<17x17xf32>
    %215 = math.exp %214 : vector<17x17xf32>
    %cst_98 = arith.constant dense<0.000000e+00> : vector<17xf32>
    %216 = vector.multi_reduction <add>, %215, %cst_98 [1] : vector<17x17xf32> to vector<17xf32>
    %217 = vector.shape_cast %216 : vector<17xf32> to vector<17x1xf32>
    %218 = tpu.reciprocal %217 : vector<17x1xf32> -> vector<17x1xf32>
    %219 = vector.broadcast %218 : vector<17x1xf32> to vector<17x17xf32>
    %220 = arith.mulf %215, %219 : vector<17x17xf32>
    %cst_99 = arith.constant dense<0.000000e+00> : vector<17x16xf32>
    %221 = tpu.matmul %220, %207, %cst_99 {dimension_numbers = #tpu.dot_dimension_numbers<[1], [0], [0], [1], [0, 0, 1, 1], [], []>} : vector<17x17xf32>, vector<17x16xf32>, vector<17x16xf32> -> vector<17x16xf32>
    %222 = vector.extract_strided_slice %204 {offsets = [0, 16], sizes = [17, 16], strides = [1, 1]} : vector<34x96xf32> to vector<17x16xf32>
    %223 = vector.extract_strided_slice %204 {offsets = [0, 48], sizes = [17, 16], strides = [1, 1]} : vector<34x96xf32> to vector<17x16xf32>
    %224 = vector.extract_strided_slice %204 {offsets = [0, 80], sizes = [17, 16], strides = [1, 1]} : vector<34x96xf32> to vector<17x16xf32>
    %cst_100 = arith.constant dense<0.000000e+00> : vector<17x17xf32>
    %225 = tpu.matmul %222, %223, %cst_100 {dimension_numbers = #tpu.dot_dimension_numbers<[1], [1], [0], [0], [0, 0, 1, 0], [], []>} : vector<17x16xf32>, vector<17x16xf32>, vector<17x17xf32> -> vector<17x17xf32>
    %cst_101 = arith.constant 2.500000e-01 : f32
    %226 = vector.broadcast %cst_101 : f32 to vector<17x17xf32>
    %227 = arith.mulf %225, %226 : vector<17x17xf32>
    %cst_102 = arith.constant dense<0xFF800000> : vector<17xf32>
    %228 = vector.multi_reduction <maximumf>, %227, %cst_102 [1] : vector<17x17xf32> to vector<17xf32>
    %229 = vector.shape_cast %228 : vector<17xf32> to vector<17x1xf32>
    %230 = vector.broadcast %229 : vector<17x1xf32> to vector<17x17xf32>
    %231 = arith.subf %227, %230 : vector<17x17xf32>
    %232 = math.exp %231 : vector<17x17xf32>
    %cst_103 = arith.constant dense<0.000000e+00> : vector<17xf32>
    %233 = vector.multi_reduction <add>, %232, %cst_103 [1] : vector<17x17xf32> to vector<17xf32>
    %234 = vector.shape_cast %233 : vector<17xf32> to vector<17x1xf32>
    %235 = tpu.reciprocal %234 : vector<17x1xf32> -> vector<17x1xf32>
    %236 = vector.broadcast %235 : vector<17x1xf32> to vector<17x17xf32>
    %237 = arith.mulf %232, %236 : vector<17x17xf32>
    %cst_104 = arith.constant dense<0.000000e+00> : vector<17x16xf32>
    %238 = tpu.matmul %237, %224, %cst_104 {dimension_numbers = #tpu.dot_dimension_numbers<[1], [0], [0], [1], [0, 0, 1, 1], [], []>} : vector<17x17xf32>, vector<17x16xf32>, vector<17x16xf32> -> vector<17x16xf32>
    %239 = tpu.concatenate %221, %238 in 1 : vector<17x16xf32>, vector<17x16xf32> -> vector<17x32xf32>
    %240 = vector.extract_strided_slice %204 {offsets = [17, 0], sizes = [17, 16], strides = [1, 1]} : vector<34x96xf32> to vector<17x16xf32>
    %241 = vector.extract_strided_slice %204 {offsets = [17, 32], sizes = [17, 16], strides = [1, 1]} : vector<34x96xf32> to vector<17x16xf32>
    %242 = vector.extract_strided_slice %204 {offsets = [17, 64], sizes = [17, 16], strides = [1, 1]} : vector<34x96xf32> to vector<17x16xf32>
    %cst_105 = arith.constant dense<0.000000e+00> : vector<17x17xf32>
    %243 = tpu.matmul %240, %241, %cst_105 {dimension_numbers = #tpu.dot_dimension_numbers<[1], [1], [0], [0], [0, 0, 1, 0], [], []>} : vector<17x16xf32>, vector<17x16xf32>, vector<17x17xf32> -> vector<17x17xf32>
    %cst_106 = arith.constant 2.500000e-01 : f32
    %244 = vector.broadcast %cst_106 : f32 to vector<17x17xf32>
    %245 = arith.mulf %243, %244 : vector<17x17xf32>
    %cst_107 = arith.constant dense<0xFF800000> : vector<17xf32>
    %246 = vector.multi_reduction <maximumf>, %245, %cst_107 [1] : vector<17x17xf32> to vector<17xf32>
    %247 = vector.shape_cast %246 : vector<17xf32> to vector<17x1xf32>
    %248 = vector.broadcast %247 : vector<17x1xf32> to vector<17x17xf32>
    %249 = arith.subf %245, %248 : vector<17x17xf32>
    %250 = math.exp %249 : vector<17x17xf32>
    %cst_108 = arith.constant dense<0.000000e+00> : vector<17xf32>
    %251 = vector.multi_reduction <add>, %250, %cst_108 [1] : vector<17x17xf32> to vector<17xf32>
    %252 = vector.shape_cast %251 : vector<17xf32> to vector<17x1xf32>
    %253 = tpu.reciprocal %252 : vector<17x1xf32> -> vector<17x1xf32>
    %254 = vector.broadcast %253 : vector<17x1xf32> to vector<17x17xf32>
    %255 = arith.mulf %250, %254 : vector<17x17xf32>
    %cst_109 = arith.constant dense<0.000000e+00> : vector<17x16xf32>
    %256 = tpu.matmul %255, %242, %cst_109 {dimension_numbers = #tpu.dot_dimension_numbers<[1], [0], [0], [1], [0, 0, 1, 1], [], []>} : vector<17x17xf32>, vector<17x16xf32>, vector<17x16xf32> -> vector<17x16xf32>
    %257 = vector.extract_strided_slice %204 {offsets = [17, 16], sizes = [17, 16], strides = [1, 1]} : vector<34x96xf32> to vector<17x16xf32>
    %258 = vector.extract_strided_slice %204 {offsets = [17, 48], sizes = [17, 16], strides = [1, 1]} : vector<34x96xf32> to vector<17x16xf32>
    %259 = vector.extract_strided_slice %204 {offsets = [17, 80], sizes = [17, 16], strides = [1, 1]} : vector<34x96xf32> to vector<17x16xf32>
    %cst_110 = arith.constant dense<0.000000e+00> : vector<17x17xf32>
    %260 = tpu.matmul %257, %258, %cst_110 {dimension_numbers = #tpu.dot_dimension_numbers<[1], [1], [0], [0], [0, 0, 1, 0], [], []>} : vector<17x16xf32>, vector<17x16xf32>, vector<17x17xf32> -> vector<17x17xf32>
    %cst_111 = arith.constant 2.500000e-01 : f32
    %261 = vector.broadcast %cst_111 : f32 to vector<17x17xf32>
    %262 = arith.mulf %260, %261 : vector<17x17xf32>
    %cst_112 = arith.constant dense<0xFF800000> : vector<17xf32>
    %263 = vector.multi_reduction <maximumf>, %262, %cst_112 [1] : vector<17x17xf32> to vector<17xf32>
    %264 = vector.shape_cast %263 : vector<17xf32> to vector<17x1xf32>
    %265 = vector.broadcast %264 : vector<17x1xf32> to vector<17x17xf32>
    %266 = arith.subf %262, %265 : vector<17x17xf32>
    %267 = math.exp %266 : vector<17x17xf32>
    %cst_113 = arith.constant dense<0.000000e+00> : vector<17xf32>
    %268 = vector.multi_reduction <add>, %267, %cst_113 [1] : vector<17x17xf32> to vector<17xf32>
    %269 = vector.shape_cast %268 : vector<17xf32> to vector<17x1xf32>
    %270 = tpu.reciprocal %269 : vector<17x1xf32> -> vector<17x1xf32>
    %271 = vector.broadcast %270 : vector<17x1xf32> to vector<17x17xf32>
    %272 = arith.mulf %267, %271 : vector<17x17xf32>
    %cst_114 = arith.constant dense<0.000000e+00> : vector<17x16xf32>
    %273 = tpu.matmul %272, %259, %cst_114 {dimension_numbers = #tpu.dot_dimension_numbers<[1], [0], [0], [1], [0, 0, 1, 1], [], []>} : vector<17x17xf32>, vector<17x16xf32>, vector<17x16xf32> -> vector<17x16xf32>
    %274 = tpu.concatenate %256, %273 in 1 : vector<17x16xf32>, vector<17x16xf32> -> vector<17x32xf32>
    %275 = tpu.concatenate %239, %274 in 0 : vector<17x32xf32>, vector<17x32xf32> -> vector<34x32xf32>
    %c1_115 = arith.constant 1 : index
    %c0_116 = arith.constant 0 : index
    %c0_117 = arith.constant 0 : index
    %276 = vector.load %arg7[%c1_115, %c0_116, %c0_117] : memref<2x32x32xf32, #tpu.memory_space<vmem>>, vector<1x32x32xf32>
    %277 = vector.shape_cast %276 : vector<1x32x32xf32> to vector<32x32xf32>
    %cst_118 = arith.constant dense<0.000000e+00> : vector<34x32xf32>
    %278 = tpu.matmul %275, %277, %cst_118 {dimension_numbers = #tpu.dot_dimension_numbers<[1], [0], [0], [1], [0, 0, 1, 1], [], []>} : vector<34x32xf32>, vector<32x32xf32>, vector<34x32xf32> -> vector<34x32xf32>
    %279 = arith.addf %171, %278 : vector<34x32xf32>
    %c1_119 = arith.constant 1 : index
    %c0_120 = arith.constant 0 : index
    %c0_121 = arith.constant 0 : index
    %280 = vector.load %arg8[%c1_119, %c0_120, %c0_121] : memref<2x1x32xf32, #tpu.memory_space<vmem>>, vector<1x1x32xf32>
    %281 = vector.shape_cast %280 : vector<1x1x32xf32> to vector<1x32xf32>
    %282 = vector.broadcast %281 : vector<1x32xf32> to vector<34x32xf32>
    %283 = arith.addf %279, %282 : vector<34x32xf32>
    %c1_122 = arith.constant 1 : index
    %c0_123 = arith.constant 0 : index
    %c0_124 = arith.constant 0 : index
    %284 = vector.load %arg9[%c1_122, %c0_123, %c0_124] : memref<2x1x32xf32, #tpu.memory_space<vmem>>, vector<1x1x32xf32>
    %285 = vector.shape_cast %284 : vector<1x1x32xf32> to vector<1x32xf32>
    %c1_125 = arith.constant 1 : index
    %c0_126 = arith.constant 0 : index
    %c0_127 = arith.constant 0 : index
    %286 = vector.load %arg10[%c1_125, %c0_126, %c0_127] : memref<2x1x32xf32, #tpu.memory_space<vmem>>, vector<1x1x32xf32>
    %287 = vector.shape_cast %286 : vector<1x1x32xf32> to vector<1x32xf32>
    %cst_128 = arith.constant dense<0.000000e+00> : vector<34xf32>
    %288 = vector.multi_reduction <add>, %283, %cst_128 [1] : vector<34x32xf32> to vector<34xf32>
    %289 = vector.shape_cast %288 : vector<34xf32> to vector<34x1xf32>
    %cst_129 = arith.constant 3.200000e+01 : f32
    %290 = vector.broadcast %cst_129 : f32 to vector<34x1xf32>
    %291 = arith.divf %289, %290 : vector<34x1xf32>
    %292 = vector.broadcast %291 : vector<34x1xf32> to vector<34x32xf32>
    %293 = arith.subf %283, %292 : vector<34x32xf32>
    %294 = arith.mulf %293, %293 : vector<34x32xf32>
    %cst_130 = arith.constant dense<0.000000e+00> : vector<34xf32>
    %295 = vector.multi_reduction <add>, %294, %cst_130 [1] : vector<34x32xf32> to vector<34xf32>
    %296 = vector.shape_cast %295 : vector<34xf32> to vector<34x1xf32>
    %cst_131 = arith.constant 3.200000e+01 : f32
    %297 = vector.broadcast %cst_131 : f32 to vector<34x1xf32>
    %298 = arith.divf %296, %297 : vector<34x1xf32>
    %299 = vector.broadcast %291 : vector<34x1xf32> to vector<34x32xf32>
    %300 = arith.subf %283, %299 : vector<34x32xf32>
    %cst_132 = arith.constant 9.99999974E-6 : f32
    %301 = vector.broadcast %cst_132 : f32 to vector<34x1xf32>
    %302 = arith.addf %298, %301 : vector<34x1xf32>
    %303 = math.rsqrt %302 : vector<34x1xf32>
    %304 = vector.broadcast %303 : vector<34x1xf32> to vector<34x32xf32>
    %305 = arith.mulf %300, %304 : vector<34x32xf32>
    %306 = vector.broadcast %285 : vector<1x32xf32> to vector<34x32xf32>
    %307 = arith.mulf %305, %306 : vector<34x32xf32>
    %308 = vector.broadcast %287 : vector<1x32xf32> to vector<34x32xf32>
    %309 = arith.addf %307, %308 : vector<34x32xf32>
    %c1_133 = arith.constant 1 : index
    %c0_134 = arith.constant 0 : index
    %c0_135 = arith.constant 0 : index
    %310 = vector.load %arg11[%c1_133, %c0_134, %c0_135] : memref<2x32x64xf32, #tpu.memory_space<vmem>>, vector<1x32x64xf32>
    %311 = vector.shape_cast %310 : vector<1x32x64xf32> to vector<32x64xf32>
    %cst_136 = arith.constant dense<0.000000e+00> : vector<34x64xf32>
    %312 = tpu.matmul %309, %311, %cst_136 {dimension_numbers = #tpu.dot_dimension_numbers<[1], [0], [0], [1], [0, 0, 1, 1], [], []>} : vector<34x32xf32>, vector<32x64xf32>, vector<34x64xf32> -> vector<34x64xf32>
    %c1_137 = arith.constant 1 : index
    %c0_138 = arith.constant 0 : index
    %c0_139 = arith.constant 0 : index
    %313 = vector.load %arg12[%c1_137, %c0_138, %c0_139] : memref<2x1x64xf32, #tpu.memory_space<vmem>>, vector<1x1x64xf32>
    %314 = vector.shape_cast %313 : vector<1x1x64xf32> to vector<1x64xf32>
    %315 = vector.broadcast %314 : vector<1x64xf32> to vector<34x64xf32>
    %316 = arith.addf %312, %315 : vector<34x64xf32>
    %cst_140 = arith.constant 5.000000e-01 : f32
    %317 = vector.broadcast %cst_140 : f32 to vector<34x64xf32>
    %318 = arith.mulf %317, %316 : vector<34x64xf32>
    %cst_141 = arith.constant 0.707106769 : f32
    %319 = vector.broadcast %cst_141 : f32 to vector<34x64xf32>
    %320 = arith.mulf %316, %319 : vector<34x64xf32>
    %321 = math.erf %320 : vector<34x64xf32>
    %cst_142 = arith.constant 1.000000e+00 : f32
    %322 = vector.broadcast %cst_142 : f32 to vector<34x64xf32>
    %323 = arith.addf %322, %321 : vector<34x64xf32>
    %324 = arith.mulf %318, %323 : vector<34x64xf32>
    %c1_143 = arith.constant 1 : index
    %c0_144 = arith.constant 0 : index
    %c0_145 = arith.constant 0 : index
    %325 = vector.load %arg13[%c1_143, %c0_144, %c0_145] : memref<2x64x32xf32, #tpu.memory_space<vmem>>, vector<1x64x32xf32>
    %326 = vector.shape_cast %325 : vector<1x64x32xf32> to vector<64x32xf32>
    %cst_146 = arith.constant dense<0.000000e+00> : vector<34x32xf32>
    %327 = tpu.matmul %324, %326, %cst_146 {dimension_numbers = #tpu.dot_dimension_numbers<[1], [0], [0], [1], [0, 0, 1, 1], [], []>} : vector<34x64xf32>, vector<64x32xf32>, vector<34x32xf32> -> vector<34x32xf32>
    %328 = arith.addf %283, %327 : vector<34x32xf32>
    %c1_147 = arith.constant 1 : index
    %c0_148 = arith.constant 0 : index
    %c0_149 = arith.constant 0 : index
    %329 = vector.load %arg14[%c1_147, %c0_148, %c0_149] : memref<2x1x32xf32, #tpu.memory_space<vmem>>, vector<1x1x32xf32>
    %330 = vector.shape_cast %329 : vector<1x1x32xf32> to vector<1x32xf32>
    %331 = vector.broadcast %330 : vector<1x32xf32> to vector<34x32xf32>
    %332 = arith.addf %328, %331 : vector<34x32xf32>
    %c0_150 = arith.constant 0 : index
    %c0_151 = arith.constant 0 : index
    %333 = vector.load %arg15[%c0_150, %c0_151] : memref<1x32xf32, #tpu.memory_space<vmem>>, vector<1x32xf32>
    %c0_152 = arith.constant 0 : index
    %c0_153 = arith.constant 0 : index
    %334 = vector.load %arg16[%c0_152, %c0_153] : memref<1x32xf32, #tpu.memory_space<vmem>>, vector<1x32xf32>
    %cst_154 = arith.constant dense<0.000000e+00> : vector<34xf32>
    %335 = vector.multi_reduction <add>, %332, %cst_154 [1] : vector<34x32xf32> to vector<34xf32>
    %336 = vector.shape_cast %335 : vector<34xf32> to vector<34x1xf32>
    %cst_155 = arith.constant 3.200000e+01 : f32
    %337 = vector.broadcast %cst_155 : f32 to vector<34x1xf32>
    %338 = arith.divf %336, %337 : vector<34x1xf32>
    %339 = vector.broadcast %338 : vector<34x1xf32> to vector<34x32xf32>
    %340 = arith.subf %332, %339 : vector<34x32xf32>
    %341 = arith.mulf %340, %340 : vector<34x32xf32>
    %cst_156 = arith.constant dense<0.000000e+00> : vector<34xf32>
    %342 = vector.multi_reduction <add>, %341, %cst_156 [1] : vector<34x32xf32> to vector<34xf32>
    %343 = vector.shape_cast %342 : vector<34xf32> to vector<34x1xf32>
    %cst_157 = arith.constant 3.200000e+01 : f32
    %344 = vector.broadcast %cst_157 : f32 to vector<34x1xf32>
    %345 = arith.divf %343, %344 : vector<34x1xf32>
    %346 = vector.broadcast %338 : vector<34x1xf32> to vector<34x32xf32>
    %347 = arith.subf %332, %346 : vector<34x32xf32>
    %cst_158 = arith.constant 9.99999974E-6 : f32
    %348 = vector.broadcast %cst_158 : f32 to vector<34x1xf32>
    %349 = arith.addf %345, %348 : vector<34x1xf32>
    %350 = math.rsqrt %349 : vector<34x1xf32>
    %351 = vector.broadcast %350 : vector<34x1xf32> to vector<34x32xf32>
    %352 = arith.mulf %347, %351 : vector<34x32xf32>
    %353 = vector.broadcast %333 : vector<1x32xf32> to vector<34x32xf32>
    %354 = arith.mulf %352, %353 : vector<34x32xf32>
    %355 = vector.broadcast %334 : vector<1x32xf32> to vector<34x32xf32>
    %356 = arith.addf %354, %355 : vector<34x32xf32>
    %c0_159 = arith.constant 0 : index
    %c0_160 = arith.constant 0 : index
    %357 = vector.load %arg17[%c0_159, %c0_160] : memref<34x32xf32, #tpu.memory_space<vmem>>, vector<34x32xf32>
    tpu.vector_store %arg17[%c0_159, %c0_160], %356 {strides = array<i32>} : memref<34x32xf32, #tpu.memory_space<vmem>>, vector<34x32xf32>,
    return
  }
}

</mosaic_0001>

<llo_original>
// kernel: tpu_custom_call.1
$region0: #{tpu_custom_call.1}
  #allocation0 [shape = 'u32[]', space=smem, size = 0x4, offset = 0x4, fixed_abs, tag = 'smem constant byte address 0x4 - core index']
  #allocation1 [shape = 'u32[72,128]{1,0:T(1,128)}', space=vmem, size = 0x9000, scoped, tag = 'internal scratch']
  %s0 = inlined_call_operand.hbm [shape: f32[32,48], index: 0, kind: input, shape index: {}]
  %s1 = inlined_call_operand.vmem [shape: f32[48,32], index: 1, kind: input, shape index: {}]
  %s2 = inlined_call_operand.vmem [shape: f32[17,32], index: 2, kind: input, shape index: {}]
  %s3 = inlined_call_operand.vmem [shape: f32[2,1,32], index: 3, kind: input, shape index: {}]
  %s4 = inlined_call_operand.vmem [shape: f32[2,1,32], index: 4, kind: input, shape index: {}]
  %s5 = inlined_call_operand.vmem [shape: f32[2,32,96], index: 5, kind: input, shape index: {}]
  %s6 = inlined_call_operand.hbm [shape: f32[2,1,96], index: 6, kind: input, shape index: {}]
  %s7 = inlined_call_operand.vmem [shape: f32[2,32,32], index: 7, kind: input, shape index: {}]
  %s8 = inlined_call_operand.hbm [shape: f32[2,1,32], index: 8, kind: input, shape index: {}]
  %s9 = inlined_call_operand.hbm [shape: f32[2,1,32], index: 9, kind: input, shape index: {}]
  %s10 = inlined_call_operand.hbm [shape: f32[2,1,32], index: 10, kind: input, shape index: {}]
  %s11 = inlined_call_operand.vmem [shape: f32[2,32,64], index: 11, kind: input, shape index: {}]
  %s12 = inlined_call_operand.hbm [shape: f32[2,1,64], index: 12, kind: input, shape index: {}]
  %s13 = inlined_call_operand.vmem [shape: f32[2,64,32], index: 13, kind: input, shape index: {}]
  %s14 = inlined_call_operand.hbm [shape: f32[2,1,32], index: 14, kind: input, shape index: {}]
  %s15 = inlined_call_operand.vmem [shape: f32[1,32], index: 15, kind: input, shape index: {}]
  %s16 = inlined_call_operand.vmem [shape: f32[1,32], index: 16, kind: input, shape index: {}]
  %s17 = inlined_call_operand.vmem [shape: f32[34,32], index: 17, kind: output, shape index: {}]
  %s18 = sld [smem:[#allocation0]]
  $region106: #{tpu_custom_call.1} parent=0
    _
  %s20 = ssub.s32 1, %s18
  %s21 = scalar_select 0, %s20, %s18
  $region1: #{tpu_custom_call.1} parent=0
    #allocation2 [shape = 'u8[16384]{0}', space=vmem, size = 0x4000, scoped, tag = 'input window, operand 0, single buffered']
    #allocation3 [shape = 's32[1]{0}', space=sflag, size = 0x4, scoped, tag = 'scoped memory for tpu_custom_call.1']
    #allocation4 [shape = 'u8[1024]{0}', space=vmem, size = 0x400, scoped, tag = 'input window, operand 6, single buffered']
    #allocation5 [shape = 's32[1]{0}', space=sflag, size = 0x4, scoped, tag = 'scoped memory for tpu_custom_call.1']
    #allocation6 [shape = 'u8[1024]{0}', space=vmem, size = 0x400, scoped, tag = 'input window, operand 8, single buffered']
    #allocation7 [shape = 'u8[1024]{0}', space=vmem, size = 0x400, scoped, tag = 'input window, operand 9, single buffered']
    #allocation8 [shape = 's32[1]{0}', space=sflag, size = 0x4, scoped, tag = 'scoped memory for tpu_custom_call.1']
    #allocation9 [shape = 'u8[1024]{0}', space=vmem, size = 0x400, scoped, tag = 'input window, operand 10, single buffered']
    #allocation10 [shape = 'u8[1024]{0}', space=vmem, size = 0x400, scoped, tag = 'input window, operand 12, single buffered']
    #allocation11 [shape = 's32[1]{0}', space=sflag, size = 0x4, scoped, tag = 'scoped memory for tpu_custom_call.1']
    #allocation12 [shape = 'u8[1024]{0}', space=vmem, size = 0x400, scoped, tag = 'input window, operand 14, single buffered']
    %22 = vsyncpa [#allocation3], 0
    %23 = vsyncpa [#allocation5], 0
    %24 = vsyncpa [#allocation8], 0
    %25 = vsyncpa [#allocation11], 0
    // Predicated region
    $region2: #{tpu_custom_call.1} parent=1 // pred_check
      _
    $region3: #{tpu_custom_call.1} parent=1 // pred_check_branch
      %27 = sbr.rel (0) target = $region5
    $region4: #{tpu_custom_call.1} parent=1 // pred_region
      %29 = vsyncadd [#allocation3], 0
      %s30 = sshll.u32 %s0, 4
      %s31 = int_to_ptr.hbm [resolvable:$true] %s30
      %s32 = sshll.u32 [#allocation2], 4
      %s33 = int_to_ptr.vmem [resolvable:$true] %s32
      %38 = dma.hbm_to_vmem [thread:$0]  %s31, 512, %s33, [#allocation3], 128, 128, 8
    $region5: #{tpu_custom_call.1} parent=1 // pred_fallthru
      _
    // Predicated region
    $region6: #{tpu_custom_call.1} parent=1 // pred_check
      _
    $region7: #{tpu_custom_call.1} parent=1 // pred_check_branch
      %40 = sbr.rel (0) target = $region9
    $region8: #{tpu_custom_call.1} parent=1 // pred_region
      _
    $region9: #{tpu_custom_call.1} parent=1 // pred_fallthru
      _
    // Predicated region
    $region10: #{tpu_custom_call.1} parent=1 // pred_check
      _
    $region11: #{tpu_custom_call.1} parent=1 // pred_check_branch
      %42 = sbr.rel (0) target = $region13
    $region12: #{tpu_custom_call.1} parent=1 // pred_region
      _
    $region13: #{tpu_custom_call.1} parent=1 // pred_fallthru
      _
    // Predicated region
    $region14: #{tpu_custom_call.1} parent=1 // pred_check
      _
    $region15: #{tpu_custom_call.1} parent=1 // pred_check_branch
      %44 = sbr.rel (0) target = $region17
    $region16: #{tpu_custom_call.1} parent=1 // pred_region
      _
    $region17: #{tpu_custom_call.1} parent=1 // pred_fallthru
      _
    // Predicated region
    $region18: #{tpu_custom_call.1} parent=1 // pred_check
      _
    $region19: #{tpu_custom_call.1} parent=1 // pred_check_branch
      %46 = sbr.rel (0) target = $region21
    $region20: #{tpu_custom_call.1} parent=1 // pred_region
      _
    $region21: #{tpu_custom_call.1} parent=1 // pred_fallthru
      _
    // Predicated region
    $region22: #{tpu_custom_call.1} parent=1 // pred_check
      _
    $region23: #{tpu_custom_call.1} parent=1 // pred_check_branch
      %48 = sbr.rel (0) target = $region25
    $region24: #{tpu_custom_call.1} parent=1 // pred_region
      _
    $region25: #{tpu_custom_call.1} parent=1 // pred_fallthru
      _
    // Predicated region
    $region26: #{tpu_custom_call.1} parent=1 // pred_check
      _
    $region27: #{tpu_custom_call.1} parent=1 // pred_check_branch
      %50 = sbr.rel (0) target = $region29
    $region28: #{tpu_custom_call.1} parent=1 // pred_region
      %52 = vsyncadd [#allocation5], 0
      %s53 = sshll.u32 %s6, 4
      %s54 = int_to_ptr.hbm [resolvable:$true] %s53
      %s55 = sshll.u32 [#allocation4], 4
      %s56 = int_to_ptr.vmem [resolvable:$true] %s55
      %61 = dma.hbm_to_vmem [thread:$0]  %s54, 32, %s56, [#allocation5], 16, 16, 1
    $region29: #{tpu_custom_call.1} parent=1 // pred_fallthru
      _
    // Predicated region
    $region30: #{tpu_custom_call.1} parent=1 // pred_check
      _
    $region31: #{tpu_custom_call.1} parent=1 // pred_check_branch
      %63 = sbr.rel (0) target = $region33
    $region32: #{tpu_custom_call.1} parent=1 // pred_region
      _
    $region33: #{tpu_custom_call.1} parent=1 // pred_fallthru
      _
    // Predicated region
    $region34: #{tpu_custom_call.1} parent=1 // pred_check
      _
    $region35: #{tpu_custom_call.1} parent=1 // pred_check_branch
      %65 = sbr.rel (0) target = $region37
    $region36: #{tpu_custom_call.1} parent=1 // pred_region
      %67 = vsyncadd [#allocation5], 0
      %s68 = sshll.u32 %s8, 4
      %s69 = int_to_ptr.hbm [resolvable:$true] %s68
      %s70 = sshll.u32 [#allocation6], 4
      %s71 = int_to_ptr.vmem [resolvable:$true] %s70
      %76 = dma.hbm_to_vmem [thread:$0]  %s69, 32, %s71, [#allocation5], 16, 16, 1
    $region37: #{tpu_custom_call.1} parent=1 // pred_fallthru
      _
    // Predicated region
    $region38: #{tpu_custom_call.1} parent=1 // pred_check
      _
    $region39: #{tpu_custom_call.1} parent=1 // pred_check_branch
      %78 = sbr.rel (0) target = $region41
    $region40: #{tpu_custom_call.1} parent=1 // pred_region
      %80 = vsyncadd [#allocation8], 0
      %s81 = sshll.u32 %s9, 4
      %s82 = int_to_ptr.hbm [resolvable:$true] %s81
      %s83 = sshll.u32 [#allocation7], 4
      %s84 = int_to_ptr.vmem [resolvable:$true] %s83
      %89 = dma.hbm_to_vmem [thread:$0]  %s82, 32, %s84, [#allocation8], 16, 16, 1
    $region41: #{tpu_custom_call.1} parent=1 // pred_fallthru
      _
    // Predicated region
    $region42: #{tpu_custom_call.1} parent=1 // pred_check
      _
    $region43: #{tpu_custom_call.1} parent=1 // pred_check_branch
      %91 = sbr.rel (0) target = $region45
    $region44: #{tpu_custom_call.1} parent=1 // pred_region
      %93 = vsyncadd [#allocation8], 0
      %s94 = sshll.u32 %s10, 4
      %s95 = int_to_ptr.hbm [resolvable:$true] %s94
      %s96 = sshll.u32 [#allocation9], 4
      %s97 = int_to_ptr.vmem [resolvable:$true] %s96
      %102 = dma.hbm_to_vmem [thread:$0]  %s95, 32, %s97, [#allocation8], 16, 16, 1
    $region45: #{tpu_custom_call.1} parent=1 // pred_fallthru
      _
    // Predicated region
    $region46: #{tpu_custom_call.1} parent=1 // pred_check
      _
    $region47: #{tpu_custom_call.1} parent=1 // pred_check_branch
      %104 = sbr.rel (0) target = $region49
    $region48: #{tpu_custom_call.1} parent=1 // pred_region
      _
    $region49: #{tpu_custom_call.1} parent=1 // pred_fallthru
      _
    // Predicated region
    $region50: #{tpu_custom_call.1} parent=1 // pred_check
      _
    $region51: #{tpu_custom_call.1} parent=1 // pred_check_branch
      %106 = sbr.rel (0) target = $region53
    $region52: #{tpu_custom_call.1} parent=1 // pred_region
      %108 = vsyncadd [#allocation11], 0
      %s109 = sshll.u32 %s12, 4
      %s110 = int_to_ptr.hbm [resolvable:$true] %s109
      %s111 = sshll.u32 [#allocation10], 4
      %s112 = int_to_ptr.vmem [resolvable:$true] %s111
      %117 = dma.hbm_to_vmem [thread:$0]  %s110, 32, %s112, [#allocation11], 16, 16, 1
    $region53: #{tpu_custom_call.1} parent=1 // pred_fallthru
      _
    // Predicated region
    $region54: #{tpu_custom_call.1} parent=1 // pred_check
      _
    $region55: #{tpu_custom_call.1} parent=1 // pred_check_branch
      %119 = sbr.rel (0) target = $region57
    $region56: #{tpu_custom_call.1} parent=1 // pred_region
      _
    $region57: #{tpu_custom_call.1} parent=1 // pred_fallthru
      _
    // Predicated region
    $region58: #{tpu_custom_call.1} parent=1 // pred_check
      _
    $region59: #{tpu_custom_call.1} parent=1 // pred_check_branch
      %121 = sbr.rel (0) target = $region61
    $region60: #{tpu_custom_call.1} parent=1 // pred_region
      %123 = vsyncadd [#allocation11], 0
      %s124 = sshll.u32 %s14, 4
      %s125 = int_to_ptr.hbm [resolvable:$true] %s124
      %s126 = sshll.u32 [#allocation12], 4
      %s127 = int_to_ptr.vmem [resolvable:$true] %s126
      %132 = dma.hbm_to_vmem [thread:$0]  %s125, 32, %s127, [#allocation11], 16, 16, 1
    $region61: #{tpu_custom_call.1} parent=1 // pred_fallthru
      _
    // Predicated region
    $region62: #{tpu_custom_call.1} parent=1 // pred_check
      _
    $region63: #{tpu_custom_call.1} parent=1 // pred_check_branch
      %134 = sbr.rel (0) target = $region65
    $region64: #{tpu_custom_call.1} parent=1 // pred_region
      _
    $region65: #{tpu_custom_call.1} parent=1 // pred_fallthru
      _
    // Predicated region
    $region66: #{tpu_custom_call.1} parent=1 // pred_check
      _
    $region67: #{tpu_custom_call.1} parent=1 // pred_check_branch
      %136 = sbr.rel (0) target = $region69
    $region68: #{tpu_custom_call.1} parent=1 // pred_region
      _
    $region69: #{tpu_custom_call.1} parent=1 // pred_fallthru
      _
    // Predicated region
    $region70: #{tpu_custom_call.1} parent=1 // pred_check
      _
    $region71: #{tpu_custom_call.1} parent=1 // pred_check_branch
      %138 = sbr.rel (0) target = $region73
    $region72: #{tpu_custom_call.1} parent=1 // pred_region
      %140 = dma.done [#allocation3], 512
    $region73: #{tpu_custom_call.1} parent=1 // pred_fallthru
      _
    // Predicated region
    $region74: #{tpu_custom_call.1} parent=1 // pred_check
      _
    $region75: #{tpu_custom_call.1} parent=1 // pred_check_branch
      %142 = sbr.rel (0) target = $region77
    $region76: #{tpu_custom_call.1} parent=1 // pred_region
      %144 = dma.done [#allocation5], 32
    $region77: #{tpu_custom_call.1} parent=1 // pred_fallthru
      _
    // Predicated region
    $region78: #{tpu_custom_call.1} parent=1 // pred_check
      _
    $region79: #{tpu_custom_call.1} parent=1 // pred_check_branch
      %146 = sbr.rel (0) target = $region81
    $region80: #{tpu_custom_call.1} parent=1 // pred_region
      %148 = dma.done [#allocation5], 32
    $region81: #{tpu_custom_call.1} parent=1 // pred_fallthru
      _
    // Predicated region
    $region82: #{tpu_custom_call.1} parent=1 // pred_check
      _
    $region83: #{tpu_custom_call.1} parent=1 // pred_check_branch
      %150 = sbr.rel (0) target = $region85
    $region84: #{tpu_custom_call.1} parent=1 // pred_region
      %152 = dma.done [#allocation8], 32
    $region85: #{tpu_custom_call.1} parent=1 // pred_fallthru
      _
    // Predicated region
    $region86: #{tpu_custom_call.1} parent=1 // pred_check
      _
    $region87: #{tpu_custom_call.1} parent=1 // pred_check_branch
      %154 = sbr.rel (0) target = $region89
    $region88: #{tpu_custom_call.1} parent=1 // pred_region
      %156 = dma.done [#allocation8], 32
    $region89: #{tpu_custom_call.1} parent=1 // pred_fallthru
      _
    // Predicated region
    $region90: #{tpu_custom_call.1} parent=1 // pred_check
      _
    $region91: #{tpu_custom_call.1} parent=1 // pred_check_branch
      %158 = sbr.rel (0) target = $region93
    $region92: #{tpu_custom_call.1} parent=1 // pred_region
      %160 = dma.done [#allocation11], 32
    $region93: #{tpu_custom_call.1} parent=1 // pred_fallthru
      _
    // Predicated region
    $region94: #{tpu_custom_call.1} parent=1 // pred_check
      _
    $region95: #{tpu_custom_call.1} parent=1 // pred_check_branch
      %162 = sbr.rel (0) target = $region97
    $region96: #{tpu_custom_call.1} parent=1 // pred_region
      %164 = dma.done [#allocation11], 32
    $region97: #{tpu_custom_call.1} parent=1 // pred_fallthru
      _
    %v165 = vld [vmem:[%s2] sm:$0xff]
    %v166 = vld [vmem:[%s2 + $0x8] sm:$0xff]
    %v167 = vld [vmem:[%s2 + $0x10] sm:$0x1]
    %v168 = vld [vmem:[#allocation2] sm:$0xff]
    %v169 = vld [vmem:[#allocation2 + $0x8] sm:$0xff]
    %v170 = vld [vmem:[#allocation2 + $0x10] sm:$0xff]
    %v171 = vld [vmem:[#allocation2 + $0x18] sm:$0xff]
    %v172 = vld [vmem:[%s1] sm:$0xff]
    %v173 = vld [vmem:[%s1 + $0x8] sm:$0xff]
    %v174 = vld [vmem:[%s1 + $0x10] sm:$0xff]
    %v175 = vld [vmem:[%s1 + $0x18] sm:$0xff]
    %v176 = vld [vmem:[%s1 + $0x20] sm:$0xff]
    %v177 = vld [vmem:[%s1 + $0x28] sm:$0xff]
    %vm178 = vcmask 392192
    %v180 = vsel %vm178, %v168, 0
    %v183 = vsel %vm178, %v169, 0
    %v186 = vsel %vm178, %v170, 0
    %v189 = vsel %vm178, %v171, 0
    %191 = vmatpush.msra.mxu0 0.0
    %192 = vmatpush.msra.mxu0 0.0
    %193 = vmatpush.msra.mxu0 0.0
    %194 = vmatpush.msra.mxu0 0.0
    %195 = vmatpush.msra.mxu0 0.0
    %196 = vmatpush.msra.mxu0 0.0
    %197 = vmatpush.msra.mxu0 0.0
    %198 = vmatpush.msra.mxu0 0.0
    %199 = vmatpush.msra.mxu0 0.0
    %200 = vmatpush.msra.mxu0 0.0
    %201 = vmatpush.msra.mxu0 %v177
    %202 = vmatpush.msra.mxu0 %v176
    %203 = vmatpush.msra.mxu0 %v175
    %204 = vmatpush.msra.mxu0 %v174
    %205 = vmatpush.msra.mxu0 %v173
    %206 = vmatpush.msra.mxu0 %v172
    %207 = vmatmul.f32.gmra.mxu0 %v180
    %v208 = vpop.f32.mrf.mxu0
    %v209 = vadd.f32 0.0, %v208
    %210 = vmatmul.f32.gmra.mxu0 %v183
    %v211 = vpop.f32.mrf.mxu0
    %v212 = vadd.f32 0.0, %v211
    %213 = vmatmul.f32.gmra.mxu0 %v186
    %v214 = vpop.f32.mrf.mxu0
    %v215 = vadd.f32 0.0, %v214
    %216 = vmatmul.f32.gmra.mxu0 %v189
    %v217 = vpop.f32.mrf.mxu0
    %v218 = vadd.f32 0.0, %v217
    %219 = vdwg.mxu0
    %vm223 = vcmask 1046528
    %v224 = vrot.slane %v165, 1
    %v225 = vrot.slane %v166, 1
    %v226 = vsel %vm223, %v224, %v225
    %v227 = vrot.slane %v167, 1
    %v228 = vsel %vm223, %v225, %v227
    %v231 = vadd.f32 %v209, %v226
    %v232 = vadd.f32 %v212, %v228
    %v233 = vadd.f32 %v215, %v226
    %v234 = vadd.f32 %v218, %v228
    %vm237 = vcmask 1040384
    %v238 = vrot.slane %v231, 7
    %v239 = vrot.slane %v232, 7
    %v240 = vsel %vm237, %v238, %v239
    %v244 = vrot.slane %v165, 7
    %vm248 = vcmask 1041408
    %v249 = vrot.slane %v233, 6
    %v250 = vrot.slane %v234, 6
    %v251 = vsel %vm248, %v249, %v250
    %v255 = vsel %vm237, %v165, %v238
    %v256 = vsel %vm237, %v239, %v244
    %v257 = vsel %vm248, %v256, %v249
    %v258 = vld [vmem:[%s3] sm:$0x1]
    %v259 = vld [vmem:[%s4] sm:$0x1]
    %vm260 = vcmask 261120
    %v261 = vsel %vm260, %v255, 0.0
    %262 = vadd.xlane.f32.xlu0 %v261
    %v263 = vpop.xlane.xlu0 %262
    %v264 = vsel %vm260, %v240, 0.0
    %265 = vadd.xlane.f32.xlu0 %v264
    %v266 = vpop.xlane.xlu0 %265
    %v267 = vsel %vm260, %v257, 0.0
    %268 = vadd.xlane.f32.xlu0 %v267
    %v269 = vpop.xlane.xlu0 %268
    %v270 = vsel %vm260, %v251, 0.0
    %271 = vadd.xlane.f32.xlu0 %v270
    %v272 = vpop.xlane.xlu0 %271
    %vm273 = vcmask 254976
    %v274 = vsel %vm273, %v250, 0.0
    %275 = vadd.xlane.f32.xlu0 %v274
    %v276 = vpop.xlane.xlu0 %275
    %v277 = vrcp.pop 32.0
    %v278 = vmul.f32 32.0, %v277
    %v279 = vsub.f32 1.0, %v278
    %v280 = vmul.f32 %v277, %v279
    %v281 = vadd.f32 %v277, %v280
    %vm282 = vweird.f32 %v277
    %v283 = vsel %vm282, %v277, %v281
    %v284 = vmul.f32 %v263, %v283
    %v285 = vmul.f32 %v266, %v283
    %v286 = vmul.f32 %v269, %v283
    %v287 = vmul.f32 %v272, %v283
    %v288 = vmul.f32 %v276, %v283
    %v289 = vsub.f32 %v255, %v284
    %v290 = vsub.f32 %v240, %v285
    %v291 = vsub.f32 %v257, %v286
    %v292 = vsub.f32 %v251, %v287
    %v293 = vsub.f32 %v250, %v288
    %v294 = vmul.f32 %v289, %v289
    %v295 = vmul.f32 %v290, %v290
    %v296 = vmul.f32 %v291, %v291
    %v297 = vmul.f32 %v292, %v292
    %v298 = vmul.f32 %v293, %v293
    %v299 = vsel %vm260, %v294, 0.0
    %300 = vadd.xlane.f32.xlu0 %v299
    %v301 = vpop.xlane.xlu0 %300
    %v302 = vsel %vm260, %v295, 0.0
    %303 = vadd.xlane.f32.xlu0 %v302
    %v304 = vpop.xlane.xlu0 %303
    %v305 = vsel %vm260, %v296, 0.0
    %306 = vadd.xlane.f32.xlu0 %v305
    %v307 = vpop.xlane.xlu0 %306
    %v308 = vsel %vm260, %v297, 0.0
    %309 = vadd.xlane.f32.xlu0 %v308
    %v310 = vpop.xlane.xlu0 %309
    %v311 = vsel %vm273, %v298, 0.0
    %312 = vadd.xlane.f32.xlu0 %v311
    %v313 = vpop.xlane.xlu0 %312
    %v314 = vmul.f32 %v301, %v283
    %v315 = vmul.f32 %v304, %v283
    %v316 = vmul.f32 %v307, %v283
    %v317 = vmul.f32 %v310, %v283
    %v318 = vmul.f32 %v313, %v283
    %v319 = vadd.f32 %v314, 1e-05
    %v320 = vadd.f32 %v315, 1e-05
    %v321 = vadd.f32 %v316, 1e-05
    %v322 = vadd.f32 %v317, 1e-05
    %v323 = vadd.f32 %v318, 1e-05
    %v324 = vrsqrt.pop %v319
    %v325 = vmul.f32 %v324, %v319
    %v326 = vmul.f32 %v325, %v324
    %v327 = vmul.f32 0.5, %v326
    %v328 = vsub.f32 1.5, %v327
    %v329 = vmul.f32 %v324, %v328
    %vm330 = vweird.f32 %v319
    %vm331 = vweird.f32 %v324
    %vm332 = vmor %vm330, %vm331
    %v333 = vsel %vm332, %v324, %v329
    %v334 = vrsqrt.pop %v320
    %v335 = vmul.f32 %v334, %v320
    %v336 = vmul.f32 %v335, %v334
    %v337 = vmul.f32 0.5, %v336
    %v338 = vsub.f32 1.5, %v337
    %v339 = vmul.f32 %v334, %v338
    %vm340 = vweird.f32 %v320
    %vm341 = vweird.f32 %v334
    %vm342 = vmor %vm340, %vm341
    %v343 = vsel %vm342, %v334, %v339
    %v344 = vrsqrt.pop %v321
    %v345 = vmul.f32 %v344, %v321
    %v346 = vmul.f32 %v345, %v344
    %v347 = vmul.f32 0.5, %v346
    %v348 = vsub.f32 1.5, %v347
    %v349 = vmul.f32 %v344, %v348
    %vm350 = vweird.f32 %v321
    %vm351 = vweird.f32 %v344
    %vm352 = vmor %vm350, %vm351
    %v353 = vsel %vm352, %v344, %v349
    %v354 = vrsqrt.pop %v322
    %v355 = vmul.f32 %v354, %v322
    %v356 = vmul.f32 %v355, %v354
    %v357 = vmul.f32 0.5, %v356
    %v358 = vsub.f32 1.5, %v357
    %v359 = vmul.f32 %v354, %v358
    %vm360 = vweird.f32 %v322
    %vm361 = vweird.f32 %v354
    %vm362 = vmor %vm360, %vm361
    %v363 = vsel %vm362, %v354, %v359
    %v364 = vrsqrt.pop %v323
    %v365 = vmul.f32 %v364, %v323
    %v366 = vmul.f32 %v365, %v364
    %v367 = vmul.f32 0.5, %v366
    %v368 = vsub.f32 1.5, %v367
    %v369 = vmul.f32 %v364, %v368
    %vm370 = vweird.f32 %v323
    %vm371 = vweird.f32 %v364
    %vm372 = vmor %vm370, %vm371
    %v373 = vsel %vm372, %v364, %v369
    %v374 = vmul.f32 %v289, %v333
    %v375 = vmul.f32 %v290, %v343
    %v376 = vmul.f32 %v291, %v353
    %v377 = vmul.f32 %v292, %v363
    %v378 = vmul.f32 %v293, %v373
    %v380 = vperm.slane %v258, 0
    %v382 = vmul.f32 %v374, %v380
    %v383 = vmul.f32 %v375, %v380
    %v384 = vmul.f32 %v376, %v380
    %v385 = vmul.f32 %v377, %v380
    %v386 = vmul.f32 %v378, %v380
    %v388 = vperm.slane %v259, 0
    %v390 = vadd.f32 %v382, %v388
    %v391 = vadd.f32 %v383, %v388
    %v392 = vadd.f32 %v384, %v388
    %v393 = vadd.f32 %v385, %v388
    %v394 = vadd.f32 %v386, %v388
    %v395 = vld [vmem:[%s5] sm:$0xff]
    %v396 = vld [vmem:[%s5 + $0x8] sm:$0xff]
    %v397 = vld [vmem:[%s5 + $0x10] sm:$0xff]
    %v398 = vld [vmem:[%s5 + $0x18] sm:$0xff]
    %v399 = vld [vmem:[#allocation4] sm:$0x1]
    %v401 = vperm.slane %v399, 0
    %v404 = vsel %vm260, %v390, 0
    %v407 = vsel %vm260, %v391, 0
    %v410 = vsel %vm260, %v392, 0
    %v413 = vsel %vm260, %v393, 0
    %v416 = vsel %vm260, %v394, 0
    %418 = vmatpush.msra.mxu0 0.0
    %419 = vmatpush.msra.mxu0 0.0
    %420 = vmatpush.msra.mxu0 0.0
    %421 = vmatpush.msra.mxu0 0.0
    %422 = vmatpush.msra.mxu0 0.0
    %423 = vmatpush.msra.mxu0 0.0
    %424 = vmatpush.msra.mxu0 0.0
    %425 = vmatpush.msra.mxu0 0.0
    %426 = vmatpush.msra.mxu0 0.0
    %427 = vmatpush.msra.mxu0 0.0
    %428 = vmatpush.msra.mxu0 0.0
    %429 = vmatpush.msra.mxu0 0.0
    %430 = vmatpush.msra.mxu0 %v398
    %431 = vmatpush.msra.mxu0 %v397
    %432 = vmatpush.msra.mxu0 %v396
    %433 = vmatpush.msra.mxu0 %v395
    %434 = vmatmul.f32.gmra.mxu0 %v404
    %v435 = vpop.f32.mrf.mxu0
    %v436 = vadd.f32 %v401, %v435
    %437 = vmatmul.f32.gmra.mxu0 %v407
    %v438 = vpop.f32.mrf.mxu0
    %v439 = vadd.f32 %v401, %v438
    %440 = vmatmul.f32.gmra.mxu0 %v410
    %v441 = vpop.f32.mrf.mxu0
    %v442 = vadd.f32 %v401, %v441
    %443 = vmatmul.f32.gmra.mxu0 %v413
    %v444 = vpop.f32.mrf.mxu0
    %v445 = vadd.f32 %v401, %v444
    %446 = vmatmul.f32.gmra.mxu0 %v416
    %v447 = vpop.f32.mrf.mxu0
    %v448 = vadd.f32 %v401, %v447
    %449 = vdwg.mxu0
    %453 = vrot.lane.b32.xlu0 %v436, 96
    %v454 = vpop.permute.xlu0 %453
    %455 = vrot.lane.b32.xlu0 %v439, 96
    %v456 = vpop.permute.xlu0 %455
    %457 = vrot.lane.b32.xlu0 %v442, 96
    %v458 = vpop.permute.xlu0 %457
    %vm459 = vcmask 130048
    %v460 = vsel %vm459, %v436, 0
    %v462 = vsel %vm459, %v439, 0
    %v464 = vsel %vm459, %v442, 0
    %v466 = vsel %vm459, %v454, 0
    %v468 = vsel %vm459, %v456, 0
    %v470 = vsel %vm459, %v458, 0
    %472 = vmatpush.xpose.msra.mxu0 0.0
    %473 = vmatpush.xpose.msra.mxu0 0.0
    %474 = vmatpush.xpose.msra.mxu0 0.0
    %475 = vmatpush.xpose.msra.mxu0 0.0
    %476 = vmatpush.xpose.msra.mxu0 0.0
    %477 = vmatpush.xpose.msra.mxu0 0.0
    %478 = vmatpush.xpose.msra.mxu0 0.0
    %479 = vmatpush.xpose.msra.mxu0 0.0
    %480 = vmatpush.xpose.msra.mxu0 0.0
    %481 = vmatpush.xpose.msra.mxu0 0.0
    %482 = vmatpush.xpose.msra.mxu0 0.0
    %483 = vmatpush.xpose.msra.mxu0 0.0
    %484 = vmatpush.xpose.msra.mxu0 0.0
    %485 = vmatpush.xpose.msra.mxu0 %v470
    %486 = vmatpush.xpose.msra.mxu0 %v468
    %487 = vmatpush.xpose.msra.mxu0 %v466
    %488 = vmatmul.f32.gmra.mxu0 %v460
    %v489 = vpop.f32.mrf.mxu0
    %v490 = vadd.f32 0.0, %v489
    %491 = vmatmul.f32.gmra.mxu0 %v462
    %v492 = vpop.f32.mrf.mxu0
    %v493 = vadd.f32 0.0, %v492
    %494 = vmatmul.f32.gmra.mxu0 %v464
    %v495 = vpop.f32.mrf.mxu0
    %v496 = vadd.f32 0.0, %v495
    %497 = vdwg.mxu0
    %v498 = vmul.f32 %v490, 0.25
    %v499 = vmul.f32 %v493, 0.25
    %v500 = vmul.f32 %v496, 0.25
    %vm501 = vcmask 138240
    %v502 = vsel %vm501, %v498, -inf
    %503 = vmax.xlane.f32.xlu0 %v502
    %v504 = vpop.xlane.xlu0 %503
    %v505 = vsel %vm501, %v499, -inf
    %506 = vmax.xlane.f32.xlu0 %v505
    %v507 = vpop.xlane.xlu0 %506
    %vm508 = vcmask 131072
    %v509 = vsel %vm508, %v500, -inf
    %510 = vmax.xlane.f32.xlu0 %v509
    %v511 = vpop.xlane.xlu0 %510
    %v512 = vsub.f32 %v498, %v504
    %v513 = vsub.f32 %v499, %v507
    %v514 = vsub.f32 %v500, %v511
    %v515 = vmul.f32 %v512, 1.442695
    %v516 = vpow.pop %v515
    %v517 = vmul.f32 %v513, 1.442695
    %v518 = vpow.pop %v517
    %v519 = vmul.f32 %v514, 1.442695
    %v520 = vpow.pop %v519
    %v521 = vsel %vm501, %v516, 0.0
    %522 = vadd.xlane.f32.xlu0 %v521
    %v523 = vpop.xlane.xlu0 %522
    %v524 = vsel %vm501, %v518, 0.0
    %525 = vadd.xlane.f32.xlu0 %v524
    %v526 = vpop.xlane.xlu0 %525
    %v527 = vsel %vm508, %v520, 0.0
    %528 = vadd.xlane.f32.xlu0 %v527
    %v529 = vpop.xlane.xlu0 %528
    %v530 = vrcp.pop %v523
    %v531 = vmul.f32 %v523, %v530
    %v532 = vsub.f32 1.0, %v531
    %v533 = vmul.f32 %v530, %v532
    %v534 = vadd.f32 %v530, %v533
    %vm535 = vweird.f32 %v523
    %vm536 = vweird.f32 %v530
    %vm537 = vmor %vm535, %vm536
    %v538 = vsel %vm537, %v530, %v534
    %v539 = vand.u32 2147483647, %v523
    %vm540 = vcmp.eq.f32.partialorder %v539, 8.507059e+37
    %v541 = vand.u32 %v523, 2147483648
    %v542 = vor.u32 1.1754944e-38, %v541
    %v543 = vsel %vm540, %v542, %v538
    %v544 = vrcp.pop %v526
    %v545 = vmul.f32 %v526, %v544
    %v546 = vsub.f32 1.0, %v545
    %v547 = vmul.f32 %v544, %v546
    %v548 = vadd.f32 %v544, %v547
    %vm549 = vweird.f32 %v526
    %vm550 = vweird.f32 %v544
    %vm551 = vmor %vm549, %vm550
    %v552 = vsel %vm551, %v544, %v548
    %v553 = vand.u32 2147483647, %v526
    %vm554 = vcmp.eq.f32.partialorder %v553, 8.507059e+37
    %v555 = vand.u32 %v526, 2147483648
    %v556 = vor.u32 1.1754944e-38, %v555
    %v557 = vsel %vm554, %v556, %v552
    %v558 = vrcp.pop %v529
    %v559 = vmul.f32 %v529, %v558
    %v560 = vsub.f32 1.0, %v559
    %v561 = vmul.f32 %v558, %v560
    %v562 = vadd.f32 %v558, %v561
    %vm563 = vweird.f32 %v529
    %vm564 = vweird.f32 %v558
    %vm565 = vmor %vm563, %vm564
    %v566 = vsel %vm565, %v558, %v562
    %v567 = vand.u32 2147483647, %v529
    %vm568 = vcmp.eq.f32.partialorder %v567, 8.507059e+37
    %v569 = vand.u32 %v529, 2147483648
    %v570 = vor.u32 1.1754944e-38, %v569
    %v571 = vsel %vm568, %v570, %v566
    %v572 = vmul.f32 %v516, %v543
    %v573 = vmul.f32 %v518, %v557
    %v574 = vmul.f32 %v520, %v571
    %575 = vrot.lane.b32.xlu0 %v436, 64
    %v576 = vpop.permute.xlu0 %575
    %577 = vrot.lane.b32.xlu0 %v439, 64
    %v578 = vpop.permute.xlu0 %577
    %579 = vrot.lane.b32.xlu0 %v442, 64
    %v580 = vpop.permute.xlu0 %579
    %v584 = vsel %vm501, %v572, 0
    %v587 = vsel %vm501, %v573, 0
    %v590 = vsel %vm501, %v574, 0
    %v592 = vsel %vm237, %v580, 0
    %594 = vmatpush.msra.mxu0 0.0
    %595 = vmatpush.msra.mxu0 0.0
    %596 = vmatpush.msra.mxu0 0.0
    %597 = vmatpush.msra.mxu0 0.0
    %598 = vmatpush.msra.mxu0 0.0
    %599 = vmatpush.msra.mxu0 0.0
    %600 = vmatpush.msra.mxu0 0.0
    %601 = vmatpush.msra.mxu0 0.0
    %602 = vmatpush.msra.mxu0 0.0
    %603 = vmatpush.msra.mxu0 0.0
    %604 = vmatpush.msra.mxu0 0.0
    %605 = vmatpush.msra.mxu0 0.0
    %606 = vmatpush.msra.mxu0 0.0
    %607 = vmatpush.msra.mxu0 %v592
    %608 = vmatpush.msra.mxu0 %v578
    %609 = vmatpush.msra.mxu0 %v576
    %610 = vmatmul.f32.gmra.mxu0 %v584
    %v611 = vpop.f32.mrf.mxu0
    %v612 = vadd.f32 0.0, %v611
    %613 = vmatmul.f32.gmra.mxu0 %v587
    %v614 = vpop.f32.mrf.mxu0
    %v615 = vadd.f32 0.0, %v614
    %616 = vmatmul.f32.gmra.mxu0 %v590
    %v617 = vpop.f32.mrf.mxu0
    %v618 = vadd.f32 0.0, %v617
    %619 = vdwg.mxu0
    %620 = vrot.lane.b32.xlu0 %v436, 112
    %v621 = vpop.permute.xlu0 %620
    %622 = vrot.lane.b32.xlu0 %v439, 112
    %v623 = vpop.permute.xlu0 %622
    %624 = vrot.lane.b32.xlu0 %v442, 112
    %v625 = vpop.permute.xlu0 %624
    %626 = vrot.lane.b32.xlu0 %v436, 80
    %v627 = vpop.permute.xlu0 %626
    %628 = vrot.lane.b32.xlu0 %v439, 80
    %v629 = vpop.permute.xlu0 %628
    %630 = vrot.lane.b32.xlu0 %v442, 80
    %v631 = vpop.permute.xlu0 %630
    %v632 = vsel %vm459, %v621, 0
    %v634 = vsel %vm459, %v623, 0
    %v636 = vsel %vm459, %v625, 0
    %v638 = vsel %vm459, %v627, 0
    %v640 = vsel %vm459, %v629, 0
    %v642 = vsel %vm459, %v631, 0
    %644 = vmatpush.xpose.msra.mxu0 0.0
    %645 = vmatpush.xpose.msra.mxu0 0.0
    %646 = vmatpush.xpose.msra.mxu0 0.0
    %647 = vmatpush.xpose.msra.mxu0 0.0
    %648 = vmatpush.xpose.msra.mxu0 0.0
    %649 = vmatpush.xpose.msra.mxu0 0.0
    %650 = vmatpush.xpose.msra.mxu0 0.0
    %651 = vmatpush.xpose.msra.mxu0 0.0
    %652 = vmatpush.xpose.msra.mxu0 0.0
    %653 = vmatpush.xpose.msra.mxu0 0.0
    %654 = vmatpush.xpose.msra.mxu0 0.0
    %655 = vmatpush.xpose.msra.mxu0 0.0
    %656 = vmatpush.xpose.msra.mxu0 0.0
    %657 = vmatpush.xpose.msra.mxu0 %v642
    %658 = vmatpush.xpose.msra.mxu0 %v640
    %659 = vmatpush.xpose.msra.mxu0 %v638
    %660 = vmatmul.f32.gmra.mxu0 %v632
    %v661 = vpop.f32.mrf.mxu0
    %v662 = vadd.f32 0.0, %v661
    %663 = vmatmul.f32.gmra.mxu0 %v634
    %v664 = vpop.f32.mrf.mxu0
    %v665 = vadd.f32 0.0, %v664
    %666 = vmatmul.f32.gmra.mxu0 %v636
    %v667 = vpop.f32.mrf.mxu0
    %v668 = vadd.f32 0.0, %v667
    %669 = vdwg.mxu0
    %v670 = vmul.f32 %v662, 0.25
    %v671 = vmul.f32 %v665, 0.25
    %v672 = vmul.f32 %v668, 0.25
    %v673 = vsel %vm501, %v670, -inf
    %674 = vmax.xlane.f32.xlu0 %v673
    %v675 = vpop.xlane.xlu0 %674
    %v676 = vsel %vm501, %v671, -inf
    %677 = vmax.xlane.f32.xlu0 %v676
    %v678 = vpop.xlane.xlu0 %677
    %v679 = vsel %vm508, %v672, -inf
    %680 = vmax.xlane.f32.xlu0 %v679
    %v681 = vpop.xlane.xlu0 %680
    %v682 = vsub.f32 %v670, %v675
    %v683 = vsub.f32 %v671, %v678
    %v684 = vsub.f32 %v672, %v681
    %v685 = vmul.f32 %v682, 1.442695
    %v686 = vpow.pop %v685
    %v687 = vmul.f32 %v683, 1.442695
    %v688 = vpow.pop %v687
    %v689 = vmul.f32 %v684, 1.442695
    %v690 = vpow.pop %v689
    %v691 = vsel %vm501, %v686, 0.0
    %692 = vadd.xlane.f32.xlu0 %v691
    %v693 = vpop.xlane.xlu0 %692
    %v694 = vsel %vm501, %v688, 0.0
    %695 = vadd.xlane.f32.xlu0 %v694
    %v696 = vpop.xlane.xlu0 %695
    %v697 = vsel %vm508, %v690, 0.0
    %698 = vadd.xlane.f32.xlu0 %v697
    %v699 = vpop.xlane.xlu0 %698
    %v700 = vrcp.pop %v693
    %v701 = vmul.f32 %v693, %v700
    %v702 = vsub.f32 1.0, %v701
    %v703 = vmul.f32 %v700, %v702
    %v704 = vadd.f32 %v700, %v703
    %vm705 = vweird.f32 %v693
    %vm706 = vweird.f32 %v700
    %vm707 = vmor %vm705, %vm706
    %v708 = vsel %vm707, %v700, %v704
    %v709 = vand.u32 2147483647, %v693
    %vm710 = vcmp.eq.f32.partialorder %v709, 8.507059e+37
    %v711 = vand.u32 %v693, 2147483648
    %v712 = vor.u32 1.1754944e-38, %v711
    %v713 = vsel %vm710, %v712, %v708
    %v714 = vrcp.pop %v696
    %v715 = vmul.f32 %v696, %v714
    %v716 = vsub.f32 1.0, %v715
    %v717 = vmul.f32 %v714, %v716
    %v718 = vadd.f32 %v714, %v717
    %vm719 = vweird.f32 %v696
    %vm720 = vweird.f32 %v714
    %vm721 = vmor %vm719, %vm720
    %v722 = vsel %vm721, %v714, %v718
    %v723 = vand.u32 2147483647, %v696
    %vm724 = vcmp.eq.f32.partialorder %v723, 8.507059e+37
    %v725 = vand.u32 %v696, 2147483648
    %v726 = vor.u32 1.1754944e-38, %v725
    %v727 = vsel %vm724, %v726, %v722
    %v728 = vrcp.pop %v699
    %v729 = vmul.f32 %v699, %v728
    %v730 = vsub.f32 1.0, %v729
    %v731 = vmul.f32 %v728, %v730
    %v732 = vadd.f32 %v728, %v731
    %vm733 = vweird.f32 %v699
    %vm734 = vweird.f32 %v728
    %vm735 = vmor %vm733, %vm734
    %v736 = vsel %vm735, %v728, %v732
    %v737 = vand.u32 2147483647, %v699
    %vm738 = vcmp.eq.f32.partialorder %v737, 8.507059e+37
    %v739 = vand.u32 %v699, 2147483648
    %v740 = vor.u32 1.1754944e-38, %v739
    %v741 = vsel %vm738, %v740, %v736
    %v742 = vmul.f32 %v686, %v713
    %v743 = vmul.f32 %v688, %v727
    %v744 = vmul.f32 %v690, %v741
    %745 = vrot.lane.b32.xlu0 %v436, 48
    %v746 = vpop.permute.xlu0 %745
    %747 = vrot.lane.b32.xlu0 %v439, 48
    %v748 = vpop.permute.xlu0 %747
    %749 = vrot.lane.b32.xlu0 %v442, 48
    %v750 = vpop.permute.xlu0 %749
    %v754 = vsel %vm501, %v742, 0
    %v757 = vsel %vm501, %v743, 0
    %v760 = vsel %vm501, %v744, 0
    %v762 = vsel %vm237, %v750, 0
    %764 = vmatpush.msra.mxu0 0.0
    %765 = vmatpush.msra.mxu0 0.0
    %766 = vmatpush.msra.mxu0 0.0
    %767 = vmatpush.msra.mxu0 0.0
    %768 = vmatpush.msra.mxu0 0.0
    %769 = vmatpush.msra.mxu0 0.0
    %770 = vmatpush.msra.mxu0 0.0
    %771 = vmatpush.msra.mxu0 0.0
    %772 = vmatpush.msra.mxu0 0.0
    %773 = vmatpush.msra.mxu0 0.0
    %774 = vmatpush.msra.mxu0 0.0
    %775 = vmatpush.msra.mxu0 0.0
    %776 = vmatpush.msra.mxu0 0.0
    %777 = vmatpush.msra.mxu0 %v762
    %778 = vmatpush.msra.mxu0 %v748
    %779 = vmatpush.msra.mxu0 %v746
    %780 = vmatmul.f32.gmra.mxu0 %v754
    %v781 = vpop.f32.mrf.mxu0
    %v782 = vadd.f32 0.0, %v781
    %783 = vmatmul.f32.gmra.mxu0 %v757
    %v784 = vpop.f32.mrf.mxu0
    %v785 = vadd.f32 0.0, %v784
    %786 = vmatmul.f32.gmra.mxu0 %v760
    %v787 = vpop.f32.mrf.mxu0
    %v788 = vadd.f32 0.0, %v787
    %789 = vdwg.mxu0
    %793 = vrot.lane.b32.xlu0 %v782, 16
    %v794 = vpop.permute.xlu0 %793
    %795 = vrot.lane.b32.xlu0 %v785, 16
    %v796 = vpop.permute.xlu0 %795
    %797 = vrot.lane.b32.xlu0 %v788, 16
    %v798 = vpop.permute.xlu0 %797
    %v802 = vsel %vm459, %v612, %v794
    %v803 = vsel %vm459, %v615, %v796
    %v804 = vsel %vm459, %v618, %v798
    %v807 = vrot.slane %v442, 1
    %v808 = vrot.slane %v445, 1
    %v809 = vsel %vm223, %v807, %v808
    %v810 = vrot.slane %v448, 1
    %v811 = vsel %vm223, %v808, %v810
    %812 = vrot.lane.b32.xlu0 %v809, 96
    %v813 = vpop.permute.xlu0 %812
    %814 = vrot.lane.b32.xlu0 %v811, 96
    %v815 = vpop.permute.xlu0 %814
    %816 = vrot.lane.b32.xlu0 %v810, 96
    %v817 = vpop.permute.xlu0 %816
    %v818 = vsel %vm459, %v809, 0
    %v820 = vsel %vm459, %v811, 0
    %v822 = vsel %vm459, %v810, 0
    %v824 = vsel %vm459, %v813, 0
    %v826 = vsel %vm459, %v815, 0
    %v828 = vsel %vm459, %v817, 0
    %830 = vmatpush.xpose.msra.mxu0 0.0
    %831 = vmatpush.xpose.msra.mxu0 0.0
    %832 = vmatpush.xpose.msra.mxu0 0.0
    %833 = vmatpush.xpose.msra.mxu0 0.0
    %834 = vmatpush.xpose.msra.mxu0 0.0
    %835 = vmatpush.xpose.msra.mxu0 0.0
    %836 = vmatpush.xpose.msra.mxu0 0.0
    %837 = vmatpush.xpose.msra.mxu0 0.0
    %838 = vmatpush.xpose.msra.mxu0 0.0
    %839 = vmatpush.xpose.msra.mxu0 0.0
    %840 = vmatpush.xpose.msra.mxu0 0.0
    %841 = vmatpush.xpose.msra.mxu0 0.0
    %842 = vmatpush.xpose.msra.mxu0 0.0
    %843 = vmatpush.xpose.msra.mxu0 %v828
    %844 = vmatpush.xpose.msra.mxu0 %v826
    %845 = vmatpush.xpose.msra.mxu0 %v824
    %846 = vmatmul.f32.gmra.mxu0 %v818
    %v847 = vpop.f32.mrf.mxu0
    %v848 = vadd.f32 0.0, %v847
    %849 = vmatmul.f32.gmra.mxu0 %v820
    %v850 = vpop.f32.mrf.mxu0
    %v851 = vadd.f32 0.0, %v850
    %852 = vmatmul.f32.gmra.mxu0 %v822
    %v853 = vpop.f32.mrf.mxu0
    %v854 = vadd.f32 0.0, %v853
    %855 = vdwg.mxu0
    %v856 = vmul.f32 %v848, 0.25
    %v857 = vmul.f32 %v851, 0.25
    %v858 = vmul.f32 %v854, 0.25
    %v859 = vsel %vm501, %v856, -inf
    %860 = vmax.xlane.f32.xlu0 %v859
    %v861 = vpop.xlane.xlu0 %860
    %v862 = vsel %vm501, %v857, -inf
    %863 = vmax.xlane.f32.xlu0 %v862
    %v864 = vpop.xlane.xlu0 %863
    %v865 = vsel %vm508, %v858, -inf
    %866 = vmax.xlane.f32.xlu0 %v865
    %v867 = vpop.xlane.xlu0 %866
    %v868 = vsub.f32 %v856, %v861
    %v869 = vsub.f32 %v857, %v864
    %v870 = vsub.f32 %v858, %v867
    %v871 = vmul.f32 %v868, 1.442695
    %v872 = vpow.pop %v871
    %v873 = vmul.f32 %v869, 1.442695
    %v874 = vpow.pop %v873
    %v875 = vmul.f32 %v870, 1.442695
    %v876 = vpow.pop %v875
    %v877 = vsel %vm501, %v872, 0.0
    %878 = vadd.xlane.f32.xlu0 %v877
    %v879 = vpop.xlane.xlu0 %878
    %v880 = vsel %vm501, %v874, 0.0
    %881 = vadd.xlane.f32.xlu0 %v880
    %v882 = vpop.xlane.xlu0 %881
    %v883 = vsel %vm508, %v876, 0.0
    %884 = vadd.xlane.f32.xlu0 %v883
    %v885 = vpop.xlane.xlu0 %884
    %v886 = vrcp.pop %v879
    %v887 = vmul.f32 %v879, %v886
    %v888 = vsub.f32 1.0, %v887
    %v889 = vmul.f32 %v886, %v888
    %v890 = vadd.f32 %v886, %v889
    %vm891 = vweird.f32 %v879
    %vm892 = vweird.f32 %v886
    %vm893 = vmor %vm891, %vm892
    %v894 = vsel %vm893, %v886, %v890
    %v895 = vand.u32 2147483647, %v879
    %vm896 = vcmp.eq.f32.partialorder %v895, 8.507059e+37
    %v897 = vand.u32 %v879, 2147483648
    %v898 = vor.u32 1.1754944e-38, %v897
    %v899 = vsel %vm896, %v898, %v894
    %v900 = vrcp.pop %v882
    %v901 = vmul.f32 %v882, %v900
    %v902 = vsub.f32 1.0, %v901
    %v903 = vmul.f32 %v900, %v902
    %v904 = vadd.f32 %v900, %v903
    %vm905 = vweird.f32 %v882
    %vm906 = vweird.f32 %v900
    %vm907 = vmor %vm905, %vm906
    %v908 = vsel %vm907, %v900, %v904
    %v909 = vand.u32 2147483647, %v882
    %vm910 = vcmp.eq.f32.partialorder %v909, 8.507059e+37
    %v911 = vand.u32 %v882, 2147483648
    %v912 = vor.u32 1.1754944e-38, %v911
    %v913 = vsel %vm910, %v912, %v908
    %v914 = vrcp.pop %v885
    %v915 = vmul.f32 %v885, %v914
    %v916 = vsub.f32 1.0, %v915
    %v917 = vmul.f32 %v914, %v916
    %v918 = vadd.f32 %v914, %v917
    %vm919 = vweird.f32 %v885
    %vm920 = vweird.f32 %v914
    %vm921 = vmor %vm919, %vm920
    %v922 = vsel %vm921, %v914, %v918
    %v923 = vand.u32 2147483647, %v885
    %vm924 = vcmp.eq.f32.partialorder %v923, 8.507059e+37
    %v925 = vand.u32 %v885, 2147483648
    %v926 = vor.u32 1.1754944e-38, %v925
    %v927 = vsel %vm924, %v926, %v922
    %v928 = vmul.f32 %v872, %v899
    %v929 = vmul.f32 %v874, %v913
    %v930 = vmul.f32 %v876, %v927
    %931 = vrot.lane.b32.xlu0 %v809, 64
    %v932 = vpop.permute.xlu0 %931
    %933 = vrot.lane.b32.xlu0 %v811, 64
    %v934 = vpop.permute.xlu0 %933
    %935 = vrot.lane.b32.xlu0 %v810, 64
    %v936 = vpop.permute.xlu0 %935
    %v940 = vsel %vm501, %v928, 0
    %v943 = vsel %vm501, %v929, 0
    %v946 = vsel %vm501, %v930, 0
    %v948 = vsel %vm237, %v936, 0
    %950 = vmatpush.msra.mxu0 0.0
    %951 = vmatpush.msra.mxu0 0.0
    %952 = vmatpush.msra.mxu0 0.0
    %953 = vmatpush.msra.mxu0 0.0
    %954 = vmatpush.msra.mxu0 0.0
    %955 = vmatpush.msra.mxu0 0.0
    %956 = vmatpush.msra.mxu0 0.0
    %957 = vmatpush.msra.mxu0 0.0
    %958 = vmatpush.msra.mxu0 0.0
    %959 = vmatpush.msra.mxu0 0.0
    %960 = vmatpush.msra.mxu0 0.0
    %961 = vmatpush.msra.mxu0 0.0
    %962 = vmatpush.msra.mxu0 0.0
    %963 = vmatpush.msra.mxu0 %v948
    %964 = vmatpush.msra.mxu0 %v934
    %965 = vmatpush.msra.mxu0 %v932
    %966 = vmatmul.f32.gmra.mxu0 %v940
    %v967 = vpop.f32.mrf.mxu0
    %v968 = vadd.f32 0.0, %v967
    %969 = vmatmul.f32.gmra.mxu0 %v943
    %v970 = vpop.f32.mrf.mxu0
    %v971 = vadd.f32 0.0, %v970
    %972 = vmatmul.f32.gmra.mxu0 %v946
    %v973 = vpop.f32.mrf.mxu0
    %v974 = vadd.f32 0.0, %v973
    %975 = vdwg.mxu0
    %976 = vrot.lane.b32.xlu0 %v809, 112
    %v977 = vpop.permute.xlu0 %976
    %978 = vrot.lane.b32.xlu0 %v811, 112
    %v979 = vpop.permute.xlu0 %978
    %980 = vrot.lane.b32.xlu0 %v810, 112
    %v981 = vpop.permute.xlu0 %980
    %982 = vrot.lane.b32.xlu0 %v809, 80
    %v983 = vpop.permute.xlu0 %982
    %984 = vrot.lane.b32.xlu0 %v811, 80
    %v985 = vpop.permute.xlu0 %984
    %986 = vrot.lane.b32.xlu0 %v810, 80
    %v987 = vpop.permute.xlu0 %986
    %v988 = vsel %vm459, %v977, 0
    %v990 = vsel %vm459, %v979, 0
    %v992 = vsel %vm459, %v981, 0
    %v994 = vsel %vm459, %v983, 0
    %v996 = vsel %vm459, %v985, 0
    %v998 = vsel %vm459, %v987, 0
    %1000 = vmatpush.xpose.msra.mxu0 0.0
    %1001 = vmatpush.xpose.msra.mxu0 0.0
    %1002 = vmatpush.xpose.msra.mxu0 0.0
    %1003 = vmatpush.xpose.msra.mxu0 0.0
    %1004 = vmatpush.xpose.msra.mxu0 0.0
    %1005 = vmatpush.xpose.msra.mxu0 0.0
    %1006 = vmatpush.xpose.msra.mxu0 0.0
    %1007 = vmatpush.xpose.msra.mxu0 0.0
    %1008 = vmatpush.xpose.msra.mxu0 0.0
    %1009 = vmatpush.xpose.msra.mxu0 0.0
    %1010 = vmatpush.xpose.msra.mxu0 0.0
    %1011 = vmatpush.xpose.msra.mxu0 0.0
    %1012 = vmatpush.xpose.msra.mxu0 0.0
    %1013 = vmatpush.xpose.msra.mxu0 %v998
    %1014 = vmatpush.xpose.msra.mxu0 %v996
    %1015 = vmatpush.xpose.msra.mxu0 %v994
    %1016 = vmatmul.f32.gmra.mxu0 %v988
    %v1017 = vpop.f32.mrf.mxu0
    %v1018 = vadd.f32 0.0, %v1017
    %1019 = vmatmul.f32.gmra.mxu0 %v990
    %v1020 = vpop.f32.mrf.mxu0
    %v1021 = vadd.f32 0.0, %v1020
    %1022 = vmatmul.f32.gmra.mxu0 %v992
    %v1023 = vpop.f32.mrf.mxu0
    %v1024 = vadd.f32 0.0, %v1023
    %1025 = vdwg.mxu0
    %v1026 = vmul.f32 %v1018, 0.25
    %v1027 = vmul.f32 %v1021, 0.25
    %v1028 = vmul.f32 %v1024, 0.25
    %v1029 = vsel %vm501, %v1026, -inf
    %1030 = vmax.xlane.f32.xlu0 %v1029
    %v1031 = vpop.xlane.xlu0 %1030
    %v1032 = vsel %vm501, %v1027, -inf
    %1033 = vmax.xlane.f32.xlu0 %v1032
    %v1034 = vpop.xlane.xlu0 %1033
    %v1035 = vsel %vm508, %v1028, -inf
    %1036 = vmax.xlane.f32.xlu0 %v1035
    %v1037 = vpop.xlane.xlu0 %1036
    %v1038 = vsub.f32 %v1026, %v1031
    %v1039 = vsub.f32 %v1027, %v1034
    %v1040 = vsub.f32 %v1028, %v1037
    %v1041 = vmul.f32 %v1038, 1.442695
    %v1042 = vpow.pop %v1041
    %v1043 = vmul.f32 %v1039, 1.442695
    %v1044 = vpow.pop %v1043
    %v1045 = vmul.f32 %v1040, 1.442695
    %v1046 = vpow.pop %v1045
    %v1047 = vsel %vm501, %v1042, 0.0
    %1048 = vadd.xlane.f32.xlu0 %v1047
    %v1049 = vpop.xlane.xlu0 %1048
    %v1050 = vsel %vm501, %v1044, 0.0
    %1051 = vadd.xlane.f32.xlu0 %v1050
    %v1052 = vpop.xlane.xlu0 %1051
    %v1053 = vsel %vm508, %v1046, 0.0
    %1054 = vadd.xlane.f32.xlu0 %v1053
    %v1055 = vpop.xlane.xlu0 %1054
    %v1056 = vrcp.pop %v1049
    %v1057 = vmul.f32 %v1049, %v1056
    %v1058 = vsub.f32 1.0, %v1057
    %v1059 = vmul.f32 %v1056, %v1058
    %v1060 = vadd.f32 %v1056, %v1059
    %vm1061 = vweird.f32 %v1049
    %vm1062 = vweird.f32 %v1056
    %vm1063 = vmor %vm1061, %vm1062
    %v1064 = vsel %vm1063, %v1056, %v1060
    %v1065 = vand.u32 2147483647, %v1049
    %vm1066 = vcmp.eq.f32.partialorder %v1065, 8.507059e+37
    %v1067 = vand.u32 %v1049, 2147483648
    %v1068 = vor.u32 1.1754944e-38, %v1067
    %v1069 = vsel %vm1066, %v1068, %v1064
    %v1070 = vrcp.pop %v1052
    %v1071 = vmul.f32 %v1052, %v1070
    %v1072 = vsub.f32 1.0, %v1071
    %v1073 = vmul.f32 %v1070, %v1072
    %v1074 = vadd.f32 %v1070, %v1073
    %vm1075 = vweird.f32 %v1052
    %vm1076 = vweird.f32 %v1070
    %vm1077 = vmor %vm1075, %vm1076
    %v1078 = vsel %vm1077, %v1070, %v1074
    %v1079 = vand.u32 2147483647, %v1052
    %vm1080 = vcmp.eq.f32.partialorder %v1079, 8.507059e+37
    %v1081 = vand.u32 %v1052, 2147483648
    %v1082 = vor.u32 1.1754944e-38, %v1081
    %v1083 = vsel %vm1080, %v1082, %v1078
    %v1084 = vrcp.pop %v1055
    %v1085 = vmul.f32 %v1055, %v1084
    %v1086 = vsub.f32 1.0, %v1085
    %v1087 = vmul.f32 %v1084, %v1086
    %v1088 = vadd.f32 %v1084, %v1087
    %vm1089 = vweird.f32 %v1055
    %vm1090 = vweird.f32 %v1084
    %vm1091 = vmor %vm1089, %vm1090
    %v1092 = vsel %vm1091, %v1084, %v1088
    %v1093 = vand.u32 2147483647, %v1055
    %vm1094 = vcmp.eq.f32.partialorder %v1093, 8.507059e+37
    %v1095 = vand.u32 %v1055, 2147483648
    %v1096 = vor.u32 1.1754944e-38, %v1095
    %v1097 = vsel %vm1094, %v1096, %v1092
    %v1098 = vmul.f32 %v1042, %v1069
    %v1099 = vmul.f32 %v1044, %v1083
    %v1100 = vmul.f32 %v1046, %v1097
    %1101 = vrot.lane.b32.xlu0 %v809, 48
    %v1102 = vpop.permute.xlu0 %1101
    %1103 = vrot.lane.b32.xlu0 %v811, 48
    %v1104 = vpop.permute.xlu0 %1103
    %1105 = vrot.lane.b32.xlu0 %v810, 48
    %v1106 = vpop.permute.xlu0 %1105
    %v1110 = vsel %vm501, %v1098, 0
    %v1113 = vsel %vm501, %v1099, 0
    %v1116 = vsel %vm501, %v1100, 0
    %v1118 = vsel %vm237, %v1106, 0
    %1120 = vmatpush.msra.mxu0 0.0
    %1121 = vmatpush.msra.mxu0 0.0
    %1122 = vmatpush.msra.mxu0 0.0
    %1123 = vmatpush.msra.mxu0 0.0
    %1124 = vmatpush.msra.mxu0 0.0
    %1125 = vmatpush.msra.mxu0 0.0
    %1126 = vmatpush.msra.mxu0 0.0
    %1127 = vmatpush.msra.mxu0 0.0
    %1128 = vmatpush.msra.mxu0 0.0
    %1129 = vmatpush.msra.mxu0 0.0
    %1130 = vmatpush.msra.mxu0 0.0
    %1131 = vmatpush.msra.mxu0 0.0
    %1132 = vmatpush.msra.mxu0 0.0
    %1133 = vmatpush.msra.mxu0 %v1118
    %1134 = vmatpush.msra.mxu0 %v1104
    %1135 = vmatpush.msra.mxu0 %v1102
    %1136 = vmatmul.f32.gmra.mxu0 %v1110
    %v1137 = vpop.f32.mrf.mxu0
    %v1138 = vadd.f32 0.0, %v1137
    %1139 = vmatmul.f32.gmra.mxu0 %v1113
    %v1140 = vpop.f32.mrf.mxu0
    %v1141 = vadd.f32 0.0, %v1140
    %1142 = vmatmul.f32.gmra.mxu0 %v1116
    %v1143 = vpop.f32.mrf.mxu0
    %v1144 = vadd.f32 0.0, %v1143
    %1145 = vdwg.mxu0
    %1149 = vrot.lane.b32.xlu0 %v1138, 16
    %v1150 = vpop.permute.xlu0 %1149
    %1151 = vrot.lane.b32.xlu0 %v1141, 16
    %v1152 = vpop.permute.xlu0 %1151
    %1153 = vrot.lane.b32.xlu0 %v1144, 16
    %v1154 = vpop.permute.xlu0 %1153
    %v1158 = vsel %vm459, %v968, %v1150
    %v1159 = vsel %vm459, %v971, %v1152
    %v1160 = vsel %vm459, %v974, %v1154
    %v1164 = vrot.slane %v1158, 7
    %v1165 = vrot.slane %v1159, 7
    %v1166 = vsel %vm237, %v1164, %v1165
    %v1167 = vrot.slane %v1160, 7
    %v1168 = vsel %vm237, %v1165, %v1167
    %v1170 = vsel %vm237, %v804, %v1164
    %v1171 = vld [vmem:[%s7] sm:$0xff]
    %v1172 = vld [vmem:[%s7 + $0x8] sm:$0xff]
    %v1173 = vld [vmem:[%s7 + $0x10] sm:$0xff]
    %v1174 = vld [vmem:[%s7 + $0x18] sm:$0xff]
    %v1176 = vsel %vm260, %v802, 0
    %v1179 = vsel %vm260, %v803, 0
    %v1182 = vsel %vm260, %v1170, 0
    %v1184 = vsel %vm260, %v1166, 0
    %v1186 = vsel %vm260, %v1168, 0
    %1188 = vmatpush.msra.mxu0 0.0
    %1189 = vmatpush.msra.mxu0 0.0
    %1190 = vmatpush.msra.mxu0 0.0
    %1191 = vmatpush.msra.mxu0 0.0
    %1192 = vmatpush.msra.mxu0 0.0
    %1193 = vmatpush.msra.mxu0 0.0
    %1194 = vmatpush.msra.mxu0 0.0
    %1195 = vmatpush.msra.mxu0 0.0
    %1196 = vmatpush.msra.mxu0 0.0
    %1197 = vmatpush.msra.mxu0 0.0
    %1198 = vmatpush.msra.mxu0 0.0
    %1199 = vmatpush.msra.mxu0 0.0
    %1200 = vmatpush.msra.mxu0 %v1174
    %1201 = vmatpush.msra.mxu0 %v1173
    %1202 = vmatpush.msra.mxu0 %v1172
    %1203 = vmatpush.msra.mxu0 %v1171
    %1204 = vmatmul.f32.gmra.mxu0 %v1176
    %v1205 = vpop.f32.mrf.mxu0
    %v1206 = vadd.f32 0.0, %v1205
    %1207 = vmatmul.f32.gmra.mxu0 %v1179
    %v1208 = vpop.f32.mrf.mxu0
    %v1209 = vadd.f32 0.0, %v1208
    %1210 = vmatmul.f32.gmra.mxu0 %v1182
    %v1211 = vpop.f32.mrf.mxu0
    %v1212 = vadd.f32 0.0, %v1211
    %1213 = vmatmul.f32.gmra.mxu0 %v1184
    %v1214 = vpop.f32.mrf.mxu0
    %v1215 = vadd.f32 0.0, %v1214
    %1216 = vmatmul.f32.gmra.mxu0 %v1186
    %v1217 = vpop.f32.mrf.mxu0
    %v1218 = vadd.f32 0.0, %v1217
    %1219 = vdwg.mxu0
    %v1220 = vadd.f32 %v255, %v1206
    %v1221 = vadd.f32 %v240, %v1209
    %v1222 = vadd.f32 %v257, %v1212
    %v1223 = vadd.f32 %v251, %v1215
    %v1224 = vadd.f32 %v250, %v1218
    %v1225 = vld [vmem:[#allocation6] sm:$0x1]
    %v1227 = vperm.slane %v1225, 0
    %v1229 = vadd.f32 %v1220, %v1227
    %v1230 = vadd.f32 %v1221, %v1227
    %v1231 = vadd.f32 %v1222, %v1227
    %v1232 = vadd.f32 %v1223, %v1227
    %v1233 = vadd.f32 %v1224, %v1227
    %v1234 = vld [vmem:[#allocation7] sm:$0x1]
    %v1235 = vld [vmem:[#allocation9] sm:$0x1]
    %v1236 = vsel %vm260, %v1229, 0.0
    %1237 = vadd.xlane.f32.xlu0 %v1236
    %v1238 = vpop.xlane.xlu0 %1237
    %v1239 = vsel %vm260, %v1230, 0.0
    %1240 = vadd.xlane.f32.xlu0 %v1239
    %v1241 = vpop.xlane.xlu0 %1240
    %v1242 = vsel %vm260, %v1231, 0.0
    %1243 = vadd.xlane.f32.xlu0 %v1242
    %v1244 = vpop.xlane.xlu0 %1243
    %v1245 = vsel %vm260, %v1232, 0.0
    %1246 = vadd.xlane.f32.xlu0 %v1245
    %v1247 = vpop.xlane.xlu0 %1246
    %v1248 = vsel %vm273, %v1233, 0.0
    %1249 = vadd.xlane.f32.xlu0 %v1248
    %v1250 = vpop.xlane.xlu0 %1249
    %v1251 = vmul.f32 %v1238, %v283
    %v1252 = vmul.f32 %v1241, %v283
    %v1253 = vmul.f32 %v1244, %v283
    %v1254 = vmul.f32 %v1247, %v283
    %v1255 = vmul.f32 %v1250, %v283
    %v1256 = vsub.f32 %v1229, %v1251
    %v1257 = vsub.f32 %v1230, %v1252
    %v1258 = vsub.f32 %v1231, %v1253
    %v1259 = vsub.f32 %v1232, %v1254
    %v1260 = vsub.f32 %v1233, %v1255
    %v1261 = vmul.f32 %v1256, %v1256
    %v1262 = vmul.f32 %v1257, %v1257
    %v1263 = vmul.f32 %v1258, %v1258
    %v1264 = vmul.f32 %v1259, %v1259
    %v1265 = vmul.f32 %v1260, %v1260
    %v1266 = vsel %vm260, %v1261, 0.0
    %1267 = vadd.xlane.f32.xlu0 %v1266
    %v1268 = vpop.xlane.xlu0 %1267
    %v1269 = vsel %vm260, %v1262, 0.0
    %1270 = vadd.xlane.f32.xlu0 %v1269
    %v1271 = vpop.xlane.xlu0 %1270
    %v1272 = vsel %vm260, %v1263, 0.0
    %1273 = vadd.xlane.f32.xlu0 %v1272
    %v1274 = vpop.xlane.xlu0 %1273
    %v1275 = vsel %vm260, %v1264, 0.0
    %1276 = vadd.xlane.f32.xlu0 %v1275
    %v1277 = vpop.xlane.xlu0 %1276
    %v1278 = vsel %vm273, %v1265, 0.0
    %1279 = vadd.xlane.f32.xlu0 %v1278
    %v1280 = vpop.xlane.xlu0 %1279
    %v1281 = vmul.f32 %v1268, %v283
    %v1282 = vmul.f32 %v1271, %v283
    %v1283 = vmul.f32 %v1274, %v283
    %v1284 = vmul.f32 %v1277, %v283
    %v1285 = vmul.f32 %v1280, %v283
    %v1286 = vadd.f32 %v1281, 1e-05
    %v1287 = vadd.f32 %v1282, 1e-05
    %v1288 = vadd.f32 %v1283, 1e-05
    %v1289 = vadd.f32 %v1284, 1e-05
    %v1290 = vadd.f32 %v1285, 1e-05
    %v1291 = vrsqrt.pop %v1286
    %v1292 = vmul.f32 %v1291, %v1286
    %v1293 = vmul.f32 %v1292, %v1291
    %v1294 = vmul.f32 0.5, %v1293
    %v1295 = vsub.f32 1.5, %v1294
    %v1296 = vmul.f32 %v1291, %v1295
    %vm1297 = vweird.f32 %v1286
    %vm1298 = vweird.f32 %v1291
    %vm1299 = vmor %vm1297, %vm1298
    %v1300 = vsel %vm1299, %v1291, %v1296
    %v1301 = vrsqrt.pop %v1287
    %v1302 = vmul.f32 %v1301, %v1287
    %v1303 = vmul.f32 %v1302, %v1301
    %v1304 = vmul.f32 0.5, %v1303
    %v1305 = vsub.f32 1.5, %v1304
    %v1306 = vmul.f32 %v1301, %v1305
    %vm1307 = vweird.f32 %v1287
    %vm1308 = vweird.f32 %v1301
    %vm1309 = vmor %vm1307, %vm1308
    %v1310 = vsel %vm1309, %v1301, %v1306
    %v1311 = vrsqrt.pop %v1288
    %v1312 = vmul.f32 %v1311, %v1288
    %v1313 = vmul.f32 %v1312, %v1311
    %v1314 = vmul.f32 0.5, %v1313
    %v1315 = vsub.f32 1.5, %v1314
    %v1316 = vmul.f32 %v1311, %v1315
    %vm1317 = vweird.f32 %v1288
    %vm1318 = vweird.f32 %v1311
    %vm1319 = vmor %vm1317, %vm1318
    %v1320 = vsel %vm1319, %v1311, %v1316
    %v1321 = vrsqrt.pop %v1289
    %v1322 = vmul.f32 %v1321, %v1289
    %v1323 = vmul.f32 %v1322, %v1321
    %v1324 = vmul.f32 0.5, %v1323
    %v1325 = vsub.f32 1.5, %v1324
    %v1326 = vmul.f32 %v1321, %v1325
    %vm1327 = vweird.f32 %v1289
    %vm1328 = vweird.f32 %v1321
    %vm1329 = vmor %vm1327, %vm1328
    %v1330 = vsel %vm1329, %v1321, %v1326
    %v1331 = vrsqrt.pop %v1290
    %v1332 = vmul.f32 %v1331, %v1290
    %v1333 = vmul.f32 %v1332, %v1331
    %v1334 = vmul.f32 0.5, %v1333
    %v1335 = vsub.f32 1.5, %v1334
    %v1336 = vmul.f32 %v1331, %v1335
    %vm1337 = vweird.f32 %v1290
    %vm1338 = vweird.f32 %v1331
    %vm1339 = vmor %vm1337, %vm1338
    %v1340 = vsel %vm1339, %v1331, %v1336
    %v1341 = vmul.f32 %v1256, %v1300
    %v1342 = vmul.f32 %v1257, %v1310
    %v1343 = vmul.f32 %v1258, %v1320
    %v1344 = vmul.f32 %v1259, %v1330
    %v1345 = vmul.f32 %v1260, %v1340
    %v1347 = vperm.slane %v1234, 0
    %v1349 = vmul.f32 %v1341, %v1347
    %v1350 = vmul.f32 %v1342, %v1347
    %v1351 = vmul.f32 %v1343, %v1347
    %v1352 = vmul.f32 %v1344, %v1347
    %v1353 = vmul.f32 %v1345, %v1347
    %v1355 = vperm.slane %v1235, 0
    %v1357 = vadd.f32 %v1349, %v1355
    %v1358 = vadd.f32 %v1350, %v1355
    %v1359 = vadd.f32 %v1351, %v1355
    %v1360 = vadd.f32 %v1352, %v1355
    %v1361 = vadd.f32 %v1353, %v1355
    %v1362 = vld [vmem:[%s11] sm:$0xff]
    %v1363 = vld [vmem:[%s11 + $0x8] sm:$0xff]
    %v1364 = vld [vmem:[%s11 + $0x10] sm:$0xff]
    %v1365 = vld [vmem:[%s11 + $0x18] sm:$0xff]
    %v1366 = vld [vmem:[#allocation10] sm:$0x1]
    %v1368 = vperm.slane %v1366, 0
    %v1371 = vsel %vm260, %v1357, 0
    %v1374 = vsel %vm260, %v1358, 0
    %v1377 = vsel %vm260, %v1359, 0
    %v1380 = vsel %vm260, %v1360, 0
    %v1383 = vsel %vm260, %v1361, 0
    %1385 = vmatpush.msra.mxu0 0.0
    %1386 = vmatpush.msra.mxu0 0.0
    %1387 = vmatpush.msra.mxu0 0.0
    %1388 = vmatpush.msra.mxu0 0.0
    %1389 = vmatpush.msra.mxu0 0.0
    %1390 = vmatpush.msra.mxu0 0.0
    %1391 = vmatpush.msra.mxu0 0.0
    %1392 = vmatpush.msra.mxu0 0.0
    %1393 = vmatpush.msra.mxu0 0.0
    %1394 = vmatpush.msra.mxu0 0.0
    %1395 = vmatpush.msra.mxu0 0.0
    %1396 = vmatpush.msra.mxu0 0.0
    %1397 = vmatpush.msra.mxu0 %v1365
    %1398 = vmatpush.msra.mxu0 %v1364
    %1399 = vmatpush.msra.mxu0 %v1363
    %1400 = vmatpush.msra.mxu0 %v1362
    %1401 = vmatmul.f32.gmra.mxu0 %v1371
    %v1402 = vpop.f32.mrf.mxu0
    %v1403 = vadd.f32 %v1368, %v1402
    %1404 = vmatmul.f32.gmra.mxu0 %v1374
    %v1405 = vpop.f32.mrf.mxu0
    %v1406 = vadd.f32 %v1368, %v1405
    %1407 = vmatmul.f32.gmra.mxu0 %v1377
    %v1408 = vpop.f32.mrf.mxu0
    %v1409 = vadd.f32 %v1368, %v1408
    %1410 = vmatmul.f32.gmra.mxu0 %v1380
    %v1411 = vpop.f32.mrf.mxu0
    %v1412 = vadd.f32 %v1368, %v1411
    %1413 = vmatmul.f32.gmra.mxu0 %v1383
    %v1414 = vpop.f32.mrf.mxu0
    %v1415 = vadd.f32 %v1368, %v1414
    %1416 = vdwg.mxu0
    %v1417 = vmul.f32 %v1403, 0.5
    %v1418 = vmul.f32 %v1406, 0.5
    %v1419 = vmul.f32 %v1409, 0.5
    %v1420 = vmul.f32 %v1412, 0.5
    %v1421 = vmul.f32 %v1415, 0.5
    %v1422 = vmul.f32 %v1403, 0.70710677
    %v1423 = vmul.f32 %v1406, 0.70710677
    %v1424 = vmul.f32 %v1409, 0.70710677
    %v1425 = vmul.f32 %v1412, 0.70710677
    %v1426 = vmul.f32 %v1415, 0.70710677
    %v1427 = vmul.f32 %v1422, %v1422
    %v1428 = vmin.f32 16.0, %v1427
    %v1429 = vmul.f32 %v1428, 2.1237322e-06
    %v1430 = vadd.f32 %v1429, 0.00028619796
    %v1431 = vmul.f32 %v1428, %v1430
    %v1432 = vadd.f32 %v1431, 0.0036580483
    %v1433 = vmul.f32 %v1428, %v1432
    %v1434 = vadd.f32 %v1433, 0.05243302
    %v1435 = vmul.f32 %v1428, %v1434
    %v1436 = vadd.f32 %v1435, 0.18741608
    %v1437 = vmul.f32 %v1428, %v1436
    %v1438 = vadd.f32 %v1437, 1.1283791
    %v1439 = vmul.f32 %v1422, %v1438
    %v1440 = vmul.f32 %v1428, 3.8918573e-05
    %v1441 = vadd.f32 %v1440, 0.001143296
    %v1442 = vmul.f32 %v1428, %v1441
    %v1443 = vadd.f32 %v1442, 0.014752088
    %v1444 = vmul.f32 %v1428, %v1443
    %v1445 = vadd.f32 %v1444, 0.112945676
    %v1446 = vmul.f32 %v1428, %v1445
    %v1447 = vadd.f32 %v1446, 0.4994258
    %v1448 = vmul.f32 %v1428, %v1447
    %v1449 = vadd.f32 %v1448, 1.0
    %v1450 = vrcp.pop %v1449
    %v1451 = vmul.f32 %v1449, %v1450
    %v1452 = vsub.f32 1.0, %v1451
    %v1453 = vmul.f32 %v1450, %v1452
    %v1454 = vadd.f32 %v1450, %v1453
    %vm1455 = vweird.f32 %v1449
    %vm1456 = vweird.f32 %v1450
    %vm1457 = vmor %vm1455, %vm1456
    %v1458 = vsel %vm1457, %v1450, %v1454
    %v1459 = vand.u32 2147483647, %v1449
    %vm1460 = vcmp.eq.f32.partialorder %v1459, 8.507059e+37
    %v1461 = vand.u32 %v1449, 2147483648
    %v1462 = vor.u32 1.1754944e-38, %v1461
    %v1463 = vsel %vm1460, %v1462, %v1458
    %v1464 = vmul.f32 %v1439, %v1463
    %v1465 = vmin.f32 %v1464, 1.0
    %v1466 = vmax.f32 %v1465, -1.0
    %v1467 = vmul.f32 %v1423, %v1423
    %v1468 = vmin.f32 16.0, %v1467
    %v1469 = vmul.f32 %v1468, 2.1237322e-06
    %v1470 = vadd.f32 %v1469, 0.00028619796
    %v1471 = vmul.f32 %v1468, %v1470
    %v1472 = vadd.f32 %v1471, 0.0036580483
    %v1473 = vmul.f32 %v1468, %v1472
    %v1474 = vadd.f32 %v1473, 0.05243302
    %v1475 = vmul.f32 %v1468, %v1474
    %v1476 = vadd.f32 %v1475, 0.18741608
    %v1477 = vmul.f32 %v1468, %v1476
    %v1478 = vadd.f32 %v1477, 1.1283791
    %v1479 = vmul.f32 %v1423, %v1478
    %v1480 = vmul.f32 %v1468, 3.8918573e-05
    %v1481 = vadd.f32 %v1480, 0.001143296
    %v1482 = vmul.f32 %v1468, %v1481
    %v1483 = vadd.f32 %v1482, 0.014752088
    %v1484 = vmul.f32 %v1468, %v1483
    %v1485 = vadd.f32 %v1484, 0.112945676
    %v1486 = vmul.f32 %v1468, %v1485
    %v1487 = vadd.f32 %v1486, 0.4994258
    %v1488 = vmul.f32 %v1468, %v1487
    %v1489 = vadd.f32 %v1488, 1.0
    %v1490 = vrcp.pop %v1489
    %v1491 = vmul.f32 %v1489, %v1490
    %v1492 = vsub.f32 1.0, %v1491
    %v1493 = vmul.f32 %v1490, %v1492
    %v1494 = vadd.f32 %v1490, %v1493
    %vm1495 = vweird.f32 %v1489
    %vm1496 = vweird.f32 %v1490
    %vm1497 = vmor %vm1495, %vm1496
    %v1498 = vsel %vm1497, %v1490, %v1494
    %v1499 = vand.u32 2147483647, %v1489
    %vm1500 = vcmp.eq.f32.partialorder %v1499, 8.507059e+37
    %v1501 = vand.u32 %v1489, 2147483648
    %v1502 = vor.u32 1.1754944e-38, %v1501
    %v1503 = vsel %vm1500, %v1502, %v1498
    %v1504 = vmul.f32 %v1479, %v1503
    %v1505 = vmin.f32 %v1504, 1.0
    %v1506 = vmax.f32 %v1505, -1.0
    %v1507 = vmul.f32 %v1424, %v1424
    %v1508 = vmin.f32 16.0, %v1507
    %v1509 = vmul.f32 %v1508, 2.1237322e-06
    %v1510 = vadd.f32 %v1509, 0.00028619796
    %v1511 = vmul.f32 %v1508, %v1510
    %v1512 = vadd.f32 %v1511, 0.0036580483
    %v1513 = vmul.f32 %v1508, %v1512
    %v1514 = vadd.f32 %v1513, 0.05243302
    %v1515 = vmul.f32 %v1508, %v1514
    %v1516 = vadd.f32 %v1515, 0.18741608
    %v1517 = vmul.f32 %v1508, %v1516
    %v1518 = vadd.f32 %v1517, 1.1283791
    %v1519 = vmul.f32 %v1424, %v1518
    %v1520 = vmul.f32 %v1508, 3.8918573e-05
    %v1521 = vadd.f32 %v1520, 0.001143296
    %v1522 = vmul.f32 %v1508, %v1521
    %v1523 = vadd.f32 %v1522, 0.014752088
    %v1524 = vmul.f32 %v1508, %v1523
    %v1525 = vadd.f32 %v1524, 0.112945676
    %v1526 = vmul.f32 %v1508, %v1525
    %v1527 = vadd.f32 %v1526, 0.4994258
    %v1528 = vmul.f32 %v1508, %v1527
    %v1529 = vadd.f32 %v1528, 1.0
    %v1530 = vrcp.pop %v1529
    %v1531 = vmul.f32 %v1529, %v1530
    %v1532 = vsub.f32 1.0, %v1531
    %v1533 = vmul.f32 %v1530, %v1532
    %v1534 = vadd.f32 %v1530, %v1533
    %vm1535 = vweird.f32 %v1529
    %vm1536 = vweird.f32 %v1530
    %vm1537 = vmor %vm1535, %vm1536
    %v1538 = vsel %vm1537, %v1530, %v1534
    %v1539 = vand.u32 2147483647, %v1529
    %vm1540 = vcmp.eq.f32.partialorder %v1539, 8.507059e+37
    %v1541 = vand.u32 %v1529, 2147483648
    %v1542 = vor.u32 1.1754944e-38, %v1541
    %v1543 = vsel %vm1540, %v1542, %v1538
    %v1544 = vmul.f32 %v1519, %v1543
    %v1545 = vmin.f32 %v1544, 1.0
    %v1546 = vmax.f32 %v1545, -1.0
    %v1547 = vmul.f32 %v1425, %v1425
    %v1548 = vmin.f32 16.0, %v1547
    %v1549 = vmul.f32 %v1548, 2.1237322e-06
    %v1550 = vadd.f32 %v1549, 0.00028619796
    %v1551 = vmul.f32 %v1548, %v1550
    %v1552 = vadd.f32 %v1551, 0.0036580483
    %v1553 = vmul.f32 %v1548, %v1552
    %v1554 = vadd.f32 %v1553, 0.05243302
    %v1555 = vmul.f32 %v1548, %v1554
    %v1556 = vadd.f32 %v1555, 0.18741608
    %v1557 = vmul.f32 %v1548, %v1556
    %v1558 = vadd.f32 %v1557, 1.1283791
    %v1559 = vmul.f32 %v1425, %v1558
    %v1560 = vmul.f32 %v1548, 3.8918573e-05
    %v1561 = vadd.f32 %v1560, 0.001143296
    %v1562 = vmul.f32 %v1548, %v1561
    %v1563 = vadd.f32 %v1562, 0.014752088
    %v1564 = vmul.f32 %v1548, %v1563
    %v1565 = vadd.f32 %v1564, 0.112945676
    %v1566 = vmul.f32 %v1548, %v1565
    %v1567 = vadd.f32 %v1566, 0.4994258
    %v1568 = vmul.f32 %v1548, %v1567
    %v1569 = vadd.f32 %v1568, 1.0
    %v1570 = vrcp.pop %v1569
    %v1571 = vmul.f32 %v1569, %v1570
    %v1572 = vsub.f32 1.0, %v1571
    %v1573 = vmul.f32 %v1570, %v1572
    %v1574 = vadd.f32 %v1570, %v1573
    %vm1575 = vweird.f32 %v1569
    %vm1576 = vweird.f32 %v1570
    %vm1577 = vmor %vm1575, %vm1576
    %v1578 = vsel %vm1577, %v1570, %v1574
    %v1579 = vand.u32 2147483647, %v1569
    %vm1580 = vcmp.eq.f32.partialorder %v1579, 8.507059e+37
    %v1581 = vand.u32 %v1569, 2147483648
    %v1582 = vor.u32 1.1754944e-38, %v1581
    %v1583 = vsel %vm1580, %v1582, %v1578
    %v1584 = vmul.f32 %v1559, %v1583
    %v1585 = vmin.f32 %v1584, 1.0
    %v1586 = vmax.f32 %v1585, -1.0
    %v1587 = vmul.f32 %v1426, %v1426
    %v1588 = vmin.f32 16.0, %v1587
    %v1589 = vmul.f32 %v1588, 2.1237322e-06
    %v1590 = vadd.f32 %v1589, 0.00028619796
    %v1591 = vmul.f32 %v1588, %v1590
    %v1592 = vadd.f32 %v1591, 0.0036580483
    %v1593 = vmul.f32 %v1588, %v1592
    %v1594 = vadd.f32 %v1593, 0.05243302
    %v1595 = vmul.f32 %v1588, %v1594
    %v1596 = vadd.f32 %v1595, 0.18741608
    %v1597 = vmul.f32 %v1588, %v1596
    %v1598 = vadd.f32 %v1597, 1.1283791
    %v1599 = vmul.f32 %v1426, %v1598
    %v1600 = vmul.f32 %v1588, 3.8918573e-05
    %v1601 = vadd.f32 %v1600, 0.001143296
    %v1602 = vmul.f32 %v1588, %v1601
    %v1603 = vadd.f32 %v1602, 0.014752088
    %v1604 = vmul.f32 %v1588, %v1603
    %v1605 = vadd.f32 %v1604, 0.112945676
    %v1606 = vmul.f32 %v1588, %v1605
    %v1607 = vadd.f32 %v1606, 0.4994258
    %v1608 = vmul.f32 %v1588, %v1607
    %v1609 = vadd.f32 %v1608, 1.0
    %v1610 = vrcp.pop %v1609
    %v1611 = vmul.f32 %v1609, %v1610
    %v1612 = vsub.f32 1.0, %v1611
    %v1613 = vmul.f32 %v1610, %v1612
    %v1614 = vadd.f32 %v1610, %v1613
    %vm1615 = vweird.f32 %v1609
    %vm1616 = vweird.f32 %v1610
    %vm1617 = vmor %vm1615, %vm1616
    %v1618 = vsel %vm1617, %v1610, %v1614
    %v1619 = vand.u32 2147483647, %v1609
    %vm1620 = vcmp.eq.f32.partialorder %v1619, 8.507059e+37
    %v1621 = vand.u32 %v1609, 2147483648
    %v1622 = vor.u32 1.1754944e-38, %v1621
    %v1623 = vsel %vm1620, %v1622, %v1618
    %v1624 = vmul.f32 %v1599, %v1623
    %v1625 = vmin.f32 %v1624, 1.0
    %v1626 = vmax.f32 %v1625, -1.0
    %v1627 = vadd.f32 %v1466, 1.0
    %v1628 = vadd.f32 %v1506, 1.0
    %v1629 = vadd.f32 %v1546, 1.0
    %v1630 = vadd.f32 %v1586, 1.0
    %v1631 = vadd.f32 %v1626, 1.0
    %v1632 = vmul.f32 %v1417, %v1627
    %v1633 = vmul.f32 %v1418, %v1628
    %v1634 = vmul.f32 %v1419, %v1629
    %v1635 = vmul.f32 %v1420, %v1630
    %v1636 = vmul.f32 %v1421, %v1631
    %v1637 = vld [vmem:[%s13] sm:$0xff]
    %v1638 = vld [vmem:[%s13 + $0x8] sm:$0xff]
    %v1639 = vld [vmem:[%s13 + $0x10] sm:$0xff]
    %v1640 = vld [vmem:[%s13 + $0x18] sm:$0xff]
    %v1641 = vld [vmem:[%s13 + $0x20] sm:$0xff]
    %v1642 = vld [vmem:[%s13 + $0x28] sm:$0xff]
    %v1643 = vld [vmem:[%s13 + $0x30] sm:$0xff]
    %v1644 = vld [vmem:[%s13 + $0x38] sm:$0xff]
    %vm1645 = vcmask 523264
    %v1647 = vsel %vm1645, %v1632, 0
    %v1650 = vsel %vm1645, %v1633, 0
    %v1653 = vsel %vm1645, %v1634, 0
    %v1656 = vsel %vm1645, %v1635, 0
    %v1659 = vsel %vm1645, %v1636, 0
    %1661 = vmatpush.msra.mxu0 0.0
    %1662 = vmatpush.msra.mxu0 0.0
    %1663 = vmatpush.msra.mxu0 0.0
    %1664 = vmatpush.msra.mxu0 0.0
    %1665 = vmatpush.msra.mxu0 0.0
    %1666 = vmatpush.msra.mxu0 0.0
    %1667 = vmatpush.msra.mxu0 0.0
    %1668 = vmatpush.msra.mxu0 0.0
    %1669 = vmatpush.msra.mxu0 %v1644
    %1670 = vmatpush.msra.mxu0 %v1643
    %1671 = vmatpush.msra.mxu0 %v1642
    %1672 = vmatpush.msra.mxu0 %v1641
    %1673 = vmatpush.msra.mxu0 %v1640
    %1674 = vmatpush.msra.mxu0 %v1639
    %1675 = vmatpush.msra.mxu0 %v1638
    %1676 = vmatpush.msra.mxu0 %v1637
    %1677 = vmatmul.f32.gmra.mxu0 %v1647
    %v1678 = vpop.f32.mrf.mxu0
    %v1679 = vadd.f32 0.0, %v1678
    %1680 = vmatmul.f32.gmra.mxu0 %v1650
    %v1681 = vpop.f32.mrf.mxu0
    %v1682 = vadd.f32 0.0, %v1681
    %1683 = vmatmul.f32.gmra.mxu0 %v1653
    %v1684 = vpop.f32.mrf.mxu0
    %v1685 = vadd.f32 0.0, %v1684
    %1686 = vmatmul.f32.gmra.mxu0 %v1656
    %v1687 = vpop.f32.mrf.mxu0
    %v1688 = vadd.f32 0.0, %v1687
    %1689 = vmatmul.f32.gmra.mxu0 %v1659
    %v1690 = vpop.f32.mrf.mxu0
    %v1691 = vadd.f32 0.0, %v1690
    %1692 = vdwg.mxu0
    %v1693 = vadd.f32 %v1229, %v1679
    %v1694 = vadd.f32 %v1230, %v1682
    %v1695 = vadd.f32 %v1231, %v1685
    %v1696 = vadd.f32 %v1232, %v1688
    %v1697 = vadd.f32 %v1233, %v1691
    %v1698 = vld [vmem:[#allocation12] sm:$0x1]
    %v1700 = vperm.slane %v1698, 0
    %v1702 = vadd.f32 %v1693, %v1700
    %v1703 = vadd.f32 %v1694, %v1700
    %v1704 = vadd.f32 %v1695, %v1700
    %v1705 = vadd.f32 %v1696, %v1700
    %v1706 = vadd.f32 %v1697, %v1700
    %s1707 = scalar_lea.vmem %s3, 1
    %v1708 = vld [vmem:[%s1707] sm:$0x1]
    %s1709 = scalar_lea.vmem %s4, 1
    %v1710 = vld [vmem:[%s1709] sm:$0x1]
    %v1711 = vsel %vm260, %v1702, 0.0
    %1712 = vadd.xlane.f32.xlu0 %v1711
    %v1713 = vpop.xlane.xlu0 %1712
    %v1714 = vsel %vm260, %v1703, 0.0
    %1715 = vadd.xlane.f32.xlu0 %v1714
    %v1716 = vpop.xlane.xlu0 %1715
    %v1717 = vsel %vm260, %v1704, 0.0
    %1718 = vadd.xlane.f32.xlu0 %v1717
    %v1719 = vpop.xlane.xlu0 %1718
    %v1720 = vsel %vm260, %v1705, 0.0
    %1721 = vadd.xlane.f32.xlu0 %v1720
    %v1722 = vpop.xlane.xlu0 %1721
    %v1723 = vsel %vm273, %v1706, 0.0
    %1724 = vadd.xlane.f32.xlu0 %v1723
    %v1725 = vpop.xlane.xlu0 %1724
    %v1726 = vmul.f32 %v1713, %v283
    %v1727 = vmul.f32 %v1716, %v283
    %v1728 = vmul.f32 %v1719, %v283
    %v1729 = vmul.f32 %v1722, %v283
    %v1730 = vmul.f32 %v1725, %v283
    %v1731 = vsub.f32 %v1702, %v1726
    %v1732 = vsub.f32 %v1703, %v1727
    %v1733 = vsub.f32 %v1704, %v1728
    %v1734 = vsub.f32 %v1705, %v1729
    %v1735 = vsub.f32 %v1706, %v1730
    %v1736 = vmul.f32 %v1731, %v1731
    %v1737 = vmul.f32 %v1732, %v1732
    %v1738 = vmul.f32 %v1733, %v1733
    %v1739 = vmul.f32 %v1734, %v1734
    %v1740 = vmul.f32 %v1735, %v1735
    %v1741 = vsel %vm260, %v1736, 0.0
    %1742 = vadd.xlane.f32.xlu0 %v1741
    %v1743 = vpop.xlane.xlu0 %1742
    %v1744 = vsel %vm260, %v1737, 0.0
    %1745 = vadd.xlane.f32.xlu0 %v1744
    %v1746 = vpop.xlane.xlu0 %1745
    %v1747 = vsel %vm260, %v1738, 0.0
    %1748 = vadd.xlane.f32.xlu0 %v1747
    %v1749 = vpop.xlane.xlu0 %1748
    %v1750 = vsel %vm260, %v1739, 0.0
    %1751 = vadd.xlane.f32.xlu0 %v1750
    %v1752 = vpop.xlane.xlu0 %1751
    %v1753 = vsel %vm273, %v1740, 0.0
    %1754 = vadd.xlane.f32.xlu0 %v1753
    %v1755 = vpop.xlane.xlu0 %1754
    %v1756 = vmul.f32 %v1743, %v283
    %v1757 = vmul.f32 %v1746, %v283
    %v1758 = vmul.f32 %v1749, %v283
    %v1759 = vmul.f32 %v1752, %v283
    %v1760 = vmul.f32 %v1755, %v283
    %v1761 = vadd.f32 %v1756, 1e-05
    %v1762 = vadd.f32 %v1757, 1e-05
    %v1763 = vadd.f32 %v1758, 1e-05
    %v1764 = vadd.f32 %v1759, 1e-05
    %v1765 = vadd.f32 %v1760, 1e-05
    %v1766 = vrsqrt.pop %v1761
    %v1767 = vmul.f32 %v1766, %v1761
    %v1768 = vmul.f32 %v1767, %v1766
    %v1769 = vmul.f32 0.5, %v1768
    %v1770 = vsub.f32 1.5, %v1769
    %v1771 = vmul.f32 %v1766, %v1770
    %vm1772 = vweird.f32 %v1761
    %vm1773 = vweird.f32 %v1766
    %vm1774 = vmor %vm1772, %vm1773
    %v1775 = vsel %vm1774, %v1766, %v1771
    %v1776 = vrsqrt.pop %v1762
    %v1777 = vmul.f32 %v1776, %v1762
    %v1778 = vmul.f32 %v1777, %v1776
    %v1779 = vmul.f32 0.5, %v1778
    %v1780 = vsub.f32 1.5, %v1779
    %v1781 = vmul.f32 %v1776, %v1780
    %vm1782 = vweird.f32 %v1762
    %vm1783 = vweird.f32 %v1776
    %vm1784 = vmor %vm1782, %vm1783
    %v1785 = vsel %vm1784, %v1776, %v1781
    %v1786 = vrsqrt.pop %v1763
    %v1787 = vmul.f32 %v1786, %v1763
    %v1788 = vmul.f32 %v1787, %v1786
    %v1789 = vmul.f32 0.5, %v1788
    %v1790 = vsub.f32 1.5, %v1789
    %v1791 = vmul.f32 %v1786, %v1790
    %vm1792 = vweird.f32 %v1763
    %vm1793 = vweird.f32 %v1786
    %vm1794 = vmor %vm1792, %vm1793
    %v1795 = vsel %vm1794, %v1786, %v1791
    %v1796 = vrsqrt.pop %v1764
    %v1797 = vmul.f32 %v1796, %v1764
    %v1798 = vmul.f32 %v1797, %v1796
    %v1799 = vmul.f32 0.5, %v1798
    %v1800 = vsub.f32 1.5, %v1799
    %v1801 = vmul.f32 %v1796, %v1800
    %vm1802 = vweird.f32 %v1764
    %vm1803 = vweird.f32 %v1796
    %vm1804 = vmor %vm1802, %vm1803
    %v1805 = vsel %vm1804, %v1796, %v1801
    %v1806 = vrsqrt.pop %v1765
    %v1807 = vmul.f32 %v1806, %v1765
    %v1808 = vmul.f32 %v1807, %v1806
    %v1809 = vmul.f32 0.5, %v1808
    %v1810 = vsub.f32 1.5, %v1809
    %v1811 = vmul.f32 %v1806, %v1810
    %vm1812 = vweird.f32 %v1765
    %vm1813 = vweird.f32 %v1806
    %vm1814 = vmor %vm1812, %vm1813
    %v1815 = vsel %vm1814, %v1806, %v1811
    %v1816 = vmul.f32 %v1731, %v1775
    %v1817 = vmul.f32 %v1732, %v1785
    %v1818 = vmul.f32 %v1733, %v1795
    %v1819 = vmul.f32 %v1734, %v1805
    %v1820 = vmul.f32 %v1735, %v1815
    %v1822 = vperm.slane %v1708, 0
    %v1824 = vmul.f32 %v1816, %v1822
    %v1825 = vmul.f32 %v1817, %v1822
    %v1826 = vmul.f32 %v1818, %v1822
    %v1827 = vmul.f32 %v1819, %v1822
    %v1828 = vmul.f32 %v1820, %v1822
    %v1830 = vperm.slane %v1710, 0
    %v1832 = vadd.f32 %v1824, %v1830
    %v1833 = vadd.f32 %v1825, %v1830
    %v1834 = vadd.f32 %v1826, %v1830
    %v1835 = vadd.f32 %v1827, %v1830
    %v1836 = vadd.f32 %v1828, %v1830
    %s1837 = scalar_lea.vmem %s5, 32
    %v1838 = vld [vmem:[%s1837] sm:$0xff]
    %v1839 = vld [vmem:[%s1837 + $0x8] sm:$0xff]
    %v1840 = vld [vmem:[%s1837 + $0x10] sm:$0xff]
    %v1841 = vld [vmem:[%s1837 + $0x18] sm:$0xff]
    %s1842 = scalar_lea.vmem [#allocation4], 1
    %v1843 = vld [vmem:[%s1842] sm:$0x1]
    %v1845 = vperm.slane %v1843, 0
    %v1848 = vsel %vm260, %v1832, 0
    %v1851 = vsel %vm260, %v1833, 0
    %v1854 = vsel %vm260, %v1834, 0
    %v1857 = vsel %vm260, %v1835, 0
    %v1860 = vsel %vm260, %v1836, 0
    %1862 = vmatpush.msra.mxu0 0.0
    %1863 = vmatpush.msra.mxu0 0.0
    %1864 = vmatpush.msra.mxu0 0.0
    %1865 = vmatpush.msra.mxu0 0.0
    %1866 = vmatpush.msra.mxu0 0.0
    %1867 = vmatpush.msra.mxu0 0.0
    %1868 = vmatpush.msra.mxu0 0.0
    %1869 = vmatpush.msra.mxu0 0.0
    %1870 = vmatpush.msra.mxu0 0.0
    %1871 = vmatpush.msra.mxu0 0.0
    %1872 = vmatpush.msra.mxu0 0.0
    %1873 = vmatpush.msra.mxu0 0.0
    %1874 = vmatpush.msra.mxu0 %v1841
    %1875 = vmatpush.msra.mxu0 %v1840
    %1876 = vmatpush.msra.mxu0 %v1839
    %1877 = vmatpush.msra.mxu0 %v1838
    %1878 = vmatmul.f32.gmra.mxu0 %v1848
    %v1879 = vpop.f32.mrf.mxu0
    %v1880 = vadd.f32 %v1845, %v1879
    %1881 = vmatmul.f32.gmra.mxu0 %v1851
    %v1882 = vpop.f32.mrf.mxu0
    %v1883 = vadd.f32 %v1845, %v1882
    %1884 = vmatmul.f32.gmra.mxu0 %v1854
    %v1885 = vpop.f32.mrf.mxu0
    %v1886 = vadd.f32 %v1845, %v1885
    %1887 = vmatmul.f32.gmra.mxu0 %v1857
    %v1888 = vpop.f32.mrf.mxu0
    %v1889 = vadd.f32 %v1845, %v1888
    %1890 = vmatmul.f32.gmra.mxu0 %v1860
    %v1891 = vpop.f32.mrf.mxu0
    %v1892 = vadd.f32 %v1845, %v1891
    %1893 = vdwg.mxu0
    %1897 = vrot.lane.b32.xlu0 %v1880, 96
    %v1898 = vpop.permute.xlu0 %1897
    %1899 = vrot.lane.b32.xlu0 %v1883, 96
    %v1900 = vpop.permute.xlu0 %1899
    %1901 = vrot.lane.b32.xlu0 %v1886, 96
    %v1902 = vpop.permute.xlu0 %1901
    %v1903 = vsel %vm459, %v1880, 0
    %v1905 = vsel %vm459, %v1883, 0
    %v1907 = vsel %vm459, %v1886, 0
    %v1909 = vsel %vm459, %v1898, 0
    %v1911 = vsel %vm459, %v1900, 0
    %v1913 = vsel %vm459, %v1902, 0
    %1915 = vmatpush.xpose.msra.mxu0 0.0
    %1916 = vmatpush.xpose.msra.mxu0 0.0
    %1917 = vmatpush.xpose.msra.mxu0 0.0
    %1918 = vmatpush.xpose.msra.mxu0 0.0
    %1919 = vmatpush.xpose.msra.mxu0 0.0
    %1920 = vmatpush.xpose.msra.mxu0 0.0
    %1921 = vmatpush.xpose.msra.mxu0 0.0
    %1922 = vmatpush.xpose.msra.mxu0 0.0
    %1923 = vmatpush.xpose.msra.mxu0 0.0
    %1924 = vmatpush.xpose.msra.mxu0 0.0
    %1925 = vmatpush.xpose.msra.mxu0 0.0
    %1926 = vmatpush.xpose.msra.mxu0 0.0
    %1927 = vmatpush.xpose.msra.mxu0 0.0
    %1928 = vmatpush.xpose.msra.mxu0 %v1913
    %1929 = vmatpush.xpose.msra.mxu0 %v1911
    %1930 = vmatpush.xpose.msra.mxu0 %v1909
    %1931 = vmatmul.f32.gmra.mxu0 %v1903
    %v1932 = vpop.f32.mrf.mxu0
    %v1933 = vadd.f32 0.0, %v1932
    %1934 = vmatmul.f32.gmra.mxu0 %v1905
    %v1935 = vpop.f32.mrf.mxu0
    %v1936 = vadd.f32 0.0, %v1935
    %1937 = vmatmul.f32.gmra.mxu0 %v1907
    %v1938 = vpop.f32.mrf.mxu0
    %v1939 = vadd.f32 0.0, %v1938
    %1940 = vdwg.mxu0
    %v1941 = vmul.f32 %v1933, 0.25
    %v1942 = vmul.f32 %v1936, 0.25
    %v1943 = vmul.f32 %v1939, 0.25
    %v1944 = vsel %vm501, %v1941, -inf
    %1945 = vmax.xlane.f32.xlu0 %v1944
    %v1946 = vpop.xlane.xlu0 %1945
    %v1947 = vsel %vm501, %v1942, -inf
    %1948 = vmax.xlane.f32.xlu0 %v1947
    %v1949 = vpop.xlane.xlu0 %1948
    %v1950 = vsel %vm508, %v1943, -inf
    %1951 = vmax.xlane.f32.xlu0 %v1950
    %v1952 = vpop.xlane.xlu0 %1951
    %v1953 = vsub.f32 %v1941, %v1946
    %v1954 = vsub.f32 %v1942, %v1949
    %v1955 = vsub.f32 %v1943, %v1952
    %v1956 = vmul.f32 %v1953, 1.442695
    %v1957 = vpow.pop %v1956
    %v1958 = vmul.f32 %v1954, 1.442695
    %v1959 = vpow.pop %v1958
    %v1960 = vmul.f32 %v1955, 1.442695
    %v1961 = vpow.pop %v1960
    %v1962 = vsel %vm501, %v1957, 0.0
    %1963 = vadd.xlane.f32.xlu0 %v1962
    %v1964 = vpop.xlane.xlu0 %1963
    %v1965 = vsel %vm501, %v1959, 0.0
    %1966 = vadd.xlane.f32.xlu0 %v1965
    %v1967 = vpop.xlane.xlu0 %1966
    %v1968 = vsel %vm508, %v1961, 0.0
    %1969 = vadd.xlane.f32.xlu0 %v1968
    %v1970 = vpop.xlane.xlu0 %1969
    %v1971 = vrcp.pop %v1964
    %v1972 = vmul.f32 %v1964, %v1971
    %v1973 = vsub.f32 1.0, %v1972
    %v1974 = vmul.f32 %v1971, %v1973
    %v1975 = vadd.f32 %v1971, %v1974
    %vm1976 = vweird.f32 %v1964
    %vm1977 = vweird.f32 %v1971
    %vm1978 = vmor %vm1976, %vm1977
    %v1979 = vsel %vm1978, %v1971, %v1975
    %v1980 = vand.u32 2147483647, %v1964
    %vm1981 = vcmp.eq.f32.partialorder %v1980, 8.507059e+37
    %v1982 = vand.u32 %v1964, 2147483648
    %v1983 = vor.u32 1.1754944e-38, %v1982
    %v1984 = vsel %vm1981, %v1983, %v1979
    %v1985 = vrcp.pop %v1967
    %v1986 = vmul.f32 %v1967, %v1985
    %v1987 = vsub.f32 1.0, %v1986
    %v1988 = vmul.f32 %v1985, %v1987
    %v1989 = vadd.f32 %v1985, %v1988
    %vm1990 = vweird.f32 %v1967
    %vm1991 = vweird.f32 %v1985
    %vm1992 = vmor %vm1990, %vm1991
    %v1993 = vsel %vm1992, %v1985, %v1989
    %v1994 = vand.u32 2147483647, %v1967
    %vm1995 = vcmp.eq.f32.partialorder %v1994, 8.507059e+37
    %v1996 = vand.u32 %v1967, 2147483648
    %v1997 = vor.u32 1.1754944e-38, %v1996
    %v1998 = vsel %vm1995, %v1997, %v1993
    %v1999 = vrcp.pop %v1970
    %v2000 = vmul.f32 %v1970, %v1999
    %v2001 = vsub.f32 1.0, %v2000
    %v2002 = vmul.f32 %v1999, %v2001
    %v2003 = vadd.f32 %v1999, %v2002
    %vm2004 = vweird.f32 %v1970
    %vm2005 = vweird.f32 %v1999
    %vm2006 = vmor %vm2004, %vm2005
    %v2007 = vsel %vm2006, %v1999, %v2003
    %v2008 = vand.u32 2147483647, %v1970
    %vm2009 = vcmp.eq.f32.partialorder %v2008, 8.507059e+37
    %v2010 = vand.u32 %v1970, 2147483648
    %v2011 = vor.u32 1.1754944e-38, %v2010
    %v2012 = vsel %vm2009, %v2011, %v2007
    %v2013 = vmul.f32 %v1957, %v1984
    %v2014 = vmul.f32 %v1959, %v1998
    %v2015 = vmul.f32 %v1961, %v2012
    %2016 = vrot.lane.b32.xlu0 %v1880, 64
    %v2017 = vpop.permute.xlu0 %2016
    %2018 = vrot.lane.b32.xlu0 %v1883, 64
    %v2019 = vpop.permute.xlu0 %2018
    %2020 = vrot.lane.b32.xlu0 %v1886, 64
    %v2021 = vpop.permute.xlu0 %2020
    %v2025 = vsel %vm501, %v2013, 0
    %v2028 = vsel %vm501, %v2014, 0
    %v2031 = vsel %vm501, %v2015, 0
    %v2033 = vsel %vm237, %v2021, 0
    %2035 = vmatpush.msra.mxu0 0.0
    %2036 = vmatpush.msra.mxu0 0.0
    %2037 = vmatpush.msra.mxu0 0.0
    %2038 = vmatpush.msra.mxu0 0.0
    %2039 = vmatpush.msra.mxu0 0.0
    %2040 = vmatpush.msra.mxu0 0.0
    %2041 = vmatpush.msra.mxu0 0.0
    %2042 = vmatpush.msra.mxu0 0.0
    %2043 = vmatpush.msra.mxu0 0.0
    %2044 = vmatpush.msra.mxu0 0.0
    %2045 = vmatpush.msra.mxu0 0.0
    %2046 = vmatpush.msra.mxu0 0.0
    %2047 = vmatpush.msra.mxu0 0.0
    %2048 = vmatpush.msra.mxu0 %v2033
    %2049 = vmatpush.msra.mxu0 %v2019
    %2050 = vmatpush.msra.mxu0 %v2017
    %2051 = vmatmul.f32.gmra.mxu0 %v2025
    %v2052 = vpop.f32.mrf.mxu0
    %v2053 = vadd.f32 0.0, %v2052
    %2054 = vmatmul.f32.gmra.mxu0 %v2028
    %v2055 = vpop.f32.mrf.mxu0
    %v2056 = vadd.f32 0.0, %v2055
    %2057 = vmatmul.f32.gmra.mxu0 %v2031
    %v2058 = vpop.f32.mrf.mxu0
    %v2059 = vadd.f32 0.0, %v2058
    %2060 = vdwg.mxu0
    %2061 = vrot.lane.b32.xlu0 %v1880, 112
    %v2062 = vpop.permute.xlu0 %2061
    %2063 = vrot.lane.b32.xlu0 %v1883, 112
    %v2064 = vpop.permute.xlu0 %2063
    %2065 = vrot.lane.b32.xlu0 %v1886, 112
    %v2066 = vpop.permute.xlu0 %2065
    %2067 = vrot.lane.b32.xlu0 %v1880, 80
    %v2068 = vpop.permute.xlu0 %2067
    %2069 = vrot.lane.b32.xlu0 %v1883, 80
    %v2070 = vpop.permute.xlu0 %2069
    %2071 = vrot.lane.b32.xlu0 %v1886, 80
    %v2072 = vpop.permute.xlu0 %2071
    %v2073 = vsel %vm459, %v2062, 0
    %v2075 = vsel %vm459, %v2064, 0
    %v2077 = vsel %vm459, %v2066, 0
    %v2079 = vsel %vm459, %v2068, 0
    %v2081 = vsel %vm459, %v2070, 0
    %v2083 = vsel %vm459, %v2072, 0
    %2085 = vmatpush.xpose.msra.mxu0 0.0
    %2086 = vmatpush.xpose.msra.mxu0 0.0
    %2087 = vmatpush.xpose.msra.mxu0 0.0
    %2088 = vmatpush.xpose.msra.mxu0 0.0
    %2089 = vmatpush.xpose.msra.mxu0 0.0
    %2090 = vmatpush.xpose.msra.mxu0 0.0
    %2091 = vmatpush.xpose.msra.mxu0 0.0
    %2092 = vmatpush.xpose.msra.mxu0 0.0
    %2093 = vmatpush.xpose.msra.mxu0 0.0
    %2094 = vmatpush.xpose.msra.mxu0 0.0
    %2095 = vmatpush.xpose.msra.mxu0 0.0
    %2096 = vmatpush.xpose.msra.mxu0 0.0
    %2097 = vmatpush.xpose.msra.mxu0 0.0
    %2098 = vmatpush.xpose.msra.mxu0 %v2083
    %2099 = vmatpush.xpose.msra.mxu0 %v2081
    %2100 = vmatpush.xpose.msra.mxu0 %v2079
    %2101 = vmatmul.f32.gmra.mxu0 %v2073
    %v2102 = vpop.f32.mrf.mxu0
    %v2103 = vadd.f32 0.0, %v2102
    %2104 = vmatmul.f32.gmra.mxu0 %v2075
    %v2105 = vpop.f32.mrf.mxu0
    %v2106 = vadd.f32 0.0, %v2105
    %2107 = vmatmul.f32.gmra.mxu0 %v2077
    %v2108 = vpop.f32.mrf.mxu0
    %v2109 = vadd.f32 0.0, %v2108
    %2110 = vdwg.mxu0
    %v2111 = vmul.f32 %v2103, 0.25
    %v2112 = vmul.f32 %v2106, 0.25
    %v2113 = vmul.f32 %v2109, 0.25
    %v2114 = vsel %vm501, %v2111, -inf
    %2115 = vmax.xlane.f32.xlu0 %v2114
    %v2116 = vpop.xlane.xlu0 %2115
    %v2117 = vsel %vm501, %v2112, -inf
    %2118 = vmax.xlane.f32.xlu0 %v2117
    %v2119 = vpop.xlane.xlu0 %2118
    %v2120 = vsel %vm508, %v2113, -inf
    %2121 = vmax.xlane.f32.xlu0 %v2120
    %v2122 = vpop.xlane.xlu0 %2121
    %v2123 = vsub.f32 %v2111, %v2116
    %v2124 = vsub.f32 %v2112, %v2119
    %v2125 = vsub.f32 %v2113, %v2122
    %v2126 = vmul.f32 %v2123, 1.442695
    %v2127 = vpow.pop %v2126
    %v2128 = vmul.f32 %v2124, 1.442695
    %v2129 = vpow.pop %v2128
    %v2130 = vmul.f32 %v2125, 1.442695
    %v2131 = vpow.pop %v2130
    %v2132 = vsel %vm501, %v2127, 0.0
    %2133 = vadd.xlane.f32.xlu0 %v2132
    %v2134 = vpop.xlane.xlu0 %2133
    %v2135 = vsel %vm501, %v2129, 0.0
    %2136 = vadd.xlane.f32.xlu0 %v2135
    %v2137 = vpop.xlane.xlu0 %2136
    %v2138 = vsel %vm508, %v2131, 0.0
    %2139 = vadd.xlane.f32.xlu0 %v2138
    %v2140 = vpop.xlane.xlu0 %2139
    %v2141 = vrcp.pop %v2134
    %v2142 = vmul.f32 %v2134, %v2141
    %v2143 = vsub.f32 1.0, %v2142
    %v2144 = vmul.f32 %v2141, %v2143
    %v2145 = vadd.f32 %v2141, %v2144
    %vm2146 = vweird.f32 %v2134
    %vm2147 = vweird.f32 %v2141
    %vm2148 = vmor %vm2146, %vm2147
    %v2149 = vsel %vm2148, %v2141, %v2145
    %v2150 = vand.u32 2147483647, %v2134
    %vm2151 = vcmp.eq.f32.partialorder %v2150, 8.507059e+37
    %v2152 = vand.u32 %v2134, 2147483648
    %v2153 = vor.u32 1.1754944e-38, %v2152
    %v2154 = vsel %vm2151, %v2153, %v2149
    %v2155 = vrcp.pop %v2137
    %v2156 = vmul.f32 %v2137, %v2155
    %v2157 = vsub.f32 1.0, %v2156
    %v2158 = vmul.f32 %v2155, %v2157
    %v2159 = vadd.f32 %v2155, %v2158
    %vm2160 = vweird.f32 %v2137
    %vm2161 = vweird.f32 %v2155
    %vm2162 = vmor %vm2160, %vm2161
    %v2163 = vsel %vm2162, %v2155, %v2159
    %v2164 = vand.u32 2147483647, %v2137
    %vm2165 = vcmp.eq.f32.partialorder %v2164, 8.507059e+37
    %v2166 = vand.u32 %v2137, 2147483648
    %v2167 = vor.u32 1.1754944e-38, %v2166
    %v2168 = vsel %vm2165, %v2167, %v2163
    %v2169 = vrcp.pop %v2140
    %v2170 = vmul.f32 %v2140, %v2169
    %v2171 = vsub.f32 1.0, %v2170
    %v2172 = vmul.f32 %v2169, %v2171
    %v2173 = vadd.f32 %v2169, %v2172
    %vm2174 = vweird.f32 %v2140
    %vm2175 = vweird.f32 %v2169
    %vm2176 = vmor %vm2174, %vm2175
    %v2177 = vsel %vm2176, %v2169, %v2173
    %v2178 = vand.u32 2147483647, %v2140
    %vm2179 = vcmp.eq.f32.partialorder %v2178, 8.507059e+37
    %v2180 = vand.u32 %v2140, 2147483648
    %v2181 = vor.u32 1.1754944e-38, %v2180
    %v2182 = vsel %vm2179, %v2181, %v2177
    %v2183 = vmul.f32 %v2127, %v2154
    %v2184 = vmul.f32 %v2129, %v2168
    %v2185 = vmul.f32 %v2131, %v2182
    %2186 = vrot.lane.b32.xlu0 %v1880, 48
    %v2187 = vpop.permute.xlu0 %2186
    %2188 = vrot.lane.b32.xlu0 %v1883, 48
    %v2189 = vpop.permute.xlu0 %2188
    %2190 = vrot.lane.b32.xlu0 %v1886, 48
    %v2191 = vpop.permute.xlu0 %2190
    %v2195 = vsel %vm501, %v2183, 0
    %v2198 = vsel %vm501, %v2184, 0
    %v2201 = vsel %vm501, %v2185, 0
    %v2203 = vsel %vm237, %v2191, 0
    %2205 = vmatpush.msra.mxu0 0.0
    %2206 = vmatpush.msra.mxu0 0.0
    %2207 = vmatpush.msra.mxu0 0.0
    %2208 = vmatpush.msra.mxu0 0.0
    %2209 = vmatpush.msra.mxu0 0.0
    %2210 = vmatpush.msra.mxu0 0.0
    %2211 = vmatpush.msra.mxu0 0.0
    %2212 = vmatpush.msra.mxu0 0.0
    %2213 = vmatpush.msra.mxu0 0.0
    %2214 = vmatpush.msra.mxu0 0.0
    %2215 = vmatpush.msra.mxu0 0.0
    %2216 = vmatpush.msra.mxu0 0.0
    %2217 = vmatpush.msra.mxu0 0.0
    %2218 = vmatpush.msra.mxu0 %v2203
    %2219 = vmatpush.msra.mxu0 %v2189
    %2220 = vmatpush.msra.mxu0 %v2187
    %2221 = vmatmul.f32.gmra.mxu0 %v2195
    %v2222 = vpop.f32.mrf.mxu0
    %v2223 = vadd.f32 0.0, %v2222
    %2224 = vmatmul.f32.gmra.mxu0 %v2198
    %v2225 = vpop.f32.mrf.mxu0
    %v2226 = vadd.f32 0.0, %v2225
    %2227 = vmatmul.f32.gmra.mxu0 %v2201
    %v2228 = vpop.f32.mrf.mxu0
    %v2229 = vadd.f32 0.0, %v2228
    %2230 = vdwg.mxu0
    %2234 = vrot.lane.b32.xlu0 %v2223, 16
    %v2235 = vpop.permute.xlu0 %2234
    %2236 = vrot.lane.b32.xlu0 %v2226, 16
    %v2237 = vpop.permute.xlu0 %2236
    %2238 = vrot.lane.b32.xlu0 %v2229, 16
    %v2239 = vpop.permute.xlu0 %2238
    %v2243 = vsel %vm459, %v2053, %v2235
    %v2244 = vsel %vm459, %v2056, %v2237
    %v2245 = vsel %vm459, %v2059, %v2239
    %v2248 = vrot.slane %v1886, 1
    %v2249 = vrot.slane %v1889, 1
    %v2250 = vsel %vm223, %v2248, %v2249
    %v2251 = vrot.slane %v1892, 1
    %v2252 = vsel %vm223, %v2249, %v2251
    %2253 = vrot.lane.b32.xlu0 %v2250, 96
    %v2254 = vpop.permute.xlu0 %2253
    %2255 = vrot.lane.b32.xlu0 %v2252, 96
    %v2256 = vpop.permute.xlu0 %2255
    %2257 = vrot.lane.b32.xlu0 %v2251, 96
    %v2258 = vpop.permute.xlu0 %2257
    %v2259 = vsel %vm459, %v2250, 0
    %v2261 = vsel %vm459, %v2252, 0
    %v2263 = vsel %vm459, %v2251, 0
    %v2265 = vsel %vm459, %v2254, 0
    %v2267 = vsel %vm459, %v2256, 0
    %v2269 = vsel %vm459, %v2258, 0
    %2271 = vmatpush.xpose.msra.mxu0 0.0
    %2272 = vmatpush.xpose.msra.mxu0 0.0
    %2273 = vmatpush.xpose.msra.mxu0 0.0
    %2274 = vmatpush.xpose.msra.mxu0 0.0
    %2275 = vmatpush.xpose.msra.mxu0 0.0
    %2276 = vmatpush.xpose.msra.mxu0 0.0
    %2277 = vmatpush.xpose.msra.mxu0 0.0
    %2278 = vmatpush.xpose.msra.mxu0 0.0
    %2279 = vmatpush.xpose.msra.mxu0 0.0
    %2280 = vmatpush.xpose.msra.mxu0 0.0
    %2281 = vmatpush.xpose.msra.mxu0 0.0
    %2282 = vmatpush.xpose.msra.mxu0 0.0
    %2283 = vmatpush.xpose.msra.mxu0 0.0
    %2284 = vmatpush.xpose.msra.mxu0 %v2269
    %2285 = vmatpush.xpose.msra.mxu0 %v2267
    %2286 = vmatpush.xpose.msra.mxu0 %v2265
    %2287 = vmatmul.f32.gmra.mxu0 %v2259
    %v2288 = vpop.f32.mrf.mxu0
    %v2289 = vadd.f32 0.0, %v2288
    %2290 = vmatmul.f32.gmra.mxu0 %v2261
    %v2291 = vpop.f32.mrf.mxu0
    %v2292 = vadd.f32 0.0, %v2291
    %2293 = vmatmul.f32.gmra.mxu0 %v2263
    %v2294 = vpop.f32.mrf.mxu0
    %v2295 = vadd.f32 0.0, %v2294
    %2296 = vdwg.mxu0
    %v2297 = vmul.f32 %v2289, 0.25
    %v2298 = vmul.f32 %v2292, 0.25
    %v2299 = vmul.f32 %v2295, 0.25
    %v2300 = vsel %vm501, %v2297, -inf
    %2301 = vmax.xlane.f32.xlu0 %v2300
    %v2302 = vpop.xlane.xlu0 %2301
    %v2303 = vsel %vm501, %v2298, -inf
    %2304 = vmax.xlane.f32.xlu0 %v2303
    %v2305 = vpop.xlane.xlu0 %2304
    %v2306 = vsel %vm508, %v2299, -inf
    %2307 = vmax.xlane.f32.xlu0 %v2306
    %v2308 = vpop.xlane.xlu0 %2307
    %v2309 = vsub.f32 %v2297, %v2302
    %v2310 = vsub.f32 %v2298, %v2305
    %v2311 = vsub.f32 %v2299, %v2308
    %v2312 = vmul.f32 %v2309, 1.442695
    %v2313 = vpow.pop %v2312
    %v2314 = vmul.f32 %v2310, 1.442695
    %v2315 = vpow.pop %v2314
    %v2316 = vmul.f32 %v2311, 1.442695
    %v2317 = vpow.pop %v2316
    %v2318 = vsel %vm501, %v2313, 0.0
    %2319 = vadd.xlane.f32.xlu0 %v2318
    %v2320 = vpop.xlane.xlu0 %2319
    %v2321 = vsel %vm501, %v2315, 0.0
    %2322 = vadd.xlane.f32.xlu0 %v2321
    %v2323 = vpop.xlane.xlu0 %2322
    %v2324 = vsel %vm508, %v2317, 0.0
    %2325 = vadd.xlane.f32.xlu0 %v2324
    %v2326 = vpop.xlane.xlu0 %2325
    %v2327 = vrcp.pop %v2320
    %v2328 = vmul.f32 %v2320, %v2327
    %v2329 = vsub.f32 1.0, %v2328
    %v2330 = vmul.f32 %v2327, %v2329
    %v2331 = vadd.f32 %v2327, %v2330
    %vm2332 = vweird.f32 %v2320
    %vm2333 = vweird.f32 %v2327
    %vm2334 = vmor %vm2332, %vm2333
    %v2335 = vsel %vm2334, %v2327, %v2331
    %v2336 = vand.u32 2147483647, %v2320
    %vm2337 = vcmp.eq.f32.partialorder %v2336, 8.507059e+37
    %v2338 = vand.u32 %v2320, 2147483648
    %v2339 = vor.u32 1.1754944e-38, %v2338
    %v2340 = vsel %vm2337, %v2339, %v2335
    %v2341 = vrcp.pop %v2323
    %v2342 = vmul.f32 %v2323, %v2341
    %v2343 = vsub.f32 1.0, %v2342
    %v2344 = vmul.f32 %v2341, %v2343
    %v2345 = vadd.f32 %v2341, %v2344
    %vm2346 = vweird.f32 %v2323
    %vm2347 = vweird.f32 %v2341
    %vm2348 = vmor %vm2346, %vm2347
    %v2349 = vsel %vm2348, %v2341, %v2345
    %v2350 = vand.u32 2147483647, %v2323
    %vm2351 = vcmp.eq.f32.partialorder %v2350, 8.507059e+37
    %v2352 = vand.u32 %v2323, 2147483648
    %v2353 = vor.u32 1.1754944e-38, %v2352
    %v2354 = vsel %vm2351, %v2353, %v2349
    %v2355 = vrcp.pop %v2326
    %v2356 = vmul.f32 %v2326, %v2355
    %v2357 = vsub.f32 1.0, %v2356
    %v2358 = vmul.f32 %v2355, %v2357
    %v2359 = vadd.f32 %v2355, %v2358
    %vm2360 = vweird.f32 %v2326
    %vm2361 = vweird.f32 %v2355
    %vm2362 = vmor %vm2360, %vm2361
    %v2363 = vsel %vm2362, %v2355, %v2359
    %v2364 = vand.u32 2147483647, %v2326
    %vm2365 = vcmp.eq.f32.partialorder %v2364, 8.507059e+37
    %v2366 = vand.u32 %v2326, 2147483648
    %v2367 = vor.u32 1.1754944e-38, %v2366
    %v2368 = vsel %vm2365, %v2367, %v2363
    %v2369 = vmul.f32 %v2313, %v2340
    %v2370 = vmul.f32 %v2315, %v2354
    %v2371 = vmul.f32 %v2317, %v2368
    %2372 = vrot.lane.b32.xlu0 %v2250, 64
    %v2373 = vpop.permute.xlu0 %2372
    %2374 = vrot.lane.b32.xlu0 %v2252, 64
    %v2375 = vpop.permute.xlu0 %2374
    %2376 = vrot.lane.b32.xlu0 %v2251, 64
    %v2377 = vpop.permute.xlu0 %2376
    %v2381 = vsel %vm501, %v2369, 0
    %v2384 = vsel %vm501, %v2370, 0
    %v2387 = vsel %vm501, %v2371, 0
    %v2389 = vsel %vm237, %v2377, 0
    %2391 = vmatpush.msra.mxu0 0.0
    %2392 = vmatpush.msra.mxu0 0.0
    %2393 = vmatpush.msra.mxu0 0.0
    %2394 = vmatpush.msra.mxu0 0.0
    %2395 = vmatpush.msra.mxu0 0.0
    %2396 = vmatpush.msra.mxu0 0.0
    %2397 = vmatpush.msra.mxu0 0.0
    %2398 = vmatpush.msra.mxu0 0.0
    %2399 = vmatpush.msra.mxu0 0.0
    %2400 = vmatpush.msra.mxu0 0.0
    %2401 = vmatpush.msra.mxu0 0.0
    %2402 = vmatpush.msra.mxu0 0.0
    %2403 = vmatpush.msra.mxu0 0.0
    %2404 = vmatpush.msra.mxu0 %v2389
    %2405 = vmatpush.msra.mxu0 %v2375
    %2406 = vmatpush.msra.mxu0 %v2373
    %2407 = vmatmul.f32.gmra.mxu0 %v2381
    %v2408 = vpop.f32.mrf.mxu0
    %v2409 = vadd.f32 0.0, %v2408
    %2410 = vmatmul.f32.gmra.mxu0 %v2384
    %v2411 = vpop.f32.mrf.mxu0
    %v2412 = vadd.f32 0.0, %v2411
    %2413 = vmatmul.f32.gmra.mxu0 %v2387
    %v2414 = vpop.f32.mrf.mxu0
    %v2415 = vadd.f32 0.0, %v2414
    %2416 = vdwg.mxu0
    %2417 = vrot.lane.b32.xlu0 %v2250, 112
    %v2418 = vpop.permute.xlu0 %2417
    %2419 = vrot.lane.b32.xlu0 %v2252, 112
    %v2420 = vpop.permute.xlu0 %2419
    %2421 = vrot.lane.b32.xlu0 %v2251, 112
    %v2422 = vpop.permute.xlu0 %2421
    %2423 = vrot.lane.b32.xlu0 %v2250, 80
    %v2424 = vpop.permute.xlu0 %2423
    %2425 = vrot.lane.b32.xlu0 %v2252, 80
    %v2426 = vpop.permute.xlu0 %2425
    %2427 = vrot.lane.b32.xlu0 %v2251, 80
    %v2428 = vpop.permute.xlu0 %2427
    %v2429 = vsel %vm459, %v2418, 0
    %v2431 = vsel %vm459, %v2420, 0
    %v2433 = vsel %vm459, %v2422, 0
    %v2435 = vsel %vm459, %v2424, 0
    %v2437 = vsel %vm459, %v2426, 0
    %v2439 = vsel %vm459, %v2428, 0
    %2441 = vmatpush.xpose.msra.mxu0 0.0
    %2442 = vmatpush.xpose.msra.mxu0 0.0
    %2443 = vmatpush.xpose.msra.mxu0 0.0
    %2444 = vmatpush.xpose.msra.mxu0 0.0
    %2445 = vmatpush.xpose.msra.mxu0 0.0
    %2446 = vmatpush.xpose.msra.mxu0 0.0
    %2447 = vmatpush.xpose.msra.mxu0 0.0
    %2448 = vmatpush.xpose.msra.mxu0 0.0
    %2449 = vmatpush.xpose.msra.mxu0 0.0
    %2450 = vmatpush.xpose.msra.mxu0 0.0
    %2451 = vmatpush.xpose.msra.mxu0 0.0
    %2452 = vmatpush.xpose.msra.mxu0 0.0
    %2453 = vmatpush.xpose.msra.mxu0 0.0
    %2454 = vmatpush.xpose.msra.mxu0 %v2439
    %2455 = vmatpush.xpose.msra.mxu0 %v2437
    %2456 = vmatpush.xpose.msra.mxu0 %v2435
    %2457 = vmatmul.f32.gmra.mxu0 %v2429
    %v2458 = vpop.f32.mrf.mxu0
    %v2459 = vadd.f32 0.0, %v2458
    %2460 = vmatmul.f32.gmra.mxu0 %v2431
    %v2461 = vpop.f32.mrf.mxu0
    %v2462 = vadd.f32 0.0, %v2461
    %2463 = vmatmul.f32.gmra.mxu0 %v2433
    %v2464 = vpop.f32.mrf.mxu0
    %v2465 = vadd.f32 0.0, %v2464
    %2466 = vdwg.mxu0
    %v2467 = vmul.f32 %v2459, 0.25
    %v2468 = vmul.f32 %v2462, 0.25
    %v2469 = vmul.f32 %v2465, 0.25
    %v2470 = vsel %vm501, %v2467, -inf
    %2471 = vmax.xlane.f32.xlu0 %v2470
    %v2472 = vpop.xlane.xlu0 %2471
    %v2473 = vsel %vm501, %v2468, -inf
    %2474 = vmax.xlane.f32.xlu0 %v2473
    %v2475 = vpop.xlane.xlu0 %2474
    %v2476 = vsel %vm508, %v2469, -inf
    %2477 = vmax.xlane.f32.xlu0 %v2476
    %v2478 = vpop.xlane.xlu0 %2477
    %v2479 = vsub.f32 %v2467, %v2472
    %v2480 = vsub.f32 %v2468, %v2475
    %v2481 = vsub.f32 %v2469, %v2478
    %v2482 = vmul.f32 %v2479, 1.442695
    %v2483 = vpow.pop %v2482
    %v2484 = vmul.f32 %v2480, 1.442695
    %v2485 = vpow.pop %v2484
    %v2486 = vmul.f32 %v2481, 1.442695
    %v2487 = vpow.pop %v2486
    %v2488 = vsel %vm501, %v2483, 0.0
    %2489 = vadd.xlane.f32.xlu0 %v2488
    %v2490 = vpop.xlane.xlu0 %2489
    %v2491 = vsel %vm501, %v2485, 0.0
    %2492 = vadd.xlane.f32.xlu0 %v2491
    %v2493 = vpop.xlane.xlu0 %2492
    %v2494 = vsel %vm508, %v2487, 0.0
    %2495 = vadd.xlane.f32.xlu0 %v2494
    %v2496 = vpop.xlane.xlu0 %2495
    %v2497 = vrcp.pop %v2490
    %v2498 = vmul.f32 %v2490, %v2497
    %v2499 = vsub.f32 1.0, %v2498
    %v2500 = vmul.f32 %v2497, %v2499
    %v2501 = vadd.f32 %v2497, %v2500
    %vm2502 = vweird.f32 %v2490
    %vm2503 = vweird.f32 %v2497
    %vm2504 = vmor %vm2502, %vm2503
    %v2505 = vsel %vm2504, %v2497, %v2501
    %v2506 = vand.u32 2147483647, %v2490
    %vm2507 = vcmp.eq.f32.partialorder %v2506, 8.507059e+37
    %v2508 = vand.u32 %v2490, 2147483648
    %v2509 = vor.u32 1.1754944e-38, %v2508
    %v2510 = vsel %vm2507, %v2509, %v2505
    %v2511 = vrcp.pop %v2493
    %v2512 = vmul.f32 %v2493, %v2511
    %v2513 = vsub.f32 1.0, %v2512
    %v2514 = vmul.f32 %v2511, %v2513
    %v2515 = vadd.f32 %v2511, %v2514
    %vm2516 = vweird.f32 %v2493
    %vm2517 = vweird.f32 %v2511
    %vm2518 = vmor %vm2516, %vm2517
    %v2519 = vsel %vm2518, %v2511, %v2515
    %v2520 = vand.u32 2147483647, %v2493
    %vm2521 = vcmp.eq.f32.partialorder %v2520, 8.507059e+37
    %v2522 = vand.u32 %v2493, 2147483648
    %v2523 = vor.u32 1.1754944e-38, %v2522
    %v2524 = vsel %vm2521, %v2523, %v2519
    %v2525 = vrcp.pop %v2496
    %v2526 = vmul.f32 %v2496, %v2525
    %v2527 = vsub.f32 1.0, %v2526
    %v2528 = vmul.f32 %v2525, %v2527
    %v2529 = vadd.f32 %v2525, %v2528
    %vm2530 = vweird.f32 %v2496
    %vm2531 = vweird.f32 %v2525
    %vm2532 = vmor %vm2530, %vm2531
    %v2533 = vsel %vm2532, %v2525, %v2529
    %v2534 = vand.u32 2147483647, %v2496
    %vm2535 = vcmp.eq.f32.partialorder %v2534, 8.507059e+37
    %v2536 = vand.u32 %v2496, 2147483648
    %v2537 = vor.u32 1.1754944e-38, %v2536
    %v2538 = vsel %vm2535, %v2537, %v2533
    %v2539 = vmul.f32 %v2483, %v2510
    %v2540 = vmul.f32 %v2485, %v2524
    %v2541 = vmul.f32 %v2487, %v2538
    %2542 = vrot.lane.b32.xlu0 %v2250, 48
    %v2543 = vpop.permute.xlu0 %2542
    %2544 = vrot.lane.b32.xlu0 %v2252, 48
    %v2545 = vpop.permute.xlu0 %2544
    %2546 = vrot.lane.b32.xlu0 %v2251, 48
    %v2547 = vpop.permute.xlu0 %2546
    %v2551 = vsel %vm501, %v2539, 0
    %v2554 = vsel %vm501, %v2540, 0
    %v2557 = vsel %vm501, %v2541, 0
    %v2559 = vsel %vm237, %v2547, 0
    %2561 = vmatpush.msra.mxu0 0.0
    %2562 = vmatpush.msra.mxu0 0.0
    %2563 = vmatpush.msra.mxu0 0.0
    %2564 = vmatpush.msra.mxu0 0.0
    %2565 = vmatpush.msra.mxu0 0.0
    %2566 = vmatpush.msra.mxu0 0.0
    %2567 = vmatpush.msra.mxu0 0.0
    %2568 = vmatpush.msra.mxu0 0.0
    %2569 = vmatpush.msra.mxu0 0.0
    %2570 = vmatpush.msra.mxu0 0.0
    %2571 = vmatpush.msra.mxu0 0.0
    %2572 = vmatpush.msra.mxu0 0.0
    %2573 = vmatpush.msra.mxu0 0.0
    %2574 = vmatpush.msra.mxu0 %v2559
    %2575 = vmatpush.msra.mxu0 %v2545
    %2576 = vmatpush.msra.mxu0 %v2543
    %2577 = vmatmul.f32.gmra.mxu0 %v2551
    %v2578 = vpop.f32.mrf.mxu0
    %v2579 = vadd.f32 0.0, %v2578
    %2580 = vmatmul.f32.gmra.mxu0 %v2554
    %v2581 = vpop.f32.mrf.mxu0
    %v2582 = vadd.f32 0.0, %v2581
    %2583 = vmatmul.f32.gmra.mxu0 %v2557
    %v2584 = vpop.f32.mrf.mxu0
    %v2585 = vadd.f32 0.0, %v2584
    %2586 = vdwg.mxu0
    %2590 = vrot.lane.b32.xlu0 %v2579, 16
    %v2591 = vpop.permute.xlu0 %2590
    %2592 = vrot.lane.b32.xlu0 %v2582, 16
    %v2593 = vpop.permute.xlu0 %2592
    %2594 = vrot.lane.b32.xlu0 %v2585, 16
    %v2595 = vpop.permute.xlu0 %2594
    %v2599 = vsel %vm459, %v2409, %v2591
    %v2600 = vsel %vm459, %v2412, %v2593
    %v2601 = vsel %vm459, %v2415, %v2595
    %v2605 = vrot.slane %v2599, 7
    %v2606 = vrot.slane %v2600, 7
    %v2607 = vsel %vm237, %v2605, %v2606
    %v2608 = vrot.slane %v2601, 7
    %v2609 = vsel %vm237, %v2606, %v2608
    %v2611 = vsel %vm237, %v2245, %v2605
    %s2612 = scalar_lea.vmem %s7, 32
    %v2613 = vld [vmem:[%s2612] sm:$0xff]
    %v2614 = vld [vmem:[%s2612 + $0x8] sm:$0xff]
    %v2615 = vld [vmem:[%s2612 + $0x10] sm:$0xff]
    %v2616 = vld [vmem:[%s2612 + $0x18] sm:$0xff]
    %v2618 = vsel %vm260, %v2243, 0
    %v2621 = vsel %vm260, %v2244, 0
    %v2624 = vsel %vm260, %v2611, 0
    %v2626 = vsel %vm260, %v2607, 0
    %v2628 = vsel %vm260, %v2609, 0
    %2630 = vmatpush.msra.mxu0 0.0
    %2631 = vmatpush.msra.mxu0 0.0
    %2632 = vmatpush.msra.mxu0 0.0
    %2633 = vmatpush.msra.mxu0 0.0
    %2634 = vmatpush.msra.mxu0 0.0
    %2635 = vmatpush.msra.mxu0 0.0
    %2636 = vmatpush.msra.mxu0 0.0
    %2637 = vmatpush.msra.mxu0 0.0
    %2638 = vmatpush.msra.mxu0 0.0
    %2639 = vmatpush.msra.mxu0 0.0
    %2640 = vmatpush.msra.mxu0 0.0
    %2641 = vmatpush.msra.mxu0 0.0
    %2642 = vmatpush.msra.mxu0 %v2616
    %2643 = vmatpush.msra.mxu0 %v2615
    %2644 = vmatpush.msra.mxu0 %v2614
    %2645 = vmatpush.msra.mxu0 %v2613
    %2646 = vmatmul.f32.gmra.mxu0 %v2618
    %v2647 = vpop.f32.mrf.mxu0
    %v2648 = vadd.f32 0.0, %v2647
    %2649 = vmatmul.f32.gmra.mxu0 %v2621
    %v2650 = vpop.f32.mrf.mxu0
    %v2651 = vadd.f32 0.0, %v2650
    %2652 = vmatmul.f32.gmra.mxu0 %v2624
    %v2653 = vpop.f32.mrf.mxu0
    %v2654 = vadd.f32 0.0, %v2653
    %2655 = vmatmul.f32.gmra.mxu0 %v2626
    %v2656 = vpop.f32.mrf.mxu0
    %v2657 = vadd.f32 0.0, %v2656
    %2658 = vmatmul.f32.gmra.mxu0 %v2628
    %v2659 = vpop.f32.mrf.mxu0
    %v2660 = vadd.f32 0.0, %v2659
    %2661 = vdwg.mxu0
    %v2662 = vadd.f32 %v1702, %v2648
    %v2663 = vadd.f32 %v1703, %v2651
    %v2664 = vadd.f32 %v1704, %v2654
    %v2665 = vadd.f32 %v1705, %v2657
    %v2666 = vadd.f32 %v1706, %v2660
    %s2667 = scalar_lea.vmem [#allocation6], 1
    %v2668 = vld [vmem:[%s2667] sm:$0x1]
    %v2670 = vperm.slane %v2668, 0
    %v2672 = vadd.f32 %v2662, %v2670
    %v2673 = vadd.f32 %v2663, %v2670
    %v2674 = vadd.f32 %v2664, %v2670
    %v2675 = vadd.f32 %v2665, %v2670
    %v2676 = vadd.f32 %v2666, %v2670
    %s2677 = scalar_lea.vmem [#allocation7], 1
    %v2678 = vld [vmem:[%s2677] sm:$0x1]
    %s2679 = scalar_lea.vmem [#allocation9], 1
    %v2680 = vld [vmem:[%s2679] sm:$0x1]
    %v2681 = vsel %vm260, %v2672, 0.0
    %2682 = vadd.xlane.f32.xlu0 %v2681
    %v2683 = vpop.xlane.xlu0 %2682
    %v2684 = vsel %vm260, %v2673, 0.0
    %2685 = vadd.xlane.f32.xlu0 %v2684
    %v2686 = vpop.xlane.xlu0 %2685
    %v2687 = vsel %vm260, %v2674, 0.0
    %2688 = vadd.xlane.f32.xlu0 %v2687
    %v2689 = vpop.xlane.xlu0 %2688
    %v2690 = vsel %vm260, %v2675, 0.0
    %2691 = vadd.xlane.f32.xlu0 %v2690
    %v2692 = vpop.xlane.xlu0 %2691
    %v2693 = vsel %vm273, %v2676, 0.0
    %2694 = vadd.xlane.f32.xlu0 %v2693
    %v2695 = vpop.xlane.xlu0 %2694
    %v2696 = vmul.f32 %v2683, %v283
    %v2697 = vmul.f32 %v2686, %v283
    %v2698 = vmul.f32 %v2689, %v283
    %v2699 = vmul.f32 %v2692, %v283
    %v2700 = vmul.f32 %v2695, %v283
    %v2701 = vsub.f32 %v2672, %v2696
    %v2702 = vsub.f32 %v2673, %v2697
    %v2703 = vsub.f32 %v2674, %v2698
    %v2704 = vsub.f32 %v2675, %v2699
    %v2705 = vsub.f32 %v2676, %v2700
    %v2706 = vmul.f32 %v2701, %v2701
    %v2707 = vmul.f32 %v2702, %v2702
    %v2708 = vmul.f32 %v2703, %v2703
    %v2709 = vmul.f32 %v2704, %v2704
    %v2710 = vmul.f32 %v2705, %v2705
    %v2711 = vsel %vm260, %v2706, 0.0
    %2712 = vadd.xlane.f32.xlu0 %v2711
    %v2713 = vpop.xlane.xlu0 %2712
    %v2714 = vsel %vm260, %v2707, 0.0
    %2715 = vadd.xlane.f32.xlu0 %v2714
    %v2716 = vpop.xlane.xlu0 %2715
    %v2717 = vsel %vm260, %v2708, 0.0
    %2718 = vadd.xlane.f32.xlu0 %v2717
    %v2719 = vpop.xlane.xlu0 %2718
    %v2720 = vsel %vm260, %v2709, 0.0
    %2721 = vadd.xlane.f32.xlu0 %v2720
    %v2722 = vpop.xlane.xlu0 %2721
    %v2723 = vsel %vm273, %v2710, 0.0
    %2724 = vadd.xlane.f32.xlu0 %v2723
    %v2725 = vpop.xlane.xlu0 %2724
    %v2726 = vmul.f32 %v2713, %v283
    %v2727 = vmul.f32 %v2716, %v283
    %v2728 = vmul.f32 %v2719, %v283
    %v2729 = vmul.f32 %v2722, %v283
    %v2730 = vmul.f32 %v2725, %v283
    %v2731 = vadd.f32 %v2726, 1e-05
    %v2732 = vadd.f32 %v2727, 1e-05
    %v2733 = vadd.f32 %v2728, 1e-05
    %v2734 = vadd.f32 %v2729, 1e-05
    %v2735 = vadd.f32 %v2730, 1e-05
    %v2736 = vrsqrt.pop %v2731
    %v2737 = vmul.f32 %v2736, %v2731
    %v2738 = vmul.f32 %v2737, %v2736
    %v2739 = vmul.f32 0.5, %v2738
    %v2740 = vsub.f32 1.5, %v2739
    %v2741 = vmul.f32 %v2736, %v2740
    %vm2742 = vweird.f32 %v2731
    %vm2743 = vweird.f32 %v2736
    %vm2744 = vmor %vm2742, %vm2743
    %v2745 = vsel %vm2744, %v2736, %v2741
    %v2746 = vrsqrt.pop %v2732
    %v2747 = vmul.f32 %v2746, %v2732
    %v2748 = vmul.f32 %v2747, %v2746
    %v2749 = vmul.f32 0.5, %v2748
    %v2750 = vsub.f32 1.5, %v2749
    %v2751 = vmul.f32 %v2746, %v2750
    %vm2752 = vweird.f32 %v2732
    %vm2753 = vweird.f32 %v2746
    %vm2754 = vmor %vm2752, %vm2753
    %v2755 = vsel %vm2754, %v2746, %v2751
    %v2756 = vrsqrt.pop %v2733
    %v2757 = vmul.f32 %v2756, %v2733
    %v2758 = vmul.f32 %v2757, %v2756
    %v2759 = vmul.f32 0.5, %v2758
    %v2760 = vsub.f32 1.5, %v2759
    %v2761 = vmul.f32 %v2756, %v2760
    %vm2762 = vweird.f32 %v2733
    %vm2763 = vweird.f32 %v2756
    %vm2764 = vmor %vm2762, %vm2763
    %v2765 = vsel %vm2764, %v2756, %v2761
    %v2766 = vrsqrt.pop %v2734
    %v2767 = vmul.f32 %v2766, %v2734
    %v2768 = vmul.f32 %v2767, %v2766
    %v2769 = vmul.f32 0.5, %v2768
    %v2770 = vsub.f32 1.5, %v2769
    %v2771 = vmul.f32 %v2766, %v2770
    %vm2772 = vweird.f32 %v2734
    %vm2773 = vweird.f32 %v2766
    %vm2774 = vmor %vm2772, %vm2773
    %v2775 = vsel %vm2774, %v2766, %v2771
    %v2776 = vrsqrt.pop %v2735
    %v2777 = vmul.f32 %v2776, %v2735
    %v2778 = vmul.f32 %v2777, %v2776
    %v2779 = vmul.f32 0.5, %v2778
    %v2780 = vsub.f32 1.5, %v2779
    %v2781 = vmul.f32 %v2776, %v2780
    %vm2782 = vweird.f32 %v2735
    %vm2783 = vweird.f32 %v2776
    %vm2784 = vmor %vm2782, %vm2783
    %v2785 = vsel %vm2784, %v2776, %v2781
    %v2786 = vmul.f32 %v2701, %v2745
    %v2787 = vmul.f32 %v2702, %v2755
    %v2788 = vmul.f32 %v2703, %v2765
    %v2789 = vmul.f32 %v2704, %v2775
    %v2790 = vmul.f32 %v2705, %v2785
    %v2792 = vperm.slane %v2678, 0
    %v2794 = vmul.f32 %v2786, %v2792
    %v2795 = vmul.f32 %v2787, %v2792
    %v2796 = vmul.f32 %v2788, %v2792
    %v2797 = vmul.f32 %v2789, %v2792
    %v2798 = vmul.f32 %v2790, %v2792
    %v2800 = vperm.slane %v2680, 0
    %v2802 = vadd.f32 %v2794, %v2800
    %v2803 = vadd.f32 %v2795, %v2800
    %v2804 = vadd.f32 %v2796, %v2800
    %v2805 = vadd.f32 %v2797, %v2800
    %v2806 = vadd.f32 %v2798, %v2800
    %s2807 = scalar_lea.vmem %s11, 32
    %v2808 = vld [vmem:[%s2807] sm:$0xff]
    %v2809 = vld [vmem:[%s2807 + $0x8] sm:$0xff]
    %v2810 = vld [vmem:[%s2807 + $0x10] sm:$0xff]
    %v2811 = vld [vmem:[%s2807 + $0x18] sm:$0xff]
    %s2812 = scalar_lea.vmem [#allocation10], 1
    %v2813 = vld [vmem:[%s2812] sm:$0x1]
    %v2815 = vperm.slane %v2813, 0
    %v2818 = vsel %vm260, %v2802, 0
    %v2821 = vsel %vm260, %v2803, 0
    %v2824 = vsel %vm260, %v2804, 0
    %v2827 = vsel %vm260, %v2805, 0
    %v2830 = vsel %vm260, %v2806, 0
    %2832 = vmatpush.msra.mxu0 0.0
    %2833 = vmatpush.msra.mxu0 0.0
    %2834 = vmatpush.msra.mxu0 0.0
    %2835 = vmatpush.msra.mxu0 0.0
    %2836 = vmatpush.msra.mxu0 0.0
    %2837 = vmatpush.msra.mxu0 0.0
    %2838 = vmatpush.msra.mxu0 0.0
    %2839 = vmatpush.msra.mxu0 0.0
    %2840 = vmatpush.msra.mxu0 0.0
    %2841 = vmatpush.msra.mxu0 0.0
    %2842 = vmatpush.msra.mxu0 0.0
    %2843 = vmatpush.msra.mxu0 0.0
    %2844 = vmatpush.msra.mxu0 %v2811
    %2845 = vmatpush.msra.mxu0 %v2810
    %2846 = vmatpush.msra.mxu0 %v2809
    %2847 = vmatpush.msra.mxu0 %v2808
    %2848 = vmatmul.f32.gmra.mxu0 %v2818
    %v2849 = vpop.f32.mrf.mxu0
    %v2850 = vadd.f32 %v2815, %v2849
    %2851 = vmatmul.f32.gmra.mxu0 %v2821
    %v2852 = vpop.f32.mrf.mxu0
    %v2853 = vadd.f32 %v2815, %v2852
    %2854 = vmatmul.f32.gmra.mxu0 %v2824
    %v2855 = vpop.f32.mrf.mxu0
    %v2856 = vadd.f32 %v2815, %v2855
    %2857 = vmatmul.f32.gmra.mxu0 %v2827
    %v2858 = vpop.f32.mrf.mxu0
    %v2859 = vadd.f32 %v2815, %v2858
    %2860 = vmatmul.f32.gmra.mxu0 %v2830
    %v2861 = vpop.f32.mrf.mxu0
    %v2862 = vadd.f32 %v2815, %v2861
    %2863 = vdwg.mxu0
    %v2864 = vmul.f32 %v2850, 0.5
    %v2865 = vmul.f32 %v2853, 0.5
    %v2866 = vmul.f32 %v2856, 0.5
    %v2867 = vmul.f32 %v2859, 0.5
    %v2868 = vmul.f32 %v2862, 0.5
    %v2869 = vmul.f32 %v2850, 0.70710677
    %v2870 = vmul.f32 %v2853, 0.70710677
    %v2871 = vmul.f32 %v2856, 0.70710677
    %v2872 = vmul.f32 %v2859, 0.70710677
    %v2873 = vmul.f32 %v2862, 0.70710677
    %v2874 = vmul.f32 %v2869, %v2869
    %v2875 = vmin.f32 16.0, %v2874
    %v2876 = vmul.f32 %v2875, 2.1237322e-06
    %v2877 = vadd.f32 %v2876, 0.00028619796
    %v2878 = vmul.f32 %v2875, %v2877
    %v2879 = vadd.f32 %v2878, 0.0036580483
    %v2880 = vmul.f32 %v2875, %v2879
    %v2881 = vadd.f32 %v2880, 0.05243302
    %v2882 = vmul.f32 %v2875, %v2881
    %v2883 = vadd.f32 %v2882, 0.18741608
    %v2884 = vmul.f32 %v2875, %v2883
    %v2885 = vadd.f32 %v2884, 1.1283791
    %v2886 = vmul.f32 %v2869, %v2885
    %v2887 = vmul.f32 %v2875, 3.8918573e-05
    %v2888 = vadd.f32 %v2887, 0.001143296
    %v2889 = vmul.f32 %v2875, %v2888
    %v2890 = vadd.f32 %v2889, 0.014752088
    %v2891 = vmul.f32 %v2875, %v2890
    %v2892 = vadd.f32 %v2891, 0.112945676
    %v2893 = vmul.f32 %v2875, %v2892
    %v2894 = vadd.f32 %v2893, 0.4994258
    %v2895 = vmul.f32 %v2875, %v2894
    %v2896 = vadd.f32 %v2895, 1.0
    %v2897 = vrcp.pop %v2896
    %v2898 = vmul.f32 %v2896, %v2897
    %v2899 = vsub.f32 1.0, %v2898
    %v2900 = vmul.f32 %v2897, %v2899
    %v2901 = vadd.f32 %v2897, %v2900
    %vm2902 = vweird.f32 %v2896
    %vm2903 = vweird.f32 %v2897
    %vm2904 = vmor %vm2902, %vm2903
    %v2905 = vsel %vm2904, %v2897, %v2901
    %v2906 = vand.u32 2147483647, %v2896
    %vm2907 = vcmp.eq.f32.partialorder %v2906, 8.507059e+37
    %v2908 = vand.u32 %v2896, 2147483648
    %v2909 = vor.u32 1.1754944e-38, %v2908
    %v2910 = vsel %vm2907, %v2909, %v2905
    %v2911 = vmul.f32 %v2886, %v2910
    %v2912 = vmin.f32 %v2911, 1.0
    %v2913 = vmax.f32 %v2912, -1.0
    %v2914 = vmul.f32 %v2870, %v2870
    %v2915 = vmin.f32 16.0, %v2914
    %v2916 = vmul.f32 %v2915, 2.1237322e-06
    %v2917 = vadd.f32 %v2916, 0.00028619796
    %v2918 = vmul.f32 %v2915, %v2917
    %v2919 = vadd.f32 %v2918, 0.0036580483
    %v2920 = vmul.f32 %v2915, %v2919
    %v2921 = vadd.f32 %v2920, 0.05243302
    %v2922 = vmul.f32 %v2915, %v2921
    %v2923 = vadd.f32 %v2922, 0.18741608
    %v2924 = vmul.f32 %v2915, %v2923
    %v2925 = vadd.f32 %v2924, 1.1283791
    %v2926 = vmul.f32 %v2870, %v2925
    %v2927 = vmul.f32 %v2915, 3.8918573e-05
    %v2928 = vadd.f32 %v2927, 0.001143296
    %v2929 = vmul.f32 %v2915, %v2928
    %v2930 = vadd.f32 %v2929, 0.014752088
    %v2931 = vmul.f32 %v2915, %v2930
    %v2932 = vadd.f32 %v2931, 0.112945676
    %v2933 = vmul.f32 %v2915, %v2932
    %v2934 = vadd.f32 %v2933, 0.4994258
    %v2935 = vmul.f32 %v2915, %v2934
    %v2936 = vadd.f32 %v2935, 1.0
    %v2937 = vrcp.pop %v2936
    %v2938 = vmul.f32 %v2936, %v2937
    %v2939 = vsub.f32 1.0, %v2938
    %v2940 = vmul.f32 %v2937, %v2939
    %v2941 = vadd.f32 %v2937, %v2940
    %vm2942 = vweird.f32 %v2936
    %vm2943 = vweird.f32 %v2937
    %vm2944 = vmor %vm2942, %vm2943
    %v2945 = vsel %vm2944, %v2937, %v2941
    %v2946 = vand.u32 2147483647, %v2936
    %vm2947 = vcmp.eq.f32.partialorder %v2946, 8.507059e+37
    %v2948 = vand.u32 %v2936, 2147483648
    %v2949 = vor.u32 1.1754944e-38, %v2948
    %v2950 = vsel %vm2947, %v2949, %v2945
    %v2951 = vmul.f32 %v2926, %v2950
    %v2952 = vmin.f32 %v2951, 1.0
    %v2953 = vmax.f32 %v2952, -1.0
    %v2954 = vmul.f32 %v2871, %v2871
    %v2955 = vmin.f32 16.0, %v2954
    %v2956 = vmul.f32 %v2955, 2.1237322e-06
    %v2957 = vadd.f32 %v2956, 0.00028619796
    %v2958 = vmul.f32 %v2955, %v2957
    %v2959 = vadd.f32 %v2958, 0.0036580483
    %v2960 = vmul.f32 %v2955, %v2959
    %v2961 = vadd.f32 %v2960, 0.05243302
    %v2962 = vmul.f32 %v2955, %v2961
    %v2963 = vadd.f32 %v2962, 0.18741608
    %v2964 = vmul.f32 %v2955, %v2963
    %v2965 = vadd.f32 %v2964, 1.1283791
    %v2966 = vmul.f32 %v2871, %v2965
    %v2967 = vmul.f32 %v2955, 3.8918573e-05
    %v2968 = vadd.f32 %v2967, 0.001143296
    %v2969 = vmul.f32 %v2955, %v2968
    %v2970 = vadd.f32 %v2969, 0.014752088
    %v2971 = vmul.f32 %v2955, %v2970
    %v2972 = vadd.f32 %v2971, 0.112945676
    %v2973 = vmul.f32 %v2955, %v2972
    %v2974 = vadd.f32 %v2973, 0.4994258
    %v2975 = vmul.f32 %v2955, %v2974
    %v2976 = vadd.f32 %v2975, 1.0
    %v2977 = vrcp.pop %v2976
    %v2978 = vmul.f32 %v2976, %v2977
    %v2979 = vsub.f32 1.0, %v2978
    %v2980 = vmul.f32 %v2977, %v2979
    %v2981 = vadd.f32 %v2977, %v2980
    %vm2982 = vweird.f32 %v2976
    %vm2983 = vweird.f32 %v2977
    %vm2984 = vmor %vm2982, %vm2983
    %v2985 = vsel %vm2984, %v2977, %v2981
    %v2986 = vand.u32 2147483647, %v2976
    %vm2987 = vcmp.eq.f32.partialorder %v2986, 8.507059e+37
    %v2988 = vand.u32 %v2976, 2147483648
    %v2989 = vor.u32 1.1754944e-38, %v2988
    %v2990 = vsel %vm2987, %v2989, %v2985
    %v2991 = vmul.f32 %v2966, %v2990
    %v2992 = vmin.f32 %v2991, 1.0
    %v2993 = vmax.f32 %v2992, -1.0
    %v2994 = vmul.f32 %v2872, %v2872
    %v2995 = vmin.f32 16.0, %v2994
    %v2996 = vmul.f32 %v2995, 2.1237322e-06
    %v2997 = vadd.f32 %v2996, 0.00028619796
    %v2998 = vmul.f32 %v2995, %v2997
    %v2999 = vadd.f32 %v2998, 0.0036580483
    %v3000 = vmul.f32 %v2995, %v2999
    %v3001 = vadd.f32 %v3000, 0.05243302
    %v3002 = vmul.f32 %v2995, %v3001
    %v3003 = vadd.f32 %v3002, 0.18741608
    %v3004 = vmul.f32 %v2995, %v3003
    %v3005 = vadd.f32 %v3004, 1.1283791
    %v3006 = vmul.f32 %v2872, %v3005
    %v3007 = vmul.f32 %v2995, 3.8918573e-05
    %v3008 = vadd.f32 %v3007, 0.001143296
    %v3009 = vmul.f32 %v2995, %v3008
    %v3010 = vadd.f32 %v3009, 0.014752088
    %v3011 = vmul.f32 %v2995, %v3010
    %v3012 = vadd.f32 %v3011, 0.112945676
    %v3013 = vmul.f32 %v2995, %v3012
    %v3014 = vadd.f32 %v3013, 0.4994258
    %v3015 = vmul.f32 %v2995, %v3014
    %v3016 = vadd.f32 %v3015, 1.0
    %v3017 = vrcp.pop %v3016
    %v3018 = vmul.f32 %v3016, %v3017
    %v3019 = vsub.f32 1.0, %v3018
    %v3020 = vmul.f32 %v3017, %v3019
    %v3021 = vadd.f32 %v3017, %v3020
    %vm3022 = vweird.f32 %v3016
    %vm3023 = vweird.f32 %v3017
    %vm3024 = vmor %vm3022, %vm3023
    %v3025 = vsel %vm3024, %v3017, %v3021
    %v3026 = vand.u32 2147483647, %v3016
    %vm3027 = vcmp.eq.f32.partialorder %v3026, 8.507059e+37
    %v3028 = vand.u32 %v3016, 2147483648
    %v3029 = vor.u32 1.1754944e-38, %v3028
    %v3030 = vsel %vm3027, %v3029, %v3025
    %v3031 = vmul.f32 %v3006, %v3030
    %v3032 = vmin.f32 %v3031, 1.0
    %v3033 = vmax.f32 %v3032, -1.0
    %v3034 = vmul.f32 %v2873, %v2873
    %v3035 = vmin.f32 16.0, %v3034
    %v3036 = vmul.f32 %v3035, 2.1237322e-06
    %v3037 = vadd.f32 %v3036, 0.00028619796
    %v3038 = vmul.f32 %v3035, %v3037
    %v3039 = vadd.f32 %v3038, 0.0036580483
    %v3040 = vmul.f32 %v3035, %v3039
    %v3041 = vadd.f32 %v3040, 0.05243302
    %v3042 = vmul.f32 %v3035, %v3041
    %v3043 = vadd.f32 %v3042, 0.18741608
    %v3044 = vmul.f32 %v3035, %v3043
    %v3045 = vadd.f32 %v3044, 1.1283791
    %v3046 = vmul.f32 %v2873, %v3045
    %v3047 = vmul.f32 %v3035, 3.8918573e-05
    %v3048 = vadd.f32 %v3047, 0.001143296
    %v3049 = vmul.f32 %v3035, %v3048
    %v3050 = vadd.f32 %v3049, 0.014752088
    %v3051 = vmul.f32 %v3035, %v3050
    %v3052 = vadd.f32 %v3051, 0.112945676
    %v3053 = vmul.f32 %v3035, %v3052
    %v3054 = vadd.f32 %v3053, 0.4994258
    %v3055 = vmul.f32 %v3035, %v3054
    %v3056 = vadd.f32 %v3055, 1.0
    %v3057 = vrcp.pop %v3056
    %v3058 = vmul.f32 %v3056, %v3057
    %v3059 = vsub.f32 1.0, %v3058
    %v3060 = vmul.f32 %v3057, %v3059
    %v3061 = vadd.f32 %v3057, %v3060
    %vm3062 = vweird.f32 %v3056
    %vm3063 = vweird.f32 %v3057
    %vm3064 = vmor %vm3062, %vm3063
    %v3065 = vsel %vm3064, %v3057, %v3061
    %v3066 = vand.u32 2147483647, %v3056
    %vm3067 = vcmp.eq.f32.partialorder %v3066, 8.507059e+37
    %v3068 = vand.u32 %v3056, 2147483648
    %v3069 = vor.u32 1.1754944e-38, %v3068
    %v3070 = vsel %vm3067, %v3069, %v3065
    %v3071 = vmul.f32 %v3046, %v3070
    %v3072 = vmin.f32 %v3071, 1.0
    %v3073 = vmax.f32 %v3072, -1.0
    %v3074 = vadd.f32 %v2913, 1.0
    %v3075 = vadd.f32 %v2953, 1.0
    %v3076 = vadd.f32 %v2993, 1.0
    %v3077 = vadd.f32 %v3033, 1.0
    %v3078 = vadd.f32 %v3073, 1.0
    %v3079 = vmul.f32 %v2864, %v3074
    %v3080 = vmul.f32 %v2865, %v3075
    %v3081 = vmul.f32 %v2866, %v3076
    %v3082 = vmul.f32 %v2867, %v3077
    %v3083 = vmul.f32 %v2868, %v3078
    %s3084 = scalar_lea.vmem %s13, 64
    %v3085 = vld [vmem:[%s3084] sm:$0xff]
    %v3086 = vld [vmem:[%s3084 + $0x8] sm:$0xff]
    %v3087 = vld [vmem:[%s3084 + $0x10] sm:$0xff]
    %v3088 = vld [vmem:[%s3084 + $0x18] sm:$0xff]
    %v3089 = vld [vmem:[%s3084 + $0x20] sm:$0xff]
    %v3090 = vld [vmem:[%s3084 + $0x28] sm:$0xff]
    %v3091 = vld [vmem:[%s3084 + $0x30] sm:$0xff]
    %v3092 = vld [vmem:[%s3084 + $0x38] sm:$0xff]
    %v3094 = vsel %vm1645, %v3079, 0
    %v3097 = vsel %vm1645, %v3080, 0
    %v3100 = vsel %vm1645, %v3081, 0
    %v3103 = vsel %vm1645, %v3082, 0
    %v3106 = vsel %vm1645, %v3083, 0
    %3108 = vmatpush.msra.mxu0 0.0
    %3109 = vmatpush.msra.mxu0 0.0
    %3110 = vmatpush.msra.mxu0 0.0
    %3111 = vmatpush.msra.mxu0 0.0
    %3112 = vmatpush.msra.mxu0 0.0
    %3113 = vmatpush.msra.mxu0 0.0
    %3114 = vmatpush.msra.mxu0 0.0
    %3115 = vmatpush.msra.mxu0 0.0
    %3116 = vmatpush.msra.mxu0 %v3092
    %3117 = vmatpush.msra.mxu0 %v3091
    %3118 = vmatpush.msra.mxu0 %v3090
    %3119 = vmatpush.msra.mxu0 %v3089
    %3120 = vmatpush.msra.mxu0 %v3088
    %3121 = vmatpush.msra.mxu0 %v3087
    %3122 = vmatpush.msra.mxu0 %v3086
    %3123 = vmatpush.msra.mxu0 %v3085
    %3124 = vmatmul.f32.gmra.mxu0 %v3094
    %v3125 = vpop.f32.mrf.mxu0
    %v3126 = vadd.f32 0.0, %v3125
    %3127 = vmatmul.f32.gmra.mxu0 %v3097
    %v3128 = vpop.f32.mrf.mxu0
    %v3129 = vadd.f32 0.0, %v3128
    %3130 = vmatmul.f32.gmra.mxu0 %v3100
    %v3131 = vpop.f32.mrf.mxu0
    %v3132 = vadd.f32 0.0, %v3131
    %3133 = vmatmul.f32.gmra.mxu0 %v3103
    %v3134 = vpop.f32.mrf.mxu0
    %v3135 = vadd.f32 0.0, %v3134
    %3136 = vmatmul.f32.gmra.mxu0 %v3106
    %v3137 = vpop.f32.mrf.mxu0
    %v3138 = vadd.f32 0.0, %v3137
    %3139 = vdwg.mxu0
    %v3140 = vadd.f32 %v2672, %v3126
    %v3141 = vadd.f32 %v2673, %v3129
    %v3142 = vadd.f32 %v2674, %v3132
    %v3143 = vadd.f32 %v2675, %v3135
    %v3144 = vadd.f32 %v2676, %v3138
    %s3145 = scalar_lea.vmem [#allocation12], 1
    %v3146 = vld [vmem:[%s3145] sm:$0x1]
    %v3148 = vperm.slane %v3146, 0
    %v3150 = vadd.f32 %v3140, %v3148
    %v3151 = vadd.f32 %v3141, %v3148
    %v3152 = vadd.f32 %v3142, %v3148
    %v3153 = vadd.f32 %v3143, %v3148
    %v3154 = vadd.f32 %v3144, %v3148
    %v3155 = vld [vmem:[%s15] sm:$0x1]
    %v3156 = vld [vmem:[%s16] sm:$0x1]
    %v3157 = vsel %vm260, %v3150, 0.0
    %3158 = vadd.xlane.f32.xlu0 %v3157
    %v3159 = vpop.xlane.xlu0 %3158
    %v3160 = vsel %vm260, %v3151, 0.0
    %3161 = vadd.xlane.f32.xlu0 %v3160
    %v3162 = vpop.xlane.xlu0 %3161
    %v3163 = vsel %vm260, %v3152, 0.0
    %3164 = vadd.xlane.f32.xlu0 %v3163
    %v3165 = vpop.xlane.xlu0 %3164
    %v3166 = vsel %vm260, %v3153, 0.0
    %3167 = vadd.xlane.f32.xlu0 %v3166
    %v3168 = vpop.xlane.xlu0 %3167
    %v3169 = vsel %vm273, %v3154, 0.0
    %3170 = vadd.xlane.f32.xlu0 %v3169
    %v3171 = vpop.xlane.xlu0 %3170
    %v3172 = vmul.f32 %v3159, %v283
    %v3173 = vmul.f32 %v3162, %v283
    %v3174 = vmul.f32 %v3165, %v283
    %v3175 = vmul.f32 %v3168, %v283
    %v3176 = vmul.f32 %v3171, %v283
    %v3177 = vsub.f32 %v3150, %v3172
    %v3178 = vsub.f32 %v3151, %v3173
    %v3179 = vsub.f32 %v3152, %v3174
    %v3180 = vsub.f32 %v3153, %v3175
    %v3181 = vsub.f32 %v3154, %v3176
    %v3182 = vmul.f32 %v3177, %v3177
    %v3183 = vmul.f32 %v3178, %v3178
    %v3184 = vmul.f32 %v3179, %v3179
    %v3185 = vmul.f32 %v3180, %v3180
    %v3186 = vmul.f32 %v3181, %v3181
    %v3187 = vsel %vm260, %v3182, 0.0
    %3188 = vadd.xlane.f32.xlu0 %v3187
    %v3189 = vpop.xlane.xlu0 %3188
    %v3190 = vsel %vm260, %v3183, 0.0
    %3191 = vadd.xlane.f32.xlu0 %v3190
    %v3192 = vpop.xlane.xlu0 %3191
    %v3193 = vsel %vm260, %v3184, 0.0
    %3194 = vadd.xlane.f32.xlu0 %v3193
    %v3195 = vpop.xlane.xlu0 %3194
    %v3196 = vsel %vm260, %v3185, 0.0
    %3197 = vadd.xlane.f32.xlu0 %v3196
    %v3198 = vpop.xlane.xlu0 %3197
    %v3199 = vsel %vm273, %v3186, 0.0
    %3200 = vadd.xlane.f32.xlu0 %v3199
    %v3201 = vpop.xlane.xlu0 %3200
    %v3202 = vmul.f32 %v3189, %v283
    %v3203 = vmul.f32 %v3192, %v283
    %v3204 = vmul.f32 %v3195, %v283
    %v3205 = vmul.f32 %v3198, %v283
    %v3206 = vmul.f32 %v3201, %v283
    %v3207 = vadd.f32 %v3202, 1e-05
    %v3208 = vadd.f32 %v3203, 1e-05
    %v3209 = vadd.f32 %v3204, 1e-05
    %v3210 = vadd.f32 %v3205, 1e-05
    %v3211 = vadd.f32 %v3206, 1e-05
    %v3212 = vrsqrt.pop %v3207
    %v3213 = vmul.f32 %v3212, %v3207
    %v3214 = vmul.f32 %v3213, %v3212
    %v3215 = vmul.f32 0.5, %v3214
    %v3216 = vsub.f32 1.5, %v3215
    %v3217 = vmul.f32 %v3212, %v3216
    %vm3218 = vweird.f32 %v3207
    %vm3219 = vweird.f32 %v3212
    %vm3220 = vmor %vm3218, %vm3219
    %v3221 = vsel %vm3220, %v3212, %v3217
    %v3222 = vrsqrt.pop %v3208
    %v3223 = vmul.f32 %v3222, %v3208
    %v3224 = vmul.f32 %v3223, %v3222
    %v3225 = vmul.f32 0.5, %v3224
    %v3226 = vsub.f32 1.5, %v3225
    %v3227 = vmul.f32 %v3222, %v3226
    %vm3228 = vweird.f32 %v3208
    %vm3229 = vweird.f32 %v3222
    %vm3230 = vmor %vm3228, %vm3229
    %v3231 = vsel %vm3230, %v3222, %v3227
    %v3232 = vrsqrt.pop %v3209
    %v3233 = vmul.f32 %v3232, %v3209
    %v3234 = vmul.f32 %v3233, %v3232
    %v3235 = vmul.f32 0.5, %v3234
    %v3236 = vsub.f32 1.5, %v3235
    %v3237 = vmul.f32 %v3232, %v3236
    %vm3238 = vweird.f32 %v3209
    %vm3239 = vweird.f32 %v3232
    %vm3240 = vmor %vm3238, %vm3239
    %v3241 = vsel %vm3240, %v3232, %v3237
    %v3242 = vrsqrt.pop %v3210
    %v3243 = vmul.f32 %v3242, %v3210
    %v3244 = vmul.f32 %v3243, %v3242
    %v3245 = vmul.f32 0.5, %v3244
    %v3246 = vsub.f32 1.5, %v3245
    %v3247 = vmul.f32 %v3242, %v3246
    %vm3248 = vweird.f32 %v3210
    %vm3249 = vweird.f32 %v3242
    %vm3250 = vmor %vm3248, %vm3249
    %v3251 = vsel %vm3250, %v3242, %v3247
    %v3252 = vrsqrt.pop %v3211
    %v3253 = vmul.f32 %v3252, %v3211
    %v3254 = vmul.f32 %v3253, %v3252
    %v3255 = vmul.f32 0.5, %v3254
    %v3256 = vsub.f32 1.5, %v3255
    %v3257 = vmul.f32 %v3252, %v3256
    %vm3258 = vweird.f32 %v3211
    %vm3259 = vweird.f32 %v3252
    %vm3260 = vmor %vm3258, %vm3259
    %v3261 = vsel %vm3260, %v3252, %v3257
    %v3262 = vmul.f32 %v3177, %v3221
    %v3263 = vmul.f32 %v3178, %v3231
    %v3264 = vmul.f32 %v3179, %v3241
    %v3265 = vmul.f32 %v3180, %v3251
    %v3266 = vmul.f32 %v3181, %v3261
    %v3268 = vperm.slane %v3155, 0
    %v3270 = vmul.f32 %v3262, %v3268
    %v3271 = vmul.f32 %v3263, %v3268
    %v3272 = vmul.f32 %v3264, %v3268
    %v3273 = vmul.f32 %v3265, %v3268
    %v3274 = vmul.f32 %v3266, %v3268
    %v3276 = vperm.slane %v3156, 0
    %v3278 = vadd.f32 %v3270, %v3276
    %v3279 = vadd.f32 %v3271, %v3276
    %v3280 = vadd.f32 %v3272, %v3276
    %v3281 = vadd.f32 %v3273, %v3276
    %v3282 = vadd.f32 %v3274, %v3276
    %3283 = vst.msk [vmem:[%s17] sm:$0xff] %vm260, %v3278
    %3284 = vst.msk [vmem:[%s17 + $0x8] sm:$0xff] %vm260, %v3279
    %3285 = vst.msk [vmem:[%s17 + $0x10] sm:$0xff] %vm260, %v3280
    %3286 = vst.msk [vmem:[%s17 + $0x18] sm:$0xff] %vm260, %v3281
    %3287 = vst.msk [vmem:[%s17 + $0x20] sm:$0x3] %vm273, %v3282
    // Predicated region
    $region98: #{tpu_custom_call.1} parent=1 // pred_check
      _
    $region99: #{tpu_custom_call.1} parent=1 // pred_check_branch
      %3289 = sbr.rel (0) target = $region101
    $region100: #{tpu_custom_call.1} parent=1 // pred_region
      _
    $region101: #{tpu_custom_call.1} parent=1 // pred_fallthru
      _
    // Predicated region
    $region102: #{tpu_custom_call.1} parent=1 // pred_check
      _
    $region103: #{tpu_custom_call.1} parent=1 // pred_check_branch
      %3291 = sbr.rel (0) target = $region105
    $region104: #{tpu_custom_call.1} parent=1 // pred_region
      _
    $region105: #{tpu_custom_call.1} parent=1 // pred_fallthru
      _
    %3292 = vsyncpa [#allocation3], 1
    %3293 = vsyncpa [#allocation5], 1
    %3294 = vsyncpa [#allocation8], 1
    %3295 = vsyncpa [#allocation11], 1

</llo_original>
